<compile_context>
chip_gen: v5e
topology: v5e:2x2
jax: 0.10.0
libtpu: 0.0.40
codegen_flags: <defaults>
</compile_context>

<pallas_src>
import functools
import math

import jax
import jax.numpy as jnp
from jax.experimental import pallas as pl
from jax.experimental.pallas import tpu as pltpu

ACT_DTYPE = jnp.bfloat16


# ----------------------------------------------------------------------------
# Generation-aware compiler params + feature probes (safe fallbacks everywhere).
# ----------------------------------------------------------------------------
@functools.lru_cache(maxsize=None)
def _vmem_limit_bytes():
    """~physical-VMEM minus headroom: ~100 MiB on 128-MiB v5e/v6e, 48 MiB on 64-MiB v7x."""
    try:
        info = pltpu.get_tpu_info()
        cap = getattr(info, "vmem_capacity_bytes", None)
        if cap:
            return int(min(100 * 2**20, max(32 * 2**20, int(cap) - 16 * 2**20)))
    except Exception:
        pass
    return 48 * 2**20


def _compiler_params():
    return pltpu.CompilerParams(
        dimension_semantics=("parallel",),
        vmem_limit_bytes=_vmem_limit_bytes())


def _sb_probe_kernel(x_ref, o_ref):
    o_ref[...] = x_ref[...] + 1.0


@functools.lru_cache(maxsize=None)
def _single_buffer_ok():
    """Probe pipeline_mode=pl.Buffered(1) (single-buffered grid-invariant weights)."""
    try:
        x = jnp.arange(8 * 128, dtype=jnp.float32).reshape(8, 128)
        f = pl.pallas_call(
            _sb_probe_kernel,
            out_shape=jax.ShapeDtypeStruct((16, 128), jnp.float32),
            grid=(2,),
            in_specs=[pl.BlockSpec((8, 128), lambda i: (0, 0),
                                   pipeline_mode=pl.Buffered(1))],
            out_specs=pl.BlockSpec((8, 128), lambda i: (i, 0)),
        )
        y = jax.block_until_ready(f(x))
        ref = x + 1.0
        return bool(jnp.allclose(y[:8], ref)) and bool(jnp.allclose(y[8:], ref))
    except Exception:
        return False


def _concat_probe_kernel(a_ref, b_ref, c_ref, o_ref):
    o_ref[...] = jnp.concatenate([a_ref[...], b_ref[...], c_ref[...]], axis=-1)


@functools.lru_cache(maxsize=None)
def _lane_concat_ok():
    """Probe in-kernel lane-dim concat of 128-aligned pieces (tap stacking); else
    fall back to per-tap dots."""
    try:
        a = jnp.arange(6 * 8 * 128, dtype=jnp.float32).reshape(6, 8, 128)
        b = a + 1.0
        c = a + 2.0
        f = pl.pallas_call(
            _concat_probe_kernel,
            out_shape=jax.ShapeDtypeStruct((6, 8, 384), jnp.float32),
        )
        y = jax.block_until_ready(f(a, b, c))
        return bool(jnp.allclose(y, jnp.concatenate([a, b, c], axis=-1)))
    except Exception:
        return False


def _weight_spec(shape):
    """Full-array, grid-invariant BlockSpec; single-buffered if supported."""
    nd = len(shape)
    index_map = lambda n, _nd=nd: (0,) * _nd
    if _single_buffer_ok():
        return pl.BlockSpec(tuple(shape), index_map, pipeline_mode=pl.Buffered(1))
    return pl.BlockSpec(tuple(shape), index_map)


def _use_stacked(cin):
    return (cin % 128 == 0) and _lane_concat_ok()


def _conv_mode(cin):
    return "rows" if _use_stacked(cin) else "taps"


def _prep_w3x3(w):
    """(3,3,Cin,Cout) -> (3, 3*Cin, Cout) when the dx taps are lane-stacked, else as-is."""
    kh, kw, ci, co = w.shape
    if _use_stacked(ci):
        return w.reshape(kh, kw * ci, co)
    return w


# ----------------------------------------------------------------------------
# In-kernel helpers.
# ----------------------------------------------------------------------------
def _zero_halo(ref):
    """Zero only the 1-pixel halo ring of a padded (H+2, W+2, C) VMEM scratch."""
    Hp, Wp, C = ref.shape
    zr = jnp.zeros((1, Wp, C), ref.dtype)
    ref[pl.ds(0, 1), pl.ds(0, Wp), :] = zr
    ref[pl.ds(Hp - 1, 1), pl.ds(0, Wp), :] = zr
    zc = jnp.zeros((Hp - 2, 1, C), ref.dtype)
    ref[pl.ds(1, Hp - 2), pl.ds(0, 1), :] = zc
    ref[pl.ds(1, Hp - 2), pl.ds(Wp - 1, 1), :] = zc


def _conv3x3(pad_ref, w_ref, H, W, Cin, mode):
    """3x3 'same' conv from a zero-halo padded VMEM ref -> (H*W, Cout) f32 accumulator.

    mode == "rows": the three dx taps are stacked on the lane dim -> 3 dots, K = 3*Cin
                    (w_ref is (3, 3*Cin, Cout)); requires Cin % 128 == 0.
    mode == "taps": 9 dots with K = Cin (w_ref is (3,3,Cin,Cout)); the 3 dx-shifted
                    views are materialized once and reused across dy.
    """
    M = H * W
    Hp = H + 2
    if mode == "rows":
        xrow = jnp.concatenate(
            [pad_ref[pl.ds(0, Hp), pl.ds(dx, W), :] for dx in range(3)], axis=-1)
        acc = None
        for dy in range(3):
            lhs = xrow[dy:dy + H].reshape(M, 3 * Cin)
            term = jnp.dot(lhs, w_ref[dy], preferred_element_type=jnp.float32)
            acc = term if acc is None else acc + term
        return acc
    xs = [pad_ref[pl.ds(0, Hp), pl.ds(dx, W), :] for dx in range(3)]
    acc = None
    for dy in range(3):
        for dx in range(3):
            lhs = xs[dx][dy:dy + H].reshape(M, Cin)
            term = jnp.dot(lhs, w_ref[dy, dx], preferred_element_type=jnp.float32)
            acc = term if acc is None else acc + term
    return acc


# ----------------------------------------------------------------------------
# Fused stage kernel: ResidualBlock(Cin->C) + ResidualBlock(C->C) [+ 2x2 max-pool].
# ----------------------------------------------------------------------------
def _make_stage_kernel(H, W, Cin, C, pool, use_xcol):
    M = H * W
    mode_in = _conv_mode(Cin)
    mode_c = _conv_mode(C)

    def kernel(*refs):
        it = iter(refs)
        x_ref = next(it)                               # (1, H, W, Cin) unpadded input
        xcol_ref = next(it) if use_xcol else None      # (1, H, W, 9*Cin) entry im2col
        w1a_ref = next(it)                             # block1 conv1
        w1b_ref = next(it)                             # block1 conv2
        ws_ref = next(it)                              # (Cin, C) block1 1x1 shortcut
        w2a_ref = next(it)                             # block2 conv1
        w2b_ref = next(it)                             # block2 conv2
        o_ref = next(it)
        xpad_ref = None if use_xcol else next(it)      # (H+2, W+2, Cin)
        apad_ref = next(it)                            # (H+2, W+2, C)
        bpad_ref = next(it)                            # (H+2, W+2, C)

        # Zero only the halo rings (interiors are fully overwritten every step).
        if xpad_ref is not None:
            _zero_halo(xpad_ref)
        _zero_halo(apad_ref)
        _zero_halo(bpad_ref)

        x_flat = x_ref[0].reshape(M, Cin)

        # ---- block 1: conv1 (3x3 Cin->C) + ReLU ----
        if use_xcol:
            acc = jnp.dot(xcol_ref[0].reshape(M, 9 * Cin), w1a_ref[...],
                          preferred_element_type=jnp.float32)
        else:
            xpad_ref[pl.ds(1, H), pl.ds(1, W), :] = x_ref[0]
            acc = _conv3x3(xpad_ref, w1a_ref, H, W, Cin, mode_in)
        h = jnp.maximum(acc, 0.0).astype(apad_ref.dtype)
        apad_ref[pl.ds(1, H), pl.ds(1, W), :] = h.reshape(H, W, C)

        # ---- block 1: conv2 (3x3 C->C) + 1x1 shortcut + ReLU ----
        acc = _conv3x3(apad_ref, w1b_ref, H, W, C, mode_c)
        acc = acc + jnp.dot(x_flat, ws_ref[...], preferred_element_type=jnp.float32)
        y1 = jnp.maximum(acc, 0.0).astype(bpad_ref.dtype)
        bpad_ref[pl.ds(1, H), pl.ds(1, W), :] = y1.reshape(H, W, C)

        # ---- block 2: conv1 (3x3 C->C) + ReLU ----
        acc = _conv3x3(bpad_ref, w2a_ref, H, W, C, mode_c)
        h2 = jnp.maximum(acc, 0.0).astype(apad_ref.dtype)
        apad_ref[pl.ds(1, H), pl.ds(1, W), :] = h2.reshape(H, W, C)

        # ---- block 2: conv2 (3x3 C->C) + identity shortcut + ReLU ----
        acc = _conv3x3(apad_ref, w2b_ref, H, W, C, mode_c)
        acc = acc + y1.astype(jnp.float32)
        out = jnp.maximum(acc, 0.0)

        # ---- optional fused 2x2 / stride-2 max-pool + store ----
        if pool:
            Ho, Wo = H // 2, W // 2
            o = out.reshape(Ho, 2 * W, C)
            o = jnp.maximum(o[:, :W, :], o[:, W:, :])     # pool row pairs
            o = o.reshape(Ho, Wo, 2, C)
            o = jnp.maximum(o[:, :, 0, :], o[:, :, 1, :])  # pool column pairs
            o_ref[...] = o.reshape(1, Ho, Wo, C).astype(o_ref.dtype)
        else:
            o_ref[...] = out.reshape(1, H, W, C).astype(o_ref.dtype)

    return kernel


def _im2col_3x3(x):
    """Plain-JAX glue for the 3-channel entry conv only: (N,H,W,3) -> (N,H,W,27)."""
    N, H, W, C = x.shape
    xp = jnp.pad(x, ((0, 0), (1, 1), (1, 1), (0, 0)))
    taps = [xp[:, dy:dy + H, dx:dx + W, :] for dy in range(3) for dx in range(3)]
    return jnp.concatenate(taps, axis=-1)


def residual_stage(x, p1, p2, *, pool):
    """Fused (ResidualBlock(Cin->C), ResidualBlock(C->C)[, MaxPool2d(2,2)]) stage."""
    N, H, W, Cin = x.shape
    C = p1["conv2"].shape[-1]
    assert p1["shortcut"] is not None and p2["shortcut"] is None
    use_xcol = (Cin == 3)
    Hp, Wp = H + 2, W + 2
    Ho, Wo = (H // 2, W // 2) if pool else (H, W)

    inputs = [x]
    in_specs = [pl.BlockSpec((1, H, W, Cin), lambda n: (n, 0, 0, 0))]
    if use_xcol:
        inputs.append(_im2col_3x3(x))
        in_specs.append(pl.BlockSpec((1, H, W, 9 * Cin), lambda n: (n, 0, 0, 0)))
        w1a = p1["conv1"].reshape(9 * Cin, C)
    else:
        w1a = _prep_w3x3(p1["conv1"])
    weights = [w1a,
               _prep_w3x3(p1["conv2"]),
               p1["shortcut"].reshape(Cin, C),
               _prep_w3x3(p2["conv1"]),
               _prep_w3x3(p2["conv2"])]
    for w in weights:
        inputs.append(w)
        in_specs.append(_weight_spec(w.shape))

    scratch = []
    if not use_xcol:
        scratch.append(pltpu.VMEM((Hp, Wp, Cin), ACT_DTYPE))
    scratch += [pltpu.VMEM((Hp, Wp, C), ACT_DTYPE),
                pltpu.VMEM((Hp, Wp, C), ACT_DTYPE)]

    return pl.pallas_call(
        _make_stage_kernel(H, W, Cin, C, pool, use_xcol),
        out_shape=jax.ShapeDtypeStruct((N, Ho, Wo, C), ACT_DTYPE),
        grid=(N,),
        in_specs=in_specs,
        out_specs=pl.BlockSpec((1, Ho, Wo, C), lambda n: (n, 0, 0, 0)),
        scratch_shapes=scratch,
        compiler_params=_compiler_params(),
    )(*inputs)


# ----------------------------------------------------------------------------
# Fused channel-concat + 1x1 conv (layer4 entry):  y = rgb @ W[:C] + t @ W[C:].
# ----------------------------------------------------------------------------
def _make_cat1x1_kernel(H, W, C, Cout):
    M = H * W

    def kernel(a_ref, b_ref, wt_ref, wb_ref, o_ref):
        acc = jnp.dot(a_ref[0].reshape(M, C), wt_ref[...],
                      preferred_element_type=jnp.float32)
        acc = acc + jnp.dot(b_ref[0].reshape(M, C), wb_ref[...],
                            preferred_element_type=jnp.float32)
        o_ref[...] = acc.reshape(1, H, W, Cout).astype(o_ref.dtype)

    return kernel


def cat_conv1x1(rgb, t, w):
    N, H, W, C = rgb.shape
    Cout = w.shape[-1]
    w2 = w.reshape(2 * C, Cout)
    return pl.pallas_call(
        _make_cat1x1_kernel(H, W, C, Cout),
        out_shape=jax.ShapeDtypeStruct((N, H, W, Cout), ACT_DTYPE),
        grid=(N,),
        in_specs=[
            pl.BlockSpec((1, H, W, C), lambda n: (n, 0, 0, 0)),
            pl.BlockSpec((1, H, W, C), lambda n: (n, 0, 0, 0)),
            _weight_spec((C, Cout)),
            _weight_spec((C, Cout)),
        ],
        out_specs=pl.BlockSpec((1, H, W, Cout), lambda n: (n, 0, 0, 0)),
        compiler_params=_compiler_params(),
    )(rgb, t, w2[:C], w2[C:])


# ----------------------------------------------------------------------------
# Fused head: layer5 (3x3+ReLU, 3x3) + 1x1 model shortcut + layer6 (ReLU, 1x1+bias) + abs.
# ----------------------------------------------------------------------------
def _make_head_kernel(H, W, Cin, Cmid, Cout):
    M = H * W
    mode_in = _conv_mode(Cin)
    mode_mid = _conv_mode(Cmid)

    def kernel(x_ref, w5a_ref, w5b_ref, wsc_ref, w6_ref, b6_ref, o_ref,
               xpad_ref, hpad_ref):
        _zero_halo(xpad_ref)
        _zero_halo(hpad_ref)
        xpad_ref[pl.ds(1, H), pl.ds(1, W), :] = x_ref[0]

        # layer5 conv a: 3x3 Cin->Cmid + ReLU
        acc = _conv3x3(xpad_ref, w5a_ref, H, W, Cin, mode_in)
        h = jnp.maximum(acc, 0.0).astype(hpad_ref.dtype)
        hpad_ref[pl.ds(1, H), pl.ds(1, W), :] = h.reshape(H, W, Cmid)

        # layer5 conv b: 3x3 Cmid->Cout
        acc = _conv3x3(hpad_ref, w5b_ref, H, W, Cmid, mode_mid)

        # model-level shortcut: 1x1 Cin->Cout on the same input
        acc = acc + jnp.dot(x_ref[0].reshape(M, Cin), wsc_ref[...],
                            preferred_element_type=jnp.float32)

        # layer6: ReLU -> 1x1 conv (Cout->1) + bias -> abs; lane-major (1,1,M) store.
        y = jnp.maximum(acc, 0.0).astype(ACT_DTYPE)
        row = jax.lax.dot_general(w6_ref[...], y,
                                  dimension_numbers=(((1,), (1,)), ((), ())),
                                  preferred_element_type=jnp.float32)   # (1, M)
        o_ref[...] = jnp.abs(row + b6_ref[...]).reshape(1, 1, M)

    return kernel


def head(x, p):
    N, H, W, Cin = x.shape
    Cmid = p["l5_c1"].shape[-1]
    Cout = p["l5_c2"].shape[-1]
    M = H * W
    weights = [_prep_w3x3(p["l5_c1"]),
               _prep_w3x3(p["l5_c2"]),
               p["shortcut"].reshape(Cin, Cout),
               p["l6_w"].reshape(1, Cout),
               p["l6_bias"].reshape(1, 1)]
    in_specs = [pl.BlockSpec((1, H, W, Cin), lambda n: (n, 0, 0, 0))]
    in_specs += [_weight_spec(w.shape) for w in weights]
    out = pl.pallas_call(
        _make_head_kernel(H, W, Cin, Cmid, Cout),
        out_shape=jax.ShapeDtypeStruct((N, 1, M), jnp.float32),
        grid=(N,),
        in_specs=in_specs,
        out_specs=pl.BlockSpec((1, 1, M), lambda n: (n, 0, 0)),
        scratch_shapes=[pltpu.VMEM((H + 2, W + 2, Cin), ACT_DTYPE),
                        pltpu.VMEM((H + 2, W + 2, Cmid), ACT_DTYPE)],
        compiler_params=_compiler_params(),
    )(x, *weights)
    return out.reshape(N, H, W, 1)


# ----------------------------------------------------------------------------
# Parameters (deterministic kaiming_normal fan_out init matching the module).
# ----------------------------------------------------------------------------
def _kaiming(key, shape):
    kh, kw, _, cout = shape
    std = math.sqrt(2.0 / (cout * kh * kw))
    return (std * jax.random.normal(key, shape, jnp.float32)).astype(ACT_DTYPE)


def init_params(key):
    keys = iter(jax.random.split(key, 64))

    def w(kh, kw, ci, co):
        return _kaiming(next(keys), (kh, kw, ci, co))

    def rb(ci, co):
        return {"conv1": w(3, 3, ci, co),
                "conv2": w(3, 3, co, co),
                "shortcut": (w(1, 1, ci, co) if ci != co else None)}

    return {
        "l1_rb1": rb(3, 64),    "l1_rb2": rb(64, 64),
        "l2_rb1": rb(64, 128),  "l2_rb2": rb(128, 128),
        "l3_rb1": rb(128, 256), "l3_rb2": rb(256, 256),
        "l4_conv": w(1, 1, 512, 256),
        "l4_rb1": rb(256, 512), "l4_rb2": rb(512, 512),
        "l5_c1": w(3, 3, 512, 256), "l5_c2": w(3, 3, 256, 128),
        "shortcut": w(1, 1, 512, 128),
        "l6_w": w(1, 1, 128, 1),
        "l6_bias": jnp.zeros((1,), jnp.float32),     # nn.init.constant_(bias, 0)
    }


# ----------------------------------------------------------------------------
# Model forward.
# ----------------------------------------------------------------------------
def fusion_forward(P, rgb, t):
    rgb = rgb.astype(ACT_DTYPE)
    t = t.astype(ACT_DTYPE)

    def backbone(x):  # layer1 / layer2 / layer3 (weights shared across both streams)
        x = residual_stage(x, P["l1_rb1"], P["l1_rb2"], pool=True)
        x = residual_stage(x, P["l2_rb1"], P["l2_rb2"], pool=True)
        x = residual_stage(x, P["l3_rb1"], P["l3_rb2"], pool=True)
        return x

    rgb = backbone(rgb)
    t = backbone(t)
    x = cat_conv1x1(rgb, t, P["l4_conv"])                         # concat + 1x1 (512->256)
    x = residual_stage(x, P["l4_rb1"], P["l4_rb2"], pool=False)   # 256->512, 512->512
    return head(x, P)                                             # layer5 + shortcut + layer6 + abs


if __name__ == "__main__":
    # Pre-warm hardware/feature probes outside of tracing.
    _vmem_limit_bytes()
    _single_buffer_ok()
    _lane_concat_ok()

    key = jax.random.PRNGKey(0)
    kp, kr, kt = jax.random.split(key, 3)
    params = init_params(kp)
    rgb = jax.random.normal(kr, (2, 16, 16, 3), jnp.float32)   # NHWC
    t = jax.random.normal(kt, (2, 16, 16, 3), jnp.float32)     # NHWC
    fwd = jax.jit(fusion_forward)
    out = fwd(params, rgb, t)
    jax.block_until_ready(out)
    assert out.shape == (2, 2, 2, 1)                            # (N, H/8, W/8, 1)
    print("KERNEL_OK")
</pallas_src>

<mosaic_0001>
module attributes {stable_mosaic.version = 11 : i64} {
  func.func @_sb_probe_kernel(%arg0: i32, %arg1: memref<8x128xf32, #tpu.memory_space<vmem>>, %arg2: memref<8x128xf32, #tpu.memory_space<vmem>>) attributes {dimension_semantics = [#tpu.dimension_semantics<arbitrary>], iteration_bounds = array<i64: 2>, scalar_prefetch = 0 : i64, scratch_operands = 0 : i64, tpu.core_type = #tpu.core_type<tc>, window_params = [{pipeline_mode = #tpu.pipeline_mode<synchronous>, transform_indices = @transform_0, window_bounds = array<i64: 8, 128>}, {transform_indices = @transform_1, window_bounds = array<i64: 8, 128>}]} {
    %c0 = arith.constant 0 : index
    %c0_0 = arith.constant 0 : index
    %0 = vector.load %arg1[%c0, %c0_0] : memref<8x128xf32, #tpu.memory_space<vmem>>, vector<8x128xf32>
    %cst = arith.constant 1.000000e+00 : f32
    %1 = vector.broadcast %cst : f32 to vector<8x128xf32>
    %2 = arith.addf %0, %1 : vector<8x128xf32>
    %c0_1 = arith.constant 0 : index
    %c0_2 = arith.constant 0 : index
    %3 = vector.load %arg2[%c0_1, %c0_2] : memref<8x128xf32, #tpu.memory_space<vmem>>, vector<8x128xf32>
    tpu.vector_store %arg2[%c0_1, %c0_2], %2 {strides = array<i32>} : memref<8x128xf32, #tpu.memory_space<vmem>>, vector<8x128xf32>,
    return
  }
  func.func @transform_0(%arg0: i32) -> (i32, i32) {
    %c0_i32 = arith.constant 0 : i32
    %c0_i32_0 = arith.constant 0 : i32
    %c0_i32_1 = arith.constant 0 : i32
    return %c0_i32, %c0_i32_0 : i32, i32
  }
  func.func @transform_1(%arg0: i32) -> (i32, i32) {
    %c0_i32 = arith.constant 0 : i32
    %c0_i32_0 = arith.constant 0 : i32
    return %arg0, %c0_i32 : i32, i32
  }
}

module attributes {stable_mosaic.version = 11 : i64} {
  func.func @_concat_probe_kernel(%arg0: memref<6x8x128xf32, #tpu.memory_space<vmem>>, %arg1: memref<6x8x128xf32, #tpu.memory_space<vmem>>, %arg2: memref<6x8x128xf32, #tpu.memory_space<vmem>>, %arg3: memref<6x8x384xf32, #tpu.memory_space<vmem>>) attributes {dimension_semantics = [], scalar_prefetch = 0 : i64, scratch_operands = 0 : i64, tpu.core_type = #tpu.core_type<tc>} {
    %c0 = arith.constant 0 : index
    %c0_0 = arith.constant 0 : index
    %c0_1 = arith.constant 0 : index
    %0 = vector.load %arg0[%c0, %c0_0, %c0_1] : memref<6x8x128xf32, #tpu.memory_space<vmem>>, vector<6x8x128xf32>
    %c0_2 = arith.constant 0 : index
    %c0_3 = arith.constant 0 : index
    %c0_4 = arith.constant 0 : index
    %1 = vector.load %arg1[%c0_2, %c0_3, %c0_4] : memref<6x8x128xf32, #tpu.memory_space<vmem>>, vector<6x8x128xf32>
    %c0_5 = arith.constant 0 : index
    %c0_6 = arith.constant 0 : index
    %c0_7 = arith.constant 0 : index
    %2 = vector.load %arg2[%c0_5, %c0_6, %c0_7] : memref<6x8x128xf32, #tpu.memory_space<vmem>>, vector<6x8x128xf32>
    %3 = tpu.concatenate %0, %1, %2 in 2 : vector<6x8x128xf32>, vector<6x8x128xf32>, vector<6x8x128xf32> -> vector<6x8x384xf32>
    %c0_8 = arith.constant 0 : index
    %c0_9 = arith.constant 0 : index
    %c0_10 = arith.constant 0 : index
    %4 = vector.load %arg3[%c0_8, %c0_9, %c0_10] : memref<6x8x384xf32, #tpu.memory_space<vmem>>, vector<6x8x384xf32>
    tpu.vector_store %arg3[%c0_8, %c0_9, %c0_10], %3 {strides = array<i32>} : memref<6x8x384xf32, #tpu.memory_space<vmem>>, vector<6x8x384xf32>,
    return
  }
}

module attributes {stable_mosaic.version = 11 : i64} {
  func.func @kernel(%arg0: i32, %arg1: memref<1x16x16x3xbf16, #tpu.memory_space<vmem>>, %arg2: memref<1x16x16x27xbf16, #tpu.memory_space<vmem>>, %arg3: memref<27x64xbf16, #tpu.memory_space<vmem>>, %arg4: memref<3x3x64x64xbf16, #tpu.memory_space<vmem>>, %arg5: memref<3x64xbf16, #tpu.memory_space<vmem>>, %arg6: memref<3x3x64x64xbf16, #tpu.memory_space<vmem>>, %arg7: memref<3x3x64x64xbf16, #tpu.memory_space<vmem>>, %arg8: memref<1x8x8x64xbf16, #tpu.memory_space<vmem>>, %arg9: memref<18x18x64xbf16, #tpu.memory_space<vmem>>, %arg10: memref<18x18x64xbf16, #tpu.memory_space<vmem>>) attributes {dimension_semantics = [#tpu.dimension_semantics<parallel>], iteration_bounds = array<i64: 2>, scalar_prefetch = 0 : i64, scratch_operands = 2 : i64, tpu.core_type = #tpu.core_type<tc>, window_params = [{transform_indices = @transform_0, window_bounds = array<i64: 1, 16, 16, 3>}, {transform_indices = @transform_1, window_bounds = array<i64: 1, 16, 16, 27>}, {pipeline_mode = #tpu.pipeline_mode<synchronous>, transform_indices = @transform_2, window_bounds = array<i64: 27, 64>}, {pipeline_mode = #tpu.pipeline_mode<synchronous>, transform_indices = @transform_3, window_bounds = array<i64: 3, 3, 64, 64>}, {pipeline_mode = #tpu.pipeline_mode<synchronous>, transform_indices = @transform_4, window_bounds = array<i64: 3, 64>}, {pipeline_mode = #tpu.pipeline_mode<synchronous>, transform_indices = @transform_5, window_bounds = array<i64: 3, 3, 64, 64>}, {pipeline_mode = #tpu.pipeline_mode<synchronous>, transform_indices = @transform_6, window_bounds = array<i64: 3, 3, 64, 64>}, {transform_indices = @transform_7, window_bounds = array<i64: 1, 8, 8, 64>}]} {
    %cst = arith.constant 0.000000e+00 : bf16
    %0 = vector.broadcast %cst : bf16 to vector<1x18x64xbf16>
    %c0 = arith.constant 0 : index
    %c0_0 = arith.constant 0 : index
    %c0_1 = arith.constant 0 : index
    %1 = vector.load %arg9[%c0, %c0_0, %c0_1] : memref<18x18x64xbf16, #tpu.memory_space<vmem>>, vector<1x18x64xbf16>
    tpu.vector_store %arg9[%c0, %c0_0, %c0_1], %0 {strides = array<i32>} : memref<18x18x64xbf16, #tpu.memory_space<vmem>>, vector<1x18x64xbf16>,
    %c17 = arith.constant 17 : index
    %c0_2 = arith.constant 0 : index
    %c0_3 = arith.constant 0 : index
    %2 = vector.load %arg9[%c17, %c0_2, %c0_3] : memref<18x18x64xbf16, #tpu.memory_space<vmem>>, vector<1x18x64xbf16>
    tpu.vector_store %arg9[%c17, %c0_2, %c0_3], %0 {strides = array<i32>} : memref<18x18x64xbf16, #tpu.memory_space<vmem>>, vector<1x18x64xbf16>,
    %cst_4 = arith.constant 0.000000e+00 : bf16
    %3 = vector.broadcast %cst_4 : bf16 to vector<16x1x64xbf16>
    %c1 = arith.constant 1 : index
    %c0_5 = arith.constant 0 : index
    %c0_6 = arith.constant 0 : index
    %4 = vector.load %arg9[%c1, %c0_5, %c0_6] : memref<18x18x64xbf16, #tpu.memory_space<vmem>>, vector<16x1x64xbf16>
    tpu.vector_store %arg9[%c1, %c0_5, %c0_6], %3 {strides = array<i32>} : memref<18x18x64xbf16, #tpu.memory_space<vmem>>, vector<16x1x64xbf16>,
    %c1_7 = arith.constant 1 : index
    %c17_8 = arith.constant 17 : index
    %c0_9 = arith.constant 0 : index
    %5 = vector.load %arg9[%c1_7, %c17_8, %c0_9] : memref<18x18x64xbf16, #tpu.memory_space<vmem>>, vector<16x1x64xbf16>
    tpu.vector_store %arg9[%c1_7, %c17_8, %c0_9], %3 {strides = array<i32>} : memref<18x18x64xbf16, #tpu.memory_space<vmem>>, vector<16x1x64xbf16>,
    %cst_10 = arith.constant 0.000000e+00 : bf16
    %6 = vector.broadcast %cst_10 : bf16 to vector<1x18x64xbf16>
    %c0_11 = arith.constant 0 : index
    %c0_12 = arith.constant 0 : index
    %c0_13 = arith.constant 0 : index
    %7 = vector.load %arg10[%c0_11, %c0_12, %c0_13] : memref<18x18x64xbf16, #tpu.memory_space<vmem>>, vector<1x18x64xbf16>
    tpu.vector_store %arg10[%c0_11, %c0_12, %c0_13], %6 {strides = array<i32>} : memref<18x18x64xbf16, #tpu.memory_space<vmem>>, vector<1x18x64xbf16>,
    %c17_14 = arith.constant 17 : index
    %c0_15 = arith.constant 0 : index
    %c0_16 = arith.constant 0 : index
    %8 = vector.load %arg10[%c17_14, %c0_15, %c0_16] : memref<18x18x64xbf16, #tpu.memory_space<vmem>>, vector<1x18x64xbf16>
    tpu.vector_store %arg10[%c17_14, %c0_15, %c0_16], %6 {strides = array<i32>} : memref<18x18x64xbf16, #tpu.memory_space<vmem>>, vector<1x18x64xbf16>,
    %cst_17 = arith.constant 0.000000e+00 : bf16
    %9 = vector.broadcast %cst_17 : bf16 to vector<16x1x64xbf16>
    %c1_18 = arith.constant 1 : index
    %c0_19 = arith.constant 0 : index
    %c0_20 = arith.constant 0 : index
    %10 = vector.load %arg10[%c1_18, %c0_19, %c0_20] : memref<18x18x64xbf16, #tpu.memory_space<vmem>>, vector<16x1x64xbf16>
    tpu.vector_store %arg10[%c1_18, %c0_19, %c0_20], %9 {strides = array<i32>} : memref<18x18x64xbf16, #tpu.memory_space<vmem>>, vector<16x1x64xbf16>,
    %c1_21 = arith.constant 1 : index
    %c17_22 = arith.constant 17 : index
    %c0_23 = arith.constant 0 : index
    %11 = vector.load %arg10[%c1_21, %c17_22, %c0_23] : memref<18x18x64xbf16, #tpu.memory_space<vmem>>, vector<16x1x64xbf16>
    tpu.vector_store %arg10[%c1_21, %c17_22, %c0_23], %9 {strides = array<i32>} : memref<18x18x64xbf16, #tpu.memory_space<vmem>>, vector<16x1x64xbf16>,
    %c0_24 = arith.constant 0 : index
    %c0_25 = arith.constant 0 : index
    %c0_26 = arith.constant 0 : index
    %c0_27 = arith.constant 0 : index
    %12 = vector.load %arg1[%c0_24, %c0_25, %c0_26, %c0_27] : memref<1x16x16x3xbf16, #tpu.memory_space<vmem>>, vector<1x16x16x3xbf16>
    %13 = vector.shape_cast %12 : vector<1x16x16x3xbf16> to vector<16x16x3xbf16>
    %14 = vector.shape_cast %13 : vector<16x16x3xbf16> to vector<256x3xbf16>
    %c0_28 = arith.constant 0 : index
    %c0_29 = arith.constant 0 : index
    %c0_30 = arith.constant 0 : index
    %c0_31 = arith.constant 0 : index
    %15 = vector.load %arg2[%c0_28, %c0_29, %c0_30, %c0_31] : memref<1x16x16x27xbf16, #tpu.memory_space<vmem>>, vector<1x16x16x27xbf16>
    %16 = vector.shape_cast %15 : vector<1x16x16x27xbf16> to vector<16x16x27xbf16>
    %17 = vector.shape_cast %16 : vector<16x16x27xbf16> to vector<256x27xbf16>
    %c0_32 = arith.constant 0 : index
    %c0_33 = arith.constant 0 : index
    %18 = vector.load %arg3[%c0_32, %c0_33] : memref<27x64xbf16, #tpu.memory_space<vmem>>, vector<27x64xbf16>
    %cst_34 = arith.constant dense<0.000000e+00> : vector<256x64xf32>
    %19 = tpu.matmul %17, %18, %cst_34 {dimension_numbers = #tpu.dot_dimension_numbers<[1], [0], [0], [1], [0, 0, 1, 1], [], []>} : vector<256x27xbf16>, vector<27x64xbf16>, vector<256x64xf32> -> vector<256x64xf32>
    %cst_35 = arith.constant 0.000000e+00 : f32
    %20 = vector.broadcast %cst_35 : f32 to vector<256x64xf32>
    %21 = arith.maximumf %19, %20 : vector<256x64xf32>
    %22 = arith.truncf %21 : vector<256x64xf32> to vector<256x64xbf16>
    %23 = vector.shape_cast %22 : vector<256x64xbf16> to vector<16x16x64xbf16>
    %c1_36 = arith.constant 1 : index
    %c1_37 = arith.constant 1 : index
    %c0_38 = arith.constant 0 : index
    %24 = vector.load %arg9[%c1_36, %c1_37, %c0_38] : memref<18x18x64xbf16, #tpu.memory_space<vmem>>, vector<16x16x64xbf16>
    tpu.vector_store %arg9[%c1_36, %c1_37, %c0_38], %23 {strides = array<i32>} : memref<18x18x64xbf16, #tpu.memory_space<vmem>>, vector<16x16x64xbf16>,
    %c0_39 = arith.constant 0 : index
    %c0_40 = arith.constant 0 : index
    %c0_41 = arith.constant 0 : index
    %25 = vector.load %arg9[%c0_39, %c0_40, %c0_41] : memref<18x18x64xbf16, #tpu.memory_space<vmem>>, vector<18x16x64xbf16>
    %c0_42 = arith.constant 0 : index
    %c1_43 = arith.constant 1 : index
    %c0_44 = arith.constant 0 : index
    %26 = vector.load %arg9[%c0_42, %c1_43, %c0_44] : memref<18x18x64xbf16, #tpu.memory_space<vmem>>, vector<18x16x64xbf16>
    %c0_45 = arith.constant 0 : index
    %c2 = arith.constant 2 : index
    %c0_46 = arith.constant 0 : index
    %27 = vector.load %arg9[%c0_45, %c2, %c0_46] : memref<18x18x64xbf16, #tpu.memory_space<vmem>>, vector<18x16x64xbf16>
    %28 = vector.extract_strided_slice %25 {offsets = [0, 0, 0], sizes = [16, 16, 64], strides = [1, 1, 1]} : vector<18x16x64xbf16> to vector<16x16x64xbf16>
    %29 = vector.shape_cast %28 : vector<16x16x64xbf16> to vector<256x64xbf16>
    %c0_47 = arith.constant 0 : index
    %c0_48 = arith.constant 0 : index
    %c0_49 = arith.constant 0 : index
    %c0_50 = arith.constant 0 : index
    %30 = vector.load %arg4[%c0_47, %c0_48, %c0_49, %c0_50] : memref<3x3x64x64xbf16, #tpu.memory_space<vmem>>, vector<1x1x64x64xbf16>
    %31 = vector.shape_cast %30 : vector<1x1x64x64xbf16> to vector<64x64xbf16>
    %cst_51 = arith.constant dense<0.000000e+00> : vector<256x64xf32>
    %32 = tpu.matmul %29, %31, %cst_51 {dimension_numbers = #tpu.dot_dimension_numbers<[1], [0], [0], [1], [0, 0, 1, 1], [], []>} : vector<256x64xbf16>, vector<64x64xbf16>, vector<256x64xf32> -> vector<256x64xf32>
    %33 = vector.extract_strided_slice %26 {offsets = [0, 0, 0], sizes = [16, 16, 64], strides = [1, 1, 1]} : vector<18x16x64xbf16> to vector<16x16x64xbf16>
    %34 = vector.shape_cast %33 : vector<16x16x64xbf16> to vector<256x64xbf16>
    %c0_52 = arith.constant 0 : index
    %c1_53 = arith.constant 1 : index
    %c0_54 = arith.constant 0 : index
    %c0_55 = arith.constant 0 : index
    %35 = vector.load %arg4[%c0_52, %c1_53, %c0_54, %c0_55] : memref<3x3x64x64xbf16, #tpu.memory_space<vmem>>, vector<1x1x64x64xbf16>
    %36 = vector.shape_cast %35 : vector<1x1x64x64xbf16> to vector<64x64xbf16>
    %cst_56 = arith.constant dense<0.000000e+00> : vector<256x64xf32>
    %37 = tpu.matmul %34, %36, %cst_56 {dimension_numbers = #tpu.dot_dimension_numbers<[1], [0], [0], [1], [0, 0, 1, 1], [], []>} : vector<256x64xbf16>, vector<64x64xbf16>, vector<256x64xf32> -> vector<256x64xf32>
    %38 = arith.addf %32, %37 : vector<256x64xf32>
    %39 = vector.extract_strided_slice %27 {offsets = [0, 0, 0], sizes = [16, 16, 64], strides = [1, 1, 1]} : vector<18x16x64xbf16> to vector<16x16x64xbf16>
    %40 = vector.shape_cast %39 : vector<16x16x64xbf16> to vector<256x64xbf16>
    %c0_57 = arith.constant 0 : index
    %c2_58 = arith.constant 2 : index
    %c0_59 = arith.constant 0 : index
    %c0_60 = arith.constant 0 : index
    %41 = vector.load %arg4[%c0_57, %c2_58, %c0_59, %c0_60] : memref<3x3x64x64xbf16, #tpu.memory_space<vmem>>, vector<1x1x64x64xbf16>
    %42 = vector.shape_cast %41 : vector<1x1x64x64xbf16> to vector<64x64xbf16>
    %cst_61 = arith.constant dense<0.000000e+00> : vector<256x64xf32>
    %43 = tpu.matmul %40, %42, %cst_61 {dimension_numbers = #tpu.dot_dimension_numbers<[1], [0], [0], [1], [0, 0, 1, 1], [], []>} : vector<256x64xbf16>, vector<64x64xbf16>, vector<256x64xf32> -> vector<256x64xf32>
    %44 = arith.addf %38, %43 : vector<256x64xf32>
    %45 = vector.extract_strided_slice %25 {offsets = [1, 0, 0], sizes = [16, 16, 64], strides = [1, 1, 1]} : vector<18x16x64xbf16> to vector<16x16x64xbf16>
    %46 = vector.shape_cast %45 : vector<16x16x64xbf16> to vector<256x64xbf16>
    %c1_62 = arith.constant 1 : index
    %c0_63 = arith.constant 0 : index
    %c0_64 = arith.constant 0 : index
    %c0_65 = arith.constant 0 : index
    %47 = vector.load %arg4[%c1_62, %c0_63, %c0_64, %c0_65] : memref<3x3x64x64xbf16, #tpu.memory_space<vmem>>, vector<1x1x64x64xbf16>
    %48 = vector.shape_cast %47 : vector<1x1x64x64xbf16> to vector<64x64xbf16>
    %cst_66 = arith.constant dense<0.000000e+00> : vector<256x64xf32>
    %49 = tpu.matmul %46, %48, %cst_66 {dimension_numbers = #tpu.dot_dimension_numbers<[1], [0], [0], [1], [0, 0, 1, 1], [], []>} : vector<256x64xbf16>, vector<64x64xbf16>, vector<256x64xf32> -> vector<256x64xf32>
    %50 = arith.addf %44, %49 : vector<256x64xf32>
    %51 = vector.extract_strided_slice %26 {offsets = [1, 0, 0], sizes = [16, 16, 64], strides = [1, 1, 1]} : vector<18x16x64xbf16> to vector<16x16x64xbf16>
    %52 = vector.shape_cast %51 : vector<16x16x64xbf16> to vector<256x64xbf16>
    %c1_67 = arith.constant 1 : index
    %c1_68 = arith.constant 1 : index
    %c0_69 = arith.constant 0 : index
    %c0_70 = arith.constant 0 : index
    %53 = vector.load %arg4[%c1_67, %c1_68, %c0_69, %c0_70] : memref<3x3x64x64xbf16, #tpu.memory_space<vmem>>, vector<1x1x64x64xbf16>
    %54 = vector.shape_cast %53 : vector<1x1x64x64xbf16> to vector<64x64xbf16>
    %cst_71 = arith.constant dense<0.000000e+00> : vector<256x64xf32>
    %55 = tpu.matmul %52, %54, %cst_71 {dimension_numbers = #tpu.dot_dimension_numbers<[1], [0], [0], [1], [0, 0, 1, 1], [], []>} : vector<256x64xbf16>, vector<64x64xbf16>, vector<256x64xf32> -> vector<256x64xf32>
    %56 = arith.addf %50, %55 : vector<256x64xf32>
    %57 = vector.extract_strided_slice %27 {offsets = [1, 0, 0], sizes = [16, 16, 64], strides = [1, 1, 1]} : vector<18x16x64xbf16> to vector<16x16x64xbf16>
    %58 = vector.shape_cast %57 : vector<16x16x64xbf16> to vector<256x64xbf16>
    %c1_72 = arith.constant 1 : index
    %c2_73 = arith.constant 2 : index
    %c0_74 = arith.constant 0 : index
    %c0_75 = arith.constant 0 : index
    %59 = vector.load %arg4[%c1_72, %c2_73, %c0_74, %c0_75] : memref<3x3x64x64xbf16, #tpu.memory_space<vmem>>, vector<1x1x64x64xbf16>
    %60 = vector.shape_cast %59 : vector<1x1x64x64xbf16> to vector<64x64xbf16>
    %cst_76 = arith.constant dense<0.000000e+00> : vector<256x64xf32>
    %61 = tpu.matmul %58, %60, %cst_76 {dimension_numbers = #tpu.dot_dimension_numbers<[1], [0], [0], [1], [0, 0, 1, 1], [], []>} : vector<256x64xbf16>, vector<64x64xbf16>, vector<256x64xf32> -> vector<256x64xf32>
    %62 = arith.addf %56, %61 : vector<256x64xf32>
    %63 = vector.extract_strided_slice %25 {offsets = [2, 0, 0], sizes = [16, 16, 64], strides = [1, 1, 1]} : vector<18x16x64xbf16> to vector<16x16x64xbf16>
    %64 = vector.shape_cast %63 : vector<16x16x64xbf16> to vector<256x64xbf16>
    %c2_77 = arith.constant 2 : index
    %c0_78 = arith.constant 0 : index
    %c0_79 = arith.constant 0 : index
    %c0_80 = arith.constant 0 : index
    %65 = vector.load %arg4[%c2_77, %c0_78, %c0_79, %c0_80] : memref<3x3x64x64xbf16, #tpu.memory_space<vmem>>, vector<1x1x64x64xbf16>
    %66 = vector.shape_cast %65 : vector<1x1x64x64xbf16> to vector<64x64xbf16>
    %cst_81 = arith.constant dense<0.000000e+00> : vector<256x64xf32>
    %67 = tpu.matmul %64, %66, %cst_81 {dimension_numbers = #tpu.dot_dimension_numbers<[1], [0], [0], [1], [0, 0, 1, 1], [], []>} : vector<256x64xbf16>, vector<64x64xbf16>, vector<256x64xf32> -> vector<256x64xf32>
    %68 = arith.addf %62, %67 : vector<256x64xf32>
    %69 = vector.extract_strided_slice %26 {offsets = [2, 0, 0], sizes = [16, 16, 64], strides = [1, 1, 1]} : vector<18x16x64xbf16> to vector<16x16x64xbf16>
    %70 = vector.shape_cast %69 : vector<16x16x64xbf16> to vector<256x64xbf16>
    %c2_82 = arith.constant 2 : index
    %c1_83 = arith.constant 1 : index
    %c0_84 = arith.constant 0 : index
    %c0_85 = arith.constant 0 : index
    %71 = vector.load %arg4[%c2_82, %c1_83, %c0_84, %c0_85] : memref<3x3x64x64xbf16, #tpu.memory_space<vmem>>, vector<1x1x64x64xbf16>
    %72 = vector.shape_cast %71 : vector<1x1x64x64xbf16> to vector<64x64xbf16>
    %cst_86 = arith.constant dense<0.000000e+00> : vector<256x64xf32>
    %73 = tpu.matmul %70, %72, %cst_86 {dimension_numbers = #tpu.dot_dimension_numbers<[1], [0], [0], [1], [0, 0, 1, 1], [], []>} : vector<256x64xbf16>, vector<64x64xbf16>, vector<256x64xf32> -> vector<256x64xf32>
    %74 = arith.addf %68, %73 : vector<256x64xf32>
    %75 = vector.extract_strided_slice %27 {offsets = [2, 0, 0], sizes = [16, 16, 64], strides = [1, 1, 1]} : vector<18x16x64xbf16> to vector<16x16x64xbf16>
    %76 = vector.shape_cast %75 : vector<16x16x64xbf16> to vector<256x64xbf16>
    %c2_87 = arith.constant 2 : index
    %c2_88 = arith.constant 2 : index
    %c0_89 = arith.constant 0 : index
    %c0_90 = arith.constant 0 : index
    %77 = vector.load %arg4[%c2_87, %c2_88, %c0_89, %c0_90] : memref<3x3x64x64xbf16, #tpu.memory_space<vmem>>, vector<1x1x64x64xbf16>
    %78 = vector.shape_cast %77 : vector<1x1x64x64xbf16> to vector<64x64xbf16>
    %cst_91 = arith.constant dense<0.000000e+00> : vector<256x64xf32>
    %79 = tpu.matmul %76, %78, %cst_91 {dimension_numbers = #tpu.dot_dimension_numbers<[1], [0], [0], [1], [0, 0, 1, 1], [], []>} : vector<256x64xbf16>, vector<64x64xbf16>, vector<256x64xf32> -> vector<256x64xf32>
    %80 = arith.addf %74, %79 : vector<256x64xf32>
    %c0_92 = arith.constant 0 : index
    %c0_93 = arith.constant 0 : index
    %81 = vector.load %arg5[%c0_92, %c0_93] : memref<3x64xbf16, #tpu.memory_space<vmem>>, vector<3x64xbf16>
    %cst_94 = arith.constant dense<0.000000e+00> : vector<256x64xf32>
    %82 = tpu.matmul %14, %81, %cst_94 {dimension_numbers = #tpu.dot_dimension_numbers<[1], [0], [0], [1], [0, 0, 1, 1], [], []>} : vector<256x3xbf16>, vector<3x64xbf16>, vector<256x64xf32> -> vector<256x64xf32>
    %83 = arith.addf %80, %82 : vector<256x64xf32>
    %cst_95 = arith.constant 0.000000e+00 : f32
    %84 = vector.broadcast %cst_95 : f32 to vector<256x64xf32>
    %85 = arith.maximumf %83, %84 : vector<256x64xf32>
    %86 = arith.truncf %85 : vector<256x64xf32> to vector<256x64xbf16>
    %87 = vector.shape_cast %86 : vector<256x64xbf16> to vector<16x16x64xbf16>
    %c1_96 = arith.constant 1 : index
    %c1_97 = arith.constant 1 : index
    %c0_98 = arith.constant 0 : index
    %88 = vector.load %arg10[%c1_96, %c1_97, %c0_98] : memref<18x18x64xbf16, #tpu.memory_space<vmem>>, vector<16x16x64xbf16>
    tpu.vector_store %arg10[%c1_96, %c1_97, %c0_98], %87 {strides = array<i32>} : memref<18x18x64xbf16, #tpu.memory_space<vmem>>, vector<16x16x64xbf16>,
    %c0_99 = arith.constant 0 : index
    %c0_100 = arith.constant 0 : index
    %c0_101 = arith.constant 0 : index
    %89 = vector.load %arg10[%c0_99, %c0_100, %c0_101] : memref<18x18x64xbf16, #tpu.memory_space<vmem>>, vector<18x16x64xbf16>
    %c0_102 = arith.constant 0 : index
    %c1_103 = arith.constant 1 : index
    %c0_104 = arith.constant 0 : index
    %90 = vector.load %arg10[%c0_102, %c1_103, %c0_104] : memref<18x18x64xbf16, #tpu.memory_space<vmem>>, vector<18x16x64xbf16>
    %c0_105 = arith.constant 0 : index
    %c2_106 = arith.constant 2 : index
    %c0_107 = arith.constant 0 : index
    %91 = vector.load %arg10[%c0_105, %c2_106, %c0_107] : memref<18x18x64xbf16, #tpu.memory_space<vmem>>, vector<18x16x64xbf16>
    %92 = vector.extract_strided_slice %89 {offsets = [0, 0, 0], sizes = [16, 16, 64], strides = [1, 1, 1]} : vector<18x16x64xbf16> to vector<16x16x64xbf16>
    %93 = vector.shape_cast %92 : vector<16x16x64xbf16> to vector<256x64xbf16>
    %c0_108 = arith.constant 0 : index
    %c0_109 = arith.constant 0 : index
    %c0_110 = arith.constant 0 : index
    %c0_111 = arith.constant 0 : index
    %94 = vector.load %arg6[%c0_108, %c0_109, %c0_110, %c0_111] : memref<3x3x64x64xbf16, #tpu.memory_space<vmem>>, vector<1x1x64x64xbf16>
    %95 = vector.shape_cast %94 : vector<1x1x64x64xbf16> to vector<64x64xbf16>
    %cst_112 = arith.constant dense<0.000000e+00> : vector<256x64xf32>
    %96 = tpu.matmul %93, %95, %cst_112 {dimension_numbers = #tpu.dot_dimension_numbers<[1], [0], [0], [1], [0, 0, 1, 1], [], []>} : vector<256x64xbf16>, vector<64x64xbf16>, vector<256x64xf32> -> vector<256x64xf32>
    %97 = vector.extract_strided_slice %90 {offsets = [0, 0, 0], sizes = [16, 16, 64], strides = [1, 1, 1]} : vector<18x16x64xbf16> to vector<16x16x64xbf16>
    %98 = vector.shape_cast %97 : vector<16x16x64xbf16> to vector<256x64xbf16>
    %c0_113 = arith.constant 0 : index
    %c1_114 = arith.constant 1 : index
    %c0_115 = arith.constant 0 : index
    %c0_116 = arith.constant 0 : index
    %99 = vector.load %arg6[%c0_113, %c1_114, %c0_115, %c0_116] : memref<3x3x64x64xbf16, #tpu.memory_space<vmem>>, vector<1x1x64x64xbf16>
    %100 = vector.shape_cast %99 : vector<1x1x64x64xbf16> to vector<64x64xbf16>
    %cst_117 = arith.constant dense<0.000000e+00> : vector<256x64xf32>
    %101 = tpu.matmul %98, %100, %cst_117 {dimension_numbers = #tpu.dot_dimension_numbers<[1], [0], [0], [1], [0, 0, 1, 1], [], []>} : vector<256x64xbf16>, vector<64x64xbf16>, vector<256x64xf32> -> vector<256x64xf32>
    %102 = arith.addf %96, %101 : vector<256x64xf32>
    %103 = vector.extract_strided_slice %91 {offsets = [0, 0, 0], sizes = [16, 16, 64], strides = [1, 1, 1]} : vector<18x16x64xbf16> to vector<16x16x64xbf16>
    %104 = vector.shape_cast %103 : vector<16x16x64xbf16> to vector<256x64xbf16>
    %c0_118 = arith.constant 0 : index
    %c2_119 = arith.constant 2 : index
    %c0_120 = arith.constant 0 : index
    %c0_121 = arith.constant 0 : index
    %105 = vector.load %arg6[%c0_118, %c2_119, %c0_120, %c0_121] : memref<3x3x64x64xbf16, #tpu.memory_space<vmem>>, vector<1x1x64x64xbf16>
    %106 = vector.shape_cast %105 : vector<1x1x64x64xbf16> to vector<64x64xbf16>
    %cst_122 = arith.constant dense<0.000000e+00> : vector<256x64xf32>
    %107 = tpu.matmul %104, %106, %cst_122 {dimension_numbers = #tpu.dot_dimension_numbers<[1], [0], [0], [1], [0, 0, 1, 1], [], []>} : vector<256x64xbf16>, vector<64x64xbf16>, vector<256x64xf32> -> vector<256x64xf32>
    %108 = arith.addf %102, %107 : vector<256x64xf32>
    %109 = vector.extract_strided_slice %89 {offsets = [1, 0, 0], sizes = [16, 16, 64], strides = [1, 1, 1]} : vector<18x16x64xbf16> to vector<16x16x64xbf16>
    %110 = vector.shape_cast %109 : vector<16x16x64xbf16> to vector<256x64xbf16>
    %c1_123 = arith.constant 1 : index
    %c0_124 = arith.constant 0 : index
    %c0_125 = arith.constant 0 : index
    %c0_126 = arith.constant 0 : index
    %111 = vector.load %arg6[%c1_123, %c0_124, %c0_125, %c0_126] : memref<3x3x64x64xbf16, #tpu.memory_space<vmem>>, vector<1x1x64x64xbf16>
    %112 = vector.shape_cast %111 : vector<1x1x64x64xbf16> to vector<64x64xbf16>
    %cst_127 = arith.constant dense<0.000000e+00> : vector<256x64xf32>
    %113 = tpu.matmul %110, %112, %cst_127 {dimension_numbers = #tpu.dot_dimension_numbers<[1], [0], [0], [1], [0, 0, 1, 1], [], []>} : vector<256x64xbf16>, vector<64x64xbf16>, vector<256x64xf32> -> vector<256x64xf32>
    %114 = arith.addf %108, %113 : vector<256x64xf32>
    %115 = vector.extract_strided_slice %90 {offsets = [1, 0, 0], sizes = [16, 16, 64], strides = [1, 1, 1]} : vector<18x16x64xbf16> to vector<16x16x64xbf16>
    %116 = vector.shape_cast %115 : vector<16x16x64xbf16> to vector<256x64xbf16>
    %c1_128 = arith.constant 1 : index
    %c1_129 = arith.constant 1 : index
    %c0_130 = arith.constant 0 : index
    %c0_131 = arith.constant 0 : index
    %117 = vector.load %arg6[%c1_128, %c1_129, %c0_130, %c0_131] : memref<3x3x64x64xbf16, #tpu.memory_space<vmem>>, vector<1x1x64x64xbf16>
    %118 = vector.shape_cast %117 : vector<1x1x64x64xbf16> to vector<64x64xbf16>
    %cst_132 = arith.constant dense<0.000000e+00> : vector<256x64xf32>
    %119 = tpu.matmul %116, %118, %cst_132 {dimension_numbers = #tpu.dot_dimension_numbers<[1], [0], [0], [1], [0, 0, 1, 1], [], []>} : vector<256x64xbf16>, vector<64x64xbf16>, vector<256x64xf32> -> vector<256x64xf32>
    %120 = arith.addf %114, %119 : vector<256x64xf32>
    %121 = vector.extract_strided_slice %91 {offsets = [1, 0, 0], sizes = [16, 16, 64], strides = [1, 1, 1]} : vector<18x16x64xbf16> to vector<16x16x64xbf16>
    %122 = vector.shape_cast %121 : vector<16x16x64xbf16> to vector<256x64xbf16>
    %c1_133 = arith.constant 1 : index
    %c2_134 = arith.constant 2 : index
    %c0_135 = arith.constant 0 : index
    %c0_136 = arith.constant 0 : index
    %123 = vector.load %arg6[%c1_133, %c2_134, %c0_135, %c0_136] : memref<3x3x64x64xbf16, #tpu.memory_space<vmem>>, vector<1x1x64x64xbf16>
    %124 = vector.shape_cast %123 : vector<1x1x64x64xbf16> to vector<64x64xbf16>
    %cst_137 = arith.constant dense<0.000000e+00> : vector<256x64xf32>
    %125 = tpu.matmul %122, %124, %cst_137 {dimension_numbers = #tpu.dot_dimension_numbers<[1], [0], [0], [1], [0, 0, 1, 1], [], []>} : vector<256x64xbf16>, vector<64x64xbf16>, vector<256x64xf32> -> vector<256x64xf32>
    %126 = arith.addf %120, %125 : vector<256x64xf32>
    %127 = vector.extract_strided_slice %89 {offsets = [2, 0, 0], sizes = [16, 16, 64], strides = [1, 1, 1]} : vector<18x16x64xbf16> to vector<16x16x64xbf16>
    %128 = vector.shape_cast %127 : vector<16x16x64xbf16> to vector<256x64xbf16>
    %c2_138 = arith.constant 2 : index
    %c0_139 = arith.constant 0 : index
    %c0_140 = arith.constant 0 : index
    %c0_141 = arith.constant 0 : index
    %129 = vector.load %arg6[%c2_138, %c0_139, %c0_140, %c0_141] : memref<3x3x64x64xbf16, #tpu.memory_space<vmem>>, vector<1x1x64x64xbf16>
    %130 = vector.shape_cast %129 : vector<1x1x64x64xbf16> to vector<64x64xbf16>
    %cst_142 = arith.constant dense<0.000000e+00> : vector<256x64xf32>
    %131 = tpu.matmul %128, %130, %cst_142 {dimension_numbers = #tpu.dot_dimension_numbers<[1], [0], [0], [1], [0, 0, 1, 1], [], []>} : vector<256x64xbf16>, vector<64x64xbf16>, vector<256x64xf32> -> vector<256x64xf32>
    %132 = arith.addf %126, %131 : vector<256x64xf32>
    %133 = vector.extract_strided_slice %90 {offsets = [2, 0, 0], sizes = [16, 16, 64], strides = [1, 1, 1]} : vector<18x16x64xbf16> to vector<16x16x64xbf16>
    %134 = vector.shape_cast %133 : vector<16x16x64xbf16> to vector<256x64xbf16>
    %c2_143 = arith.constant 2 : index
    %c1_144 = arith.constant 1 : index
    %c0_145 = arith.constant 0 : index
    %c0_146 = arith.constant 0 : index
    %135 = vector.load %arg6[%c2_143, %c1_144, %c0_145, %c0_146] : memref<3x3x64x64xbf16, #tpu.memory_space<vmem>>, vector<1x1x64x64xbf16>
    %136 = vector.shape_cast %135 : vector<1x1x64x64xbf16> to vector<64x64xbf16>
    %cst_147 = arith.constant dense<0.000000e+00> : vector<256x64xf32>
    %137 = tpu.matmul %134, %136, %cst_147 {dimension_numbers = #tpu.dot_dimension_numbers<[1], [0], [0], [1], [0, 0, 1, 1], [], []>} : vector<256x64xbf16>, vector<64x64xbf16>, vector<256x64xf32> -> vector<256x64xf32>
    %138 = arith.addf %132, %137 : vector<256x64xf32>
    %139 = vector.extract_strided_slice %91 {offsets = [2, 0, 0], sizes = [16, 16, 64], strides = [1, 1, 1]} : vector<18x16x64xbf16> to vector<16x16x64xbf16>
    %140 = vector.shape_cast %139 : vector<16x16x64xbf16> to vector<256x64xbf16>
    %c2_148 = arith.constant 2 : index
    %c2_149 = arith.constant 2 : index
    %c0_150 = arith.constant 0 : index
    %c0_151 = arith.constant 0 : index
    %141 = vector.load %arg6[%c2_148, %c2_149, %c0_150, %c0_151] : memref<3x3x64x64xbf16, #tpu.memory_space<vmem>>, vector<1x1x64x64xbf16>
    %142 = vector.shape_cast %141 : vector<1x1x64x64xbf16> to vector<64x64xbf16>
    %cst_152 = arith.constant dense<0.000000e+00> : vector<256x64xf32>
    %143 = tpu.matmul %140, %142, %cst_152 {dimension_numbers = #tpu.dot_dimension_numbers<[1], [0], [0], [1], [0, 0, 1, 1], [], []>} : vector<256x64xbf16>, vector<64x64xbf16>, vector<256x64xf32> -> vector<256x64xf32>
    %144 = arith.addf %138, %143 : vector<256x64xf32>
    %cst_153 = arith.constant 0.000000e+00 : f32
    %145 = vector.broadcast %cst_153 : f32 to vector<256x64xf32>
    %146 = arith.maximumf %144, %145 : vector<256x64xf32>
    %147 = arith.truncf %146 : vector<256x64xf32> to vector<256x64xbf16>
    %148 = vector.shape_cast %147 : vector<256x64xbf16> to vector<16x16x64xbf16>
    %c1_154 = arith.constant 1 : index
    %c1_155 = arith.constant 1 : index
    %c0_156 = arith.constant 0 : index
    %149 = vector.load %arg9[%c1_154, %c1_155, %c0_156] : memref<18x18x64xbf16, #tpu.memory_space<vmem>>, vector<16x16x64xbf16>
    tpu.vector_store %arg9[%c1_154, %c1_155, %c0_156], %148 {strides = array<i32>} : memref<18x18x64xbf16, #tpu.memory_space<vmem>>, vector<16x16x64xbf16>,
    %c0_157 = arith.constant 0 : index
    %c0_158 = arith.constant 0 : index
    %c0_159 = arith.constant 0 : index
    %150 = vector.load %arg9[%c0_157, %c0_158, %c0_159] : memref<18x18x64xbf16, #tpu.memory_space<vmem>>, vector<18x16x64xbf16>
    %c0_160 = arith.constant 0 : index
    %c1_161 = arith.constant 1 : index
    %c0_162 = arith.constant 0 : index
    %151 = vector.load %arg9[%c0_160, %c1_161, %c0_162] : memref<18x18x64xbf16, #tpu.memory_space<vmem>>, vector<18x16x64xbf16>
    %c0_163 = arith.constant 0 : index
    %c2_164 = arith.constant 2 : index
    %c0_165 = arith.constant 0 : index
    %152 = vector.load %arg9[%c0_163, %c2_164, %c0_165] : memref<18x18x64xbf16, #tpu.memory_space<vmem>>, vector<18x16x64xbf16>
    %153 = vector.extract_strided_slice %150 {offsets = [0, 0, 0], sizes = [16, 16, 64], strides = [1, 1, 1]} : vector<18x16x64xbf16> to vector<16x16x64xbf16>
    %154 = vector.shape_cast %153 : vector<16x16x64xbf16> to vector<256x64xbf16>
    %c0_166 = arith.constant 0 : index
    %c0_167 = arith.constant 0 : index
    %c0_168 = arith.constant 0 : index
    %c0_169 = arith.constant 0 : index
    %155 = vector.load %arg7[%c0_166, %c0_167, %c0_168, %c0_169] : memref<3x3x64x64xbf16, #tpu.memory_space<vmem>>, vector<1x1x64x64xbf16>
    %156 = vector.shape_cast %155 : vector<1x1x64x64xbf16> to vector<64x64xbf16>
    %cst_170 = arith.constant dense<0.000000e+00> : vector<256x64xf32>
    %157 = tpu.matmul %154, %156, %cst_170 {dimension_numbers = #tpu.dot_dimension_numbers<[1], [0], [0], [1], [0, 0, 1, 1], [], []>} : vector<256x64xbf16>, vector<64x64xbf16>, vector<256x64xf32> -> vector<256x64xf32>
    %158 = vector.extract_strided_slice %151 {offsets = [0, 0, 0], sizes = [16, 16, 64], strides = [1, 1, 1]} : vector<18x16x64xbf16> to vector<16x16x64xbf16>
    %159 = vector.shape_cast %158 : vector<16x16x64xbf16> to vector<256x64xbf16>
    %c0_171 = arith.constant 0 : index
    %c1_172 = arith.constant 1 : index
    %c0_173 = arith.constant 0 : index
    %c0_174 = arith.constant 0 : index
    %160 = vector.load %arg7[%c0_171, %c1_172, %c0_173, %c0_174] : memref<3x3x64x64xbf16, #tpu.memory_space<vmem>>, vector<1x1x64x64xbf16>
    %161 = vector.shape_cast %160 : vector<1x1x64x64xbf16> to vector<64x64xbf16>
    %cst_175 = arith.constant dense<0.000000e+00> : vector<256x64xf32>
    %162 = tpu.matmul %159, %161, %cst_175 {dimension_numbers = #tpu.dot_dimension_numbers<[1], [0], [0], [1], [0, 0, 1, 1], [], []>} : vector<256x64xbf16>, vector<64x64xbf16>, vector<256x64xf32> -> vector<256x64xf32>
    %163 = arith.addf %157, %162 : vector<256x64xf32>
    %164 = vector.extract_strided_slice %152 {offsets = [0, 0, 0], sizes = [16, 16, 64], strides = [1, 1, 1]} : vector<18x16x64xbf16> to vector<16x16x64xbf16>
    %165 = vector.shape_cast %164 : vector<16x16x64xbf16> to vector<256x64xbf16>
    %c0_176 = arith.constant 0 : index
    %c2_177 = arith.constant 2 : index
    %c0_178 = arith.constant 0 : index
    %c0_179 = arith.constant 0 : index
    %166 = vector.load %arg7[%c0_176, %c2_177, %c0_178, %c0_179] : memref<3x3x64x64xbf16, #tpu.memory_space<vmem>>, vector<1x1x64x64xbf16>
    %167 = vector.shape_cast %166 : vector<1x1x64x64xbf16> to vector<64x64xbf16>
    %cst_180 = arith.constant dense<0.000000e+00> : vector<256x64xf32>
    %168 = tpu.matmul %165, %167, %cst_180 {dimension_numbers = #tpu.dot_dimension_numbers<[1], [0], [0], [1], [0, 0, 1, 1], [], []>} : vector<256x64xbf16>, vector<64x64xbf16>, vector<256x64xf32> -> vector<256x64xf32>
    %169 = arith.addf %163, %168 : vector<256x64xf32>
    %170 = vector.extract_strided_slice %150 {offsets = [1, 0, 0], sizes = [16, 16, 64], strides = [1, 1, 1]} : vector<18x16x64xbf16> to vector<16x16x64xbf16>
    %171 = vector.shape_cast %170 : vector<16x16x64xbf16> to vector<256x64xbf16>
    %c1_181 = arith.constant 1 : index
    %c0_182 = arith.constant 0 : index
    %c0_183 = arith.constant 0 : index
    %c0_184 = arith.constant 0 : index
    %172 = vector.load %arg7[%c1_181, %c0_182, %c0_183, %c0_184] : memref<3x3x64x64xbf16, #tpu.memory_space<vmem>>, vector<1x1x64x64xbf16>
    %173 = vector.shape_cast %172 : vector<1x1x64x64xbf16> to vector<64x64xbf16>
    %cst_185 = arith.constant dense<0.000000e+00> : vector<256x64xf32>
    %174 = tpu.matmul %171, %173, %cst_185 {dimension_numbers = #tpu.dot_dimension_numbers<[1], [0], [0], [1], [0, 0, 1, 1], [], []>} : vector<256x64xbf16>, vector<64x64xbf16>, vector<256x64xf32> -> vector<256x64xf32>
    %175 = arith.addf %169, %174 : vector<256x64xf32>
    %176 = vector.extract_strided_slice %151 {offsets = [1, 0, 0], sizes = [16, 16, 64], strides = [1, 1, 1]} : vector<18x16x64xbf16> to vector<16x16x64xbf16>
    %177 = vector.shape_cast %176 : vector<16x16x64xbf16> to vector<256x64xbf16>
    %c1_186 = arith.constant 1 : index
    %c1_187 = arith.constant 1 : index
    %c0_188 = arith.constant 0 : index
    %c0_189 = arith.constant 0 : index
    %178 = vector.load %arg7[%c1_186, %c1_187, %c0_188, %c0_189] : memref<3x3x64x64xbf16, #tpu.memory_space<vmem>>, vector<1x1x64x64xbf16>
    %179 = vector.shape_cast %178 : vector<1x1x64x64xbf16> to vector<64x64xbf16>
    %cst_190 = arith.constant dense<0.000000e+00> : vector<256x64xf32>
    %180 = tpu.matmul %177, %179, %cst_190 {dimension_numbers = #tpu.dot_dimension_numbers<[1], [0], [0], [1], [0, 0, 1, 1], [], []>} : vector<256x64xbf16>, vector<64x64xbf16>, vector<256x64xf32> -> vector<256x64xf32>
    %181 = arith.addf %175, %180 : vector<256x64xf32>
    %182 = vector.extract_strided_slice %152 {offsets = [1, 0, 0], sizes = [16, 16, 64], strides = [1, 1, 1]} : vector<18x16x64xbf16> to vector<16x16x64xbf16>
    %183 = vector.shape_cast %182 : vector<16x16x64xbf16> to vector<256x64xbf16>
    %c1_191 = arith.constant 1 : index
    %c2_192 = arith.constant 2 : index
    %c0_193 = arith.constant 0 : index
    %c0_194 = arith.constant 0 : index
    %184 = vector.load %arg7[%c1_191, %c2_192, %c0_193, %c0_194] : memref<3x3x64x64xbf16, #tpu.memory_space<vmem>>, vector<1x1x64x64xbf16>
    %185 = vector.shape_cast %184 : vector<1x1x64x64xbf16> to vector<64x64xbf16>
    %cst_195 = arith.constant dense<0.000000e+00> : vector<256x64xf32>
    %186 = tpu.matmul %183, %185, %cst_195 {dimension_numbers = #tpu.dot_dimension_numbers<[1], [0], [0], [1], [0, 0, 1, 1], [], []>} : vector<256x64xbf16>, vector<64x64xbf16>, vector<256x64xf32> -> vector<256x64xf32>
    %187 = arith.addf %181, %186 : vector<256x64xf32>
    %188 = vector.extract_strided_slice %150 {offsets = [2, 0, 0], sizes = [16, 16, 64], strides = [1, 1, 1]} : vector<18x16x64xbf16> to vector<16x16x64xbf16>
    %189 = vector.shape_cast %188 : vector<16x16x64xbf16> to vector<256x64xbf16>
    %c2_196 = arith.constant 2 : index
    %c0_197 = arith.constant 0 : index
    %c0_198 = arith.constant 0 : index
    %c0_199 = arith.constant 0 : index
    %190 = vector.load %arg7[%c2_196, %c0_197, %c0_198, %c0_199] : memref<3x3x64x64xbf16, #tpu.memory_space<vmem>>, vector<1x1x64x64xbf16>
    %191 = vector.shape_cast %190 : vector<1x1x64x64xbf16> to vector<64x64xbf16>
    %cst_200 = arith.constant dense<0.000000e+00> : vector<256x64xf32>
    %192 = tpu.matmul %189, %191, %cst_200 {dimension_numbers = #tpu.dot_dimension_numbers<[1], [0], [0], [1], [0, 0, 1, 1], [], []>} : vector<256x64xbf16>, vector<64x64xbf16>, vector<256x64xf32> -> vector<256x64xf32>
    %193 = arith.addf %187, %192 : vector<256x64xf32>
    %194 = vector.extract_strided_slice %151 {offsets = [2, 0, 0], sizes = [16, 16, 64], strides = [1, 1, 1]} : vector<18x16x64xbf16> to vector<16x16x64xbf16>
    %195 = vector.shape_cast %194 : vector<16x16x64xbf16> to vector<256x64xbf16>
    %c2_201 = arith.constant 2 : index
    %c1_202 = arith.constant 1 : index
    %c0_203 = arith.constant 0 : index
    %c0_204 = arith.constant 0 : index
    %196 = vector.load %arg7[%c2_201, %c1_202, %c0_203, %c0_204] : memref<3x3x64x64xbf16, #tpu.memory_space<vmem>>, vector<1x1x64x64xbf16>
    %197 = vector.shape_cast %196 : vector<1x1x64x64xbf16> to vector<64x64xbf16>
    %cst_205 = arith.constant dense<0.000000e+00> : vector<256x64xf32>
    %198 = tpu.matmul %195, %197, %cst_205 {dimension_numbers = #tpu.dot_dimension_numbers<[1], [0], [0], [1], [0, 0, 1, 1], [], []>} : vector<256x64xbf16>, vector<64x64xbf16>, vector<256x64xf32> -> vector<256x64xf32>
    %199 = arith.addf %193, %198 : vector<256x64xf32>
    %200 = vector.extract_strided_slice %152 {offsets = [2, 0, 0], sizes = [16, 16, 64], strides = [1, 1, 1]} : vector<18x16x64xbf16> to vector<16x16x64xbf16>
    %201 = vector.shape_cast %200 : vector<16x16x64xbf16> to vector<256x64xbf16>
    %c2_206 = arith.constant 2 : index
    %c2_207 = arith.constant 2 : index
    %c0_208 = arith.constant 0 : index
    %c0_209 = arith.constant 0 : index
    %202 = vector.load %arg7[%c2_206, %c2_207, %c0_208, %c0_209] : memref<3x3x64x64xbf16, #tpu.memory_space<vmem>>, vector<1x1x64x64xbf16>
    %203 = vector.shape_cast %202 : vector<1x1x64x64xbf16> to vector<64x64xbf16>
    %cst_210 = arith.constant dense<0.000000e+00> : vector<256x64xf32>
    %204 = tpu.matmul %201, %203, %cst_210 {dimension_numbers = #tpu.dot_dimension_numbers<[1], [0], [0], [1], [0, 0, 1, 1], [], []>} : vector<256x64xbf16>, vector<64x64xbf16>, vector<256x64xf32> -> vector<256x64xf32>
    %205 = arith.addf %199, %204 : vector<256x64xf32>
    %206 = arith.extf %86 : vector<256x64xbf16> to vector<256x64xf32>
    %207 = arith.addf %205, %206 : vector<256x64xf32>
    %cst_211 = arith.constant 0.000000e+00 : f32
    %208 = vector.broadcast %cst_211 : f32 to vector<256x64xf32>
    %209 = arith.maximumf %207, %208 : vector<256x64xf32>
    %210 = vector.shape_cast %209 : vector<256x64xf32> to vector<8x32x64xf32>
    %211 = vector.extract_strided_slice %210 {offsets = [0, 0, 0], sizes = [8, 16, 64], strides = [1, 1, 1]} : vector<8x32x64xf32> to vector<8x16x64xf32>
    %212 = vector.extract_strided_slice %210 {offsets = [0, 16, 0], sizes = [8, 16, 64], strides = [1, 1, 1]} : vector<8x32x64xf32> to vector<8x16x64xf32>
    %213 = arith.maximumf %211, %212 : vector<8x16x64xf32>
    %214 = vector.shape_cast %213 : vector<8x16x64xf32> to vector<8x8x2x64xf32>
    %215 = vector.extract_strided_slice %214 {offsets = [0, 0, 0, 0], sizes = [8, 8, 1, 64], strides = [1, 1, 1, 1]} : vector<8x8x2x64xf32> to vector<8x8x1x64xf32>
    %216 = vector.shape_cast %215 : vector<8x8x1x64xf32> to vector<8x8x64xf32>
    %217 = vector.extract_strided_slice %214 {offsets = [0, 0, 1, 0], sizes = [8, 8, 1, 64], strides = [1, 1, 1, 1]} : vector<8x8x2x64xf32> to vector<8x8x1x64xf32>
    %218 = vector.shape_cast %217 : vector<8x8x1x64xf32> to vector<8x8x64xf32>
    %219 = arith.maximumf %216, %218 : vector<8x8x64xf32>
    %220 = vector.shape_cast %219 : vector<8x8x64xf32> to vector<1x8x8x64xf32>
    %221 = arith.truncf %220 : vector<1x8x8x64xf32> to vector<1x8x8x64xbf16>
    %c0_212 = arith.constant 0 : index
    %c0_213 = arith.constant 0 : index
    %c0_214 = arith.constant 0 : index
    %c0_215 = arith.constant 0 : index
    %222 = vector.load %arg8[%c0_212, %c0_213, %c0_214, %c0_215] : memref<1x8x8x64xbf16, #tpu.memory_space<vmem>>, vector<1x8x8x64xbf16>
    tpu.vector_store %arg8[%c0_212, %c0_213, %c0_214, %c0_215], %221 {strides = array<i32>} : memref<1x8x8x64xbf16, #tpu.memory_space<vmem>>, vector<1x8x8x64xbf16>,
    return
  }
  func.func @transform_0(%arg0: i32) -> (i32, i32, i32, i32) {
    %c0_i32 = arith.constant 0 : i32
    %c0_i32_0 = arith.constant 0 : i32
    %c0_i32_1 = arith.constant 0 : i32
    %c0_i32_2 = arith.constant 0 : i32
    return %arg0, %c0_i32, %c0_i32_0, %c0_i32_1 : i32, i32, i32, i32
  }
  func.func @transform_1(%arg0: i32) -> (i32, i32, i32, i32) {
    %c0_i32 = arith.constant 0 : i32
    %c0_i32_0 = arith.constant 0 : i32
    %c0_i32_1 = arith.constant 0 : i32
    %c0_i32_2 = arith.constant 0 : i32
    return %arg0, %c0_i32, %c0_i32_0, %c0_i32_1 : i32, i32, i32, i32
  }
  func.func @transform_2(%arg0: i32) -> (i32, i32) {
    %c0_i32 = arith.constant 0 : i32
    %c0_i32_0 = arith.constant 0 : i32
    %c0_i32_1 = arith.constant 0 : i32
    return %c0_i32, %c0_i32_0 : i32, i32
  }
  func.func @transform_3(%arg0: i32) -> (i32, i32, i32, i32) {
    %c0_i32 = arith.constant 0 : i32
    %c0_i32_0 = arith.constant 0 : i32
    %c0_i32_1 = arith.constant 0 : i32
    %c0_i32_2 = arith.constant 0 : i32
    %c0_i32_3 = arith.constant 0 : i32
    return %c0_i32, %c0_i32_0, %c0_i32_1, %c0_i32_2 : i32, i32, i32, i32
  }
  func.func @transform_4(%arg0: i32) -> (i32, i32) {
    %c0_i32 = arith.constant 0 : i32
    %c0_i32_0 = arith.constant 0 : i32
    %c0_i32_1 = arith.constant 0 : i32
    return %c0_i32, %c0_i32_0 : i32, i32
  }
  func.func @transform_5(%arg0: i32) -> (i32, i32, i32, i32) {
    %c0_i32 = arith.constant 0 : i32
    %c0_i32_0 = arith.constant 0 : i32
    %c0_i32_1 = arith.constant 0 : i32
    %c0_i32_2 = arith.constant 0 : i32
    %c0_i32_3 = arith.constant 0 : i32
    return %c0_i32, %c0_i32_0, %c0_i32_1, %c0_i32_2 : i32, i32, i32, i32
  }
  func.func @transform_6(%arg0: i32) -> (i32, i32, i32, i32) {
    %c0_i32 = arith.constant 0 : i32
    %c0_i32_0 = arith.constant 0 : i32
    %c0_i32_1 = arith.constant 0 : i32
    %c0_i32_2 = arith.constant 0 : i32
    %c0_i32_3 = arith.constant 0 : i32
    return %c0_i32, %c0_i32_0, %c0_i32_1, %c0_i32_2 : i32, i32, i32, i32
  }
  func.func @transform_7(%arg0: i32) -> (i32, i32, i32, i32) {
    %c0_i32 = arith.constant 0 : i32
    %c0_i32_0 = arith.constant 0 : i32
    %c0_i32_1 = arith.constant 0 : i32
    %c0_i32_2 = arith.constant 0 : i32
    return %arg0, %c0_i32, %c0_i32_0, %c0_i32_1 : i32, i32, i32, i32
  }
}

module attributes {stable_mosaic.version = 11 : i64} {
  func.func @kernel(%arg0: i32, %arg1: memref<1x8x8x64xbf16, #tpu.memory_space<vmem>>, %arg2: memref<3x3x64x128xbf16, #tpu.memory_space<vmem>>, %arg3: memref<3x3x128x128xbf16, #tpu.memory_space<vmem>>, %arg4: memref<64x128xbf16, #tpu.memory_space<vmem>>, %arg5: memref<3x3x128x128xbf16, #tpu.memory_space<vmem>>, %arg6: memref<3x3x128x128xbf16, #tpu.memory_space<vmem>>, %arg7: memref<1x4x4x128xbf16, #tpu.memory_space<vmem>>, %arg8: memref<10x10x64xbf16, #tpu.memory_space<vmem>>, %arg9: memref<10x10x128xbf16, #tpu.memory_space<vmem>>, %arg10: memref<10x10x128xbf16, #tpu.memory_space<vmem>>) attributes {dimension_semantics = [#tpu.dimension_semantics<parallel>], iteration_bounds = array<i64: 2>, scalar_prefetch = 0 : i64, scratch_operands = 3 : i64, tpu.core_type = #tpu.core_type<tc>, window_params = [{transform_indices = @transform_0, window_bounds = array<i64: 1, 8, 8, 64>}, {pipeline_mode = #tpu.pipeline_mode<synchronous>, transform_indices = @transform_1, window_bounds = array<i64: 3, 3, 64, 128>}, {pipeline_mode = #tpu.pipeline_mode<synchronous>, transform_indices = @transform_2, window_bounds = array<i64: 3, 3, 128, 128>}, {pipeline_mode = #tpu.pipeline_mode<synchronous>, transform_indices = @transform_3, window_bounds = array<i64: 64, 128>}, {pipeline_mode = #tpu.pipeline_mode<synchronous>, transform_indices = @transform_4, window_bounds = array<i64: 3, 3, 128, 128>}, {pipeline_mode = #tpu.pipeline_mode<synchronous>, transform_indices = @transform_5, window_bounds = array<i64: 3, 3, 128, 128>}, {transform_indices = @transform_6, window_bounds = array<i64: 1, 4, 4, 128>}]} {
    %cst = arith.constant 0.000000e+00 : bf16
    %0 = vector.broadcast %cst : bf16 to vector<1x10x64xbf16>
    %c0 = arith.constant 0 : index
    %c0_0 = arith.constant 0 : index
    %c0_1 = arith.constant 0 : index
    %1 = vector.load %arg8[%c0, %c0_0, %c0_1] : memref<10x10x64xbf16, #tpu.memory_space<vmem>>, vector<1x10x64xbf16>
    tpu.vector_store %arg8[%c0, %c0_0, %c0_1], %0 {strides = array<i32>} : memref<10x10x64xbf16, #tpu.memory_space<vmem>>, vector<1x10x64xbf16>,
    %c9 = arith.constant 9 : index
    %c0_2 = arith.constant 0 : index
    %c0_3 = arith.constant 0 : index
    %2 = vector.load %arg8[%c9, %c0_2, %c0_3] : memref<10x10x64xbf16, #tpu.memory_space<vmem>>, vector<1x10x64xbf16>
    tpu.vector_store %arg8[%c9, %c0_2, %c0_3], %0 {strides = array<i32>} : memref<10x10x64xbf16, #tpu.memory_space<vmem>>, vector<1x10x64xbf16>,
    %cst_4 = arith.constant 0.000000e+00 : bf16
    %3 = vector.broadcast %cst_4 : bf16 to vector<8x1x64xbf16>
    %c1 = arith.constant 1 : index
    %c0_5 = arith.constant 0 : index
    %c0_6 = arith.constant 0 : index
    %4 = vector.load %arg8[%c1, %c0_5, %c0_6] : memref<10x10x64xbf16, #tpu.memory_space<vmem>>, vector<8x1x64xbf16>
    tpu.vector_store %arg8[%c1, %c0_5, %c0_6], %3 {strides = array<i32>} : memref<10x10x64xbf16, #tpu.memory_space<vmem>>, vector<8x1x64xbf16>,
    %c1_7 = arith.constant 1 : index
    %c9_8 = arith.constant 9 : index
    %c0_9 = arith.constant 0 : index
    %5 = vector.load %arg8[%c1_7, %c9_8, %c0_9] : memref<10x10x64xbf16, #tpu.memory_space<vmem>>, vector<8x1x64xbf16>
    tpu.vector_store %arg8[%c1_7, %c9_8, %c0_9], %3 {strides = array<i32>} : memref<10x10x64xbf16, #tpu.memory_space<vmem>>, vector<8x1x64xbf16>,
    %cst_10 = arith.constant 0.000000e+00 : bf16
    %6 = vector.broadcast %cst_10 : bf16 to vector<1x10x128xbf16>
    %c0_11 = arith.constant 0 : index
    %c0_12 = arith.constant 0 : index
    %c0_13 = arith.constant 0 : index
    %7 = vector.load %arg9[%c0_11, %c0_12, %c0_13] : memref<10x10x128xbf16, #tpu.memory_space<vmem>>, vector<1x10x128xbf16>
    tpu.vector_store %arg9[%c0_11, %c0_12, %c0_13], %6 {strides = array<i32>} : memref<10x10x128xbf16, #tpu.memory_space<vmem>>, vector<1x10x128xbf16>,
    %c9_14 = arith.constant 9 : index
    %c0_15 = arith.constant 0 : index
    %c0_16 = arith.constant 0 : index
    %8 = vector.load %arg9[%c9_14, %c0_15, %c0_16] : memref<10x10x128xbf16, #tpu.memory_space<vmem>>, vector<1x10x128xbf16>
    tpu.vector_store %arg9[%c9_14, %c0_15, %c0_16], %6 {strides = array<i32>} : memref<10x10x128xbf16, #tpu.memory_space<vmem>>, vector<1x10x128xbf16>,
    %cst_17 = arith.constant 0.000000e+00 : bf16
    %9 = vector.broadcast %cst_17 : bf16 to vector<8x1x128xbf16>
    %c1_18 = arith.constant 1 : index
    %c0_19 = arith.constant 0 : index
    %c0_20 = arith.constant 0 : index
    %10 = vector.load %arg9[%c1_18, %c0_19, %c0_20] : memref<10x10x128xbf16, #tpu.memory_space<vmem>>, vector<8x1x128xbf16>
    tpu.vector_store %arg9[%c1_18, %c0_19, %c0_20], %9 {strides = array<i32>} : memref<10x10x128xbf16, #tpu.memory_space<vmem>>, vector<8x1x128xbf16>,
    %c1_21 = arith.constant 1 : index
    %c9_22 = arith.constant 9 : index
    %c0_23 = arith.constant 0 : index
    %11 = vector.load %arg9[%c1_21, %c9_22, %c0_23] : memref<10x10x128xbf16, #tpu.memory_space<vmem>>, vector<8x1x128xbf16>
    tpu.vector_store %arg9[%c1_21, %c9_22, %c0_23], %9 {strides = array<i32>} : memref<10x10x128xbf16, #tpu.memory_space<vmem>>, vector<8x1x128xbf16>,
    %cst_24 = arith.constant 0.000000e+00 : bf16
    %12 = vector.broadcast %cst_24 : bf16 to vector<1x10x128xbf16>
    %c0_25 = arith.constant 0 : index
    %c0_26 = arith.constant 0 : index
    %c0_27 = arith.constant 0 : index
    %13 = vector.load %arg10[%c0_25, %c0_26, %c0_27] : memref<10x10x128xbf16, #tpu.memory_space<vmem>>, vector<1x10x128xbf16>
    tpu.vector_store %arg10[%c0_25, %c0_26, %c0_27], %12 {strides = array<i32>} : memref<10x10x128xbf16, #tpu.memory_space<vmem>>, vector<1x10x128xbf16>,
    %c9_28 = arith.constant 9 : index
    %c0_29 = arith.constant 0 : index
    %c0_30 = arith.constant 0 : index
    %14 = vector.load %arg10[%c9_28, %c0_29, %c0_30] : memref<10x10x128xbf16, #tpu.memory_space<vmem>>, vector<1x10x128xbf16>
    tpu.vector_store %arg10[%c9_28, %c0_29, %c0_30], %12 {strides = array<i32>} : memref<10x10x128xbf16, #tpu.memory_space<vmem>>, vector<1x10x128xbf16>,
    %cst_31 = arith.constant 0.000000e+00 : bf16
    %15 = vector.broadcast %cst_31 : bf16 to vector<8x1x128xbf16>
    %c1_32 = arith.constant 1 : index
    %c0_33 = arith.constant 0 : index
    %c0_34 = arith.constant 0 : index
    %16 = vector.load %arg10[%c1_32, %c0_33, %c0_34] : memref<10x10x128xbf16, #tpu.memory_space<vmem>>, vector<8x1x128xbf16>
    tpu.vector_store %arg10[%c1_32, %c0_33, %c0_34], %15 {strides = array<i32>} : memref<10x10x128xbf16, #tpu.memory_space<vmem>>, vector<8x1x128xbf16>,
    %c1_35 = arith.constant 1 : index
    %c9_36 = arith.constant 9 : index
    %c0_37 = arith.constant 0 : index
    %17 = vector.load %arg10[%c1_35, %c9_36, %c0_37] : memref<10x10x128xbf16, #tpu.memory_space<vmem>>, vector<8x1x128xbf16>
    tpu.vector_store %arg10[%c1_35, %c9_36, %c0_37], %15 {strides = array<i32>} : memref<10x10x128xbf16, #tpu.memory_space<vmem>>, vector<8x1x128xbf16>,
    %c0_38 = arith.constant 0 : index
    %c0_39 = arith.constant 0 : index
    %c0_40 = arith.constant 0 : index
    %c0_41 = arith.constant 0 : index
    %18 = vector.load %arg1[%c0_38, %c0_39, %c0_40, %c0_41] : memref<1x8x8x64xbf16, #tpu.memory_space<vmem>>, vector<1x8x8x64xbf16>
    %19 = vector.shape_cast %18 : vector<1x8x8x64xbf16> to vector<8x8x64xbf16>
    %20 = vector.shape_cast %19 : vector<8x8x64xbf16> to vector<64x64xbf16>
    %c0_42 = arith.constant 0 : index
    %c0_43 = arith.constant 0 : index
    %c0_44 = arith.constant 0 : index
    %c0_45 = arith.constant 0 : index
    %21 = vector.load %arg1[%c0_42, %c0_43, %c0_44, %c0_45] : memref<1x8x8x64xbf16, #tpu.memory_space<vmem>>, vector<1x8x8x64xbf16>
    %22 = vector.shape_cast %21 : vector<1x8x8x64xbf16> to vector<8x8x64xbf16>
    %c1_46 = arith.constant 1 : index
    %c1_47 = arith.constant 1 : index
    %c0_48 = arith.constant 0 : index
    %23 = vector.load %arg8[%c1_46, %c1_47, %c0_48] : memref<10x10x64xbf16, #tpu.memory_space<vmem>>, vector<8x8x64xbf16>
    tpu.vector_store %arg8[%c1_46, %c1_47, %c0_48], %22 {strides = array<i32>} : memref<10x10x64xbf16, #tpu.memory_space<vmem>>, vector<8x8x64xbf16>,
    %c0_49 = arith.constant 0 : index
    %c0_50 = arith.constant 0 : index
    %c0_51 = arith.constant 0 : index
    %24 = vector.load %arg8[%c0_49, %c0_50, %c0_51] : memref<10x10x64xbf16, #tpu.memory_space<vmem>>, vector<10x8x64xbf16>
    %c0_52 = arith.constant 0 : index
    %c1_53 = arith.constant 1 : index
    %c0_54 = arith.constant 0 : index
    %25 = vector.load %arg8[%c0_52, %c1_53, %c0_54] : memref<10x10x64xbf16, #tpu.memory_space<vmem>>, vector<10x8x64xbf16>
    %c0_55 = arith.constant 0 : index
    %c2 = arith.constant 2 : index
    %c0_56 = arith.constant 0 : index
    %26 = vector.load %arg8[%c0_55, %c2, %c0_56] : memref<10x10x64xbf16, #tpu.memory_space<vmem>>, vector<10x8x64xbf16>
    %27 = vector.extract_strided_slice %24 {offsets = [0, 0, 0], sizes = [8, 8, 64], strides = [1, 1, 1]} : vector<10x8x64xbf16> to vector<8x8x64xbf16>
    %28 = vector.shape_cast %27 : vector<8x8x64xbf16> to vector<64x64xbf16>
    %c0_57 = arith.constant 0 : index
    %c0_58 = arith.constant 0 : index
    %c0_59 = arith.constant 0 : index
    %c0_60 = arith.constant 0 : index
    %29 = vector.load %arg2[%c0_57, %c0_58, %c0_59, %c0_60] : memref<3x3x64x128xbf16, #tpu.memory_space<vmem>>, vector<1x1x64x128xbf16>
    %30 = vector.shape_cast %29 : vector<1x1x64x128xbf16> to vector<64x128xbf16>
    %cst_61 = arith.constant dense<0.000000e+00> : vector<64x128xf32>
    %31 = tpu.matmul %28, %30, %cst_61 {dimension_numbers = #tpu.dot_dimension_numbers<[1], [0], [0], [1], [0, 0, 1, 1], [], []>} : vector<64x64xbf16>, vector<64x128xbf16>, vector<64x128xf32> -> vector<64x128xf32>
    %32 = vector.extract_strided_slice %25 {offsets = [0, 0, 0], sizes = [8, 8, 64], strides = [1, 1, 1]} : vector<10x8x64xbf16> to vector<8x8x64xbf16>
    %33 = vector.shape_cast %32 : vector<8x8x64xbf16> to vector<64x64xbf16>
    %c0_62 = arith.constant 0 : index
    %c1_63 = arith.constant 1 : index
    %c0_64 = arith.constant 0 : index
    %c0_65 = arith.constant 0 : index
    %34 = vector.load %arg2[%c0_62, %c1_63, %c0_64, %c0_65] : memref<3x3x64x128xbf16, #tpu.memory_space<vmem>>, vector<1x1x64x128xbf16>
    %35 = vector.shape_cast %34 : vector<1x1x64x128xbf16> to vector<64x128xbf16>
    %cst_66 = arith.constant dense<0.000000e+00> : vector<64x128xf32>
    %36 = tpu.matmul %33, %35, %cst_66 {dimension_numbers = #tpu.dot_dimension_numbers<[1], [0], [0], [1], [0, 0, 1, 1], [], []>} : vector<64x64xbf16>, vector<64x128xbf16>, vector<64x128xf32> -> vector<64x128xf32>
    %37 = arith.addf %31, %36 : vector<64x128xf32>
    %38 = vector.extract_strided_slice %26 {offsets = [0, 0, 0], sizes = [8, 8, 64], strides = [1, 1, 1]} : vector<10x8x64xbf16> to vector<8x8x64xbf16>
    %39 = vector.shape_cast %38 : vector<8x8x64xbf16> to vector<64x64xbf16>
    %c0_67 = arith.constant 0 : index
    %c2_68 = arith.constant 2 : index
    %c0_69 = arith.constant 0 : index
    %c0_70 = arith.constant 0 : index
    %40 = vector.load %arg2[%c0_67, %c2_68, %c0_69, %c0_70] : memref<3x3x64x128xbf16, #tpu.memory_space<vmem>>, vector<1x1x64x128xbf16>
    %41 = vector.shape_cast %40 : vector<1x1x64x128xbf16> to vector<64x128xbf16>
    %cst_71 = arith.constant dense<0.000000e+00> : vector<64x128xf32>
    %42 = tpu.matmul %39, %41, %cst_71 {dimension_numbers = #tpu.dot_dimension_numbers<[1], [0], [0], [1], [0, 0, 1, 1], [], []>} : vector<64x64xbf16>, vector<64x128xbf16>, vector<64x128xf32> -> vector<64x128xf32>
    %43 = arith.addf %37, %42 : vector<64x128xf32>
    %44 = vector.extract_strided_slice %24 {offsets = [1, 0, 0], sizes = [8, 8, 64], strides = [1, 1, 1]} : vector<10x8x64xbf16> to vector<8x8x64xbf16>
    %45 = vector.shape_cast %44 : vector<8x8x64xbf16> to vector<64x64xbf16>
    %c1_72 = arith.constant 1 : index
    %c0_73 = arith.constant 0 : index
    %c0_74 = arith.constant 0 : index
    %c0_75 = arith.constant 0 : index
    %46 = vector.load %arg2[%c1_72, %c0_73, %c0_74, %c0_75] : memref<3x3x64x128xbf16, #tpu.memory_space<vmem>>, vector<1x1x64x128xbf16>
    %47 = vector.shape_cast %46 : vector<1x1x64x128xbf16> to vector<64x128xbf16>
    %cst_76 = arith.constant dense<0.000000e+00> : vector<64x128xf32>
    %48 = tpu.matmul %45, %47, %cst_76 {dimension_numbers = #tpu.dot_dimension_numbers<[1], [0], [0], [1], [0, 0, 1, 1], [], []>} : vector<64x64xbf16>, vector<64x128xbf16>, vector<64x128xf32> -> vector<64x128xf32>
    %49 = arith.addf %43, %48 : vector<64x128xf32>
    %50 = vector.extract_strided_slice %25 {offsets = [1, 0, 0], sizes = [8, 8, 64], strides = [1, 1, 1]} : vector<10x8x64xbf16> to vector<8x8x64xbf16>
    %51 = vector.shape_cast %50 : vector<8x8x64xbf16> to vector<64x64xbf16>
    %c1_77 = arith.constant 1 : index
    %c1_78 = arith.constant 1 : index
    %c0_79 = arith.constant 0 : index
    %c0_80 = arith.constant 0 : index
    %52 = vector.load %arg2[%c1_77, %c1_78, %c0_79, %c0_80] : memref<3x3x64x128xbf16, #tpu.memory_space<vmem>>, vector<1x1x64x128xbf16>
    %53 = vector.shape_cast %52 : vector<1x1x64x128xbf16> to vector<64x128xbf16>
    %cst_81 = arith.constant dense<0.000000e+00> : vector<64x128xf32>
    %54 = tpu.matmul %51, %53, %cst_81 {dimension_numbers = #tpu.dot_dimension_numbers<[1], [0], [0], [1], [0, 0, 1, 1], [], []>} : vector<64x64xbf16>, vector<64x128xbf16>, vector<64x128xf32> -> vector<64x128xf32>
    %55 = arith.addf %49, %54 : vector<64x128xf32>
    %56 = vector.extract_strided_slice %26 {offsets = [1, 0, 0], sizes = [8, 8, 64], strides = [1, 1, 1]} : vector<10x8x64xbf16> to vector<8x8x64xbf16>
    %57 = vector.shape_cast %56 : vector<8x8x64xbf16> to vector<64x64xbf16>
    %c1_82 = arith.constant 1 : index
    %c2_83 = arith.constant 2 : index
    %c0_84 = arith.constant 0 : index
    %c0_85 = arith.constant 0 : index
    %58 = vector.load %arg2[%c1_82, %c2_83, %c0_84, %c0_85] : memref<3x3x64x128xbf16, #tpu.memory_space<vmem>>, vector<1x1x64x128xbf16>
    %59 = vector.shape_cast %58 : vector<1x1x64x128xbf16> to vector<64x128xbf16>
    %cst_86 = arith.constant dense<0.000000e+00> : vector<64x128xf32>
    %60 = tpu.matmul %57, %59, %cst_86 {dimension_numbers = #tpu.dot_dimension_numbers<[1], [0], [0], [1], [0, 0, 1, 1], [], []>} : vector<64x64xbf16>, vector<64x128xbf16>, vector<64x128xf32> -> vector<64x128xf32>
    %61 = arith.addf %55, %60 : vector<64x128xf32>
    %62 = vector.extract_strided_slice %24 {offsets = [2, 0, 0], sizes = [8, 8, 64], strides = [1, 1, 1]} : vector<10x8x64xbf16> to vector<8x8x64xbf16>
    %63 = vector.shape_cast %62 : vector<8x8x64xbf16> to vector<64x64xbf16>
    %c2_87 = arith.constant 2 : index
    %c0_88 = arith.constant 0 : index
    %c0_89 = arith.constant 0 : index
    %c0_90 = arith.constant 0 : index
    %64 = vector.load %arg2[%c2_87, %c0_88, %c0_89, %c0_90] : memref<3x3x64x128xbf16, #tpu.memory_space<vmem>>, vector<1x1x64x128xbf16>
    %65 = vector.shape_cast %64 : vector<1x1x64x128xbf16> to vector<64x128xbf16>
    %cst_91 = arith.constant dense<0.000000e+00> : vector<64x128xf32>
    %66 = tpu.matmul %63, %65, %cst_91 {dimension_numbers = #tpu.dot_dimension_numbers<[1], [0], [0], [1], [0, 0, 1, 1], [], []>} : vector<64x64xbf16>, vector<64x128xbf16>, vector<64x128xf32> -> vector<64x128xf32>
    %67 = arith.addf %61, %66 : vector<64x128xf32>
    %68 = vector.extract_strided_slice %25 {offsets = [2, 0, 0], sizes = [8, 8, 64], strides = [1, 1, 1]} : vector<10x8x64xbf16> to vector<8x8x64xbf16>
    %69 = vector.shape_cast %68 : vector<8x8x64xbf16> to vector<64x64xbf16>
    %c2_92 = arith.constant 2 : index
    %c1_93 = arith.constant 1 : index
    %c0_94 = arith.constant 0 : index
    %c0_95 = arith.constant 0 : index
    %70 = vector.load %arg2[%c2_92, %c1_93, %c0_94, %c0_95] : memref<3x3x64x128xbf16, #tpu.memory_space<vmem>>, vector<1x1x64x128xbf16>
    %71 = vector.shape_cast %70 : vector<1x1x64x128xbf16> to vector<64x128xbf16>
    %cst_96 = arith.constant dense<0.000000e+00> : vector<64x128xf32>
    %72 = tpu.matmul %69, %71, %cst_96 {dimension_numbers = #tpu.dot_dimension_numbers<[1], [0], [0], [1], [0, 0, 1, 1], [], []>} : vector<64x64xbf16>, vector<64x128xbf16>, vector<64x128xf32> -> vector<64x128xf32>
    %73 = arith.addf %67, %72 : vector<64x128xf32>
    %74 = vector.extract_strided_slice %26 {offsets = [2, 0, 0], sizes = [8, 8, 64], strides = [1, 1, 1]} : vector<10x8x64xbf16> to vector<8x8x64xbf16>
    %75 = vector.shape_cast %74 : vector<8x8x64xbf16> to vector<64x64xbf16>
    %c2_97 = arith.constant 2 : index
    %c2_98 = arith.constant 2 : index
    %c0_99 = arith.constant 0 : index
    %c0_100 = arith.constant 0 : index
    %76 = vector.load %arg2[%c2_97, %c2_98, %c0_99, %c0_100] : memref<3x3x64x128xbf16, #tpu.memory_space<vmem>>, vector<1x1x64x128xbf16>
    %77 = vector.shape_cast %76 : vector<1x1x64x128xbf16> to vector<64x128xbf16>
    %cst_101 = arith.constant dense<0.000000e+00> : vector<64x128xf32>
    %78 = tpu.matmul %75, %77, %cst_101 {dimension_numbers = #tpu.dot_dimension_numbers<[1], [0], [0], [1], [0, 0, 1, 1], [], []>} : vector<64x64xbf16>, vector<64x128xbf16>, vector<64x128xf32> -> vector<64x128xf32>
    %79 = arith.addf %73, %78 : vector<64x128xf32>
    %cst_102 = arith.constant 0.000000e+00 : f32
    %80 = vector.broadcast %cst_102 : f32 to vector<64x128xf32>
    %81 = arith.maximumf %79, %80 : vector<64x128xf32>
    %82 = arith.truncf %81 : vector<64x128xf32> to vector<64x128xbf16>
    %83 = vector.shape_cast %82 : vector<64x128xbf16> to vector<8x8x128xbf16>
    %c1_103 = arith.constant 1 : index
    %c1_104 = arith.constant 1 : index
    %c0_105 = arith.constant 0 : index
    %84 = vector.load %arg9[%c1_103, %c1_104, %c0_105] : memref<10x10x128xbf16, #tpu.memory_space<vmem>>, vector<8x8x128xbf16>
    tpu.vector_store %arg9[%c1_103, %c1_104, %c0_105], %83 {strides = array<i32>} : memref<10x10x128xbf16, #tpu.memory_space<vmem>>, vector<8x8x128xbf16>,
    %c0_106 = arith.constant 0 : index
    %c0_107 = arith.constant 0 : index
    %c0_108 = arith.constant 0 : index
    %85 = vector.load %arg9[%c0_106, %c0_107, %c0_108] : memref<10x10x128xbf16, #tpu.memory_space<vmem>>, vector<10x8x128xbf16>
    %c0_109 = arith.constant 0 : index
    %c1_110 = arith.constant 1 : index
    %c0_111 = arith.constant 0 : index
    %86 = vector.load %arg9[%c0_109, %c1_110, %c0_111] : memref<10x10x128xbf16, #tpu.memory_space<vmem>>, vector<10x8x128xbf16>
    %c0_112 = arith.constant 0 : index
    %c2_113 = arith.constant 2 : index
    %c0_114 = arith.constant 0 : index
    %87 = vector.load %arg9[%c0_112, %c2_113, %c0_114] : memref<10x10x128xbf16, #tpu.memory_space<vmem>>, vector<10x8x128xbf16>
    %88 = vector.extract_strided_slice %85 {offsets = [0, 0, 0], sizes = [8, 8, 128], strides = [1, 1, 1]} : vector<10x8x128xbf16> to vector<8x8x128xbf16>
    %89 = vector.shape_cast %88 : vector<8x8x128xbf16> to vector<64x128xbf16>
    %c0_115 = arith.constant 0 : index
    %c0_116 = arith.constant 0 : index
    %c0_117 = arith.constant 0 : index
    %c0_118 = arith.constant 0 : index
    %90 = vector.load %arg3[%c0_115, %c0_116, %c0_117, %c0_118] : memref<3x3x128x128xbf16, #tpu.memory_space<vmem>>, vector<1x1x128x128xbf16>
    %91 = vector.shape_cast %90 : vector<1x1x128x128xbf16> to vector<128x128xbf16>
    %cst_119 = arith.constant dense<0.000000e+00> : vector<64x128xf32>
    %92 = tpu.matmul %89, %91, %cst_119 {dimension_numbers = #tpu.dot_dimension_numbers<[1], [0], [0], [1], [0, 0, 1, 1], [], []>} : vector<64x128xbf16>, vector<128x128xbf16>, vector<64x128xf32> -> vector<64x128xf32>
    %93 = vector.extract_strided_slice %86 {offsets = [0, 0, 0], sizes = [8, 8, 128], strides = [1, 1, 1]} : vector<10x8x128xbf16> to vector<8x8x128xbf16>
    %94 = vector.shape_cast %93 : vector<8x8x128xbf16> to vector<64x128xbf16>
    %c0_120 = arith.constant 0 : index
    %c1_121 = arith.constant 1 : index
    %c0_122 = arith.constant 0 : index
    %c0_123 = arith.constant 0 : index
    %95 = vector.load %arg3[%c0_120, %c1_121, %c0_122, %c0_123] : memref<3x3x128x128xbf16, #tpu.memory_space<vmem>>, vector<1x1x128x128xbf16>
    %96 = vector.shape_cast %95 : vector<1x1x128x128xbf16> to vector<128x128xbf16>
    %cst_124 = arith.constant dense<0.000000e+00> : vector<64x128xf32>
    %97 = tpu.matmul %94, %96, %cst_124 {dimension_numbers = #tpu.dot_dimension_numbers<[1], [0], [0], [1], [0, 0, 1, 1], [], []>} : vector<64x128xbf16>, vector<128x128xbf16>, vector<64x128xf32> -> vector<64x128xf32>
    %98 = arith.addf %92, %97 : vector<64x128xf32>
    %99 = vector.extract_strided_slice %87 {offsets = [0, 0, 0], sizes = [8, 8, 128], strides = [1, 1, 1]} : vector<10x8x128xbf16> to vector<8x8x128xbf16>
    %100 = vector.shape_cast %99 : vector<8x8x128xbf16> to vector<64x128xbf16>
    %c0_125 = arith.constant 0 : index
    %c2_126 = arith.constant 2 : index
    %c0_127 = arith.constant 0 : index
    %c0_128 = arith.constant 0 : index
    %101 = vector.load %arg3[%c0_125, %c2_126, %c0_127, %c0_128] : memref<3x3x128x128xbf16, #tpu.memory_space<vmem>>, vector<1x1x128x128xbf16>
    %102 = vector.shape_cast %101 : vector<1x1x128x128xbf16> to vector<128x128xbf16>
    %cst_129 = arith.constant dense<0.000000e+00> : vector<64x128xf32>
    %103 = tpu.matmul %100, %102, %cst_129 {dimension_numbers = #tpu.dot_dimension_numbers<[1], [0], [0], [1], [0, 0, 1, 1], [], []>} : vector<64x128xbf16>, vector<128x128xbf16>, vector<64x128xf32> -> vector<64x128xf32>
    %104 = arith.addf %98, %103 : vector<64x128xf32>
    %105 = vector.extract_strided_slice %85 {offsets = [1, 0, 0], sizes = [8, 8, 128], strides = [1, 1, 1]} : vector<10x8x128xbf16> to vector<8x8x128xbf16>
    %106 = vector.shape_cast %105 : vector<8x8x128xbf16> to vector<64x128xbf16>
    %c1_130 = arith.constant 1 : index
    %c0_131 = arith.constant 0 : index
    %c0_132 = arith.constant 0 : index
    %c0_133 = arith.constant 0 : index
    %107 = vector.load %arg3[%c1_130, %c0_131, %c0_132, %c0_133] : memref<3x3x128x128xbf16, #tpu.memory_space<vmem>>, vector<1x1x128x128xbf16>
    %108 = vector.shape_cast %107 : vector<1x1x128x128xbf16> to vector<128x128xbf16>
    %cst_134 = arith.constant dense<0.000000e+00> : vector<64x128xf32>
    %109 = tpu.matmul %106, %108, %cst_134 {dimension_numbers = #tpu.dot_dimension_numbers<[1], [0], [0], [1], [0, 0, 1, 1], [], []>} : vector<64x128xbf16>, vector<128x128xbf16>, vector<64x128xf32> -> vector<64x128xf32>
    %110 = arith.addf %104, %109 : vector<64x128xf32>
    %111 = vector.extract_strided_slice %86 {offsets = [1, 0, 0], sizes = [8, 8, 128], strides = [1, 1, 1]} : vector<10x8x128xbf16> to vector<8x8x128xbf16>
    %112 = vector.shape_cast %111 : vector<8x8x128xbf16> to vector<64x128xbf16>
    %c1_135 = arith.constant 1 : index
    %c1_136 = arith.constant 1 : index
    %c0_137 = arith.constant 0 : index
    %c0_138 = arith.constant 0 : index
    %113 = vector.load %arg3[%c1_135, %c1_136, %c0_137, %c0_138] : memref<3x3x128x128xbf16, #tpu.memory_space<vmem>>, vector<1x1x128x128xbf16>
    %114 = vector.shape_cast %113 : vector<1x1x128x128xbf16> to vector<128x128xbf16>
    %cst_139 = arith.constant dense<0.000000e+00> : vector<64x128xf32>
    %115 = tpu.matmul %112, %114, %cst_139 {dimension_numbers = #tpu.dot_dimension_numbers<[1], [0], [0], [1], [0, 0, 1, 1], [], []>} : vector<64x128xbf16>, vector<128x128xbf16>, vector<64x128xf32> -> vector<64x128xf32>
    %116 = arith.addf %110, %115 : vector<64x128xf32>
    %117 = vector.extract_strided_slice %87 {offsets = [1, 0, 0], sizes = [8, 8, 128], strides = [1, 1, 1]} : vector<10x8x128xbf16> to vector<8x8x128xbf16>
    %118 = vector.shape_cast %117 : vector<8x8x128xbf16> to vector<64x128xbf16>
    %c1_140 = arith.constant 1 : index
    %c2_141 = arith.constant 2 : index
    %c0_142 = arith.constant 0 : index
    %c0_143 = arith.constant 0 : index
    %119 = vector.load %arg3[%c1_140, %c2_141, %c0_142, %c0_143] : memref<3x3x128x128xbf16, #tpu.memory_space<vmem>>, vector<1x1x128x128xbf16>
    %120 = vector.shape_cast %119 : vector<1x1x128x128xbf16> to vector<128x128xbf16>
    %cst_144 = arith.constant dense<0.000000e+00> : vector<64x128xf32>
    %121 = tpu.matmul %118, %120, %cst_144 {dimension_numbers = #tpu.dot_dimension_numbers<[1], [0], [0], [1], [0, 0, 1, 1], [], []>} : vector<64x128xbf16>, vector<128x128xbf16>, vector<64x128xf32> -> vector<64x128xf32>
    %122 = arith.addf %116, %121 : vector<64x128xf32>
    %123 = vector.extract_strided_slice %85 {offsets = [2, 0, 0], sizes = [8, 8, 128], strides = [1, 1, 1]} : vector<10x8x128xbf16> to vector<8x8x128xbf16>
    %124 = vector.shape_cast %123 : vector<8x8x128xbf16> to vector<64x128xbf16>
    %c2_145 = arith.constant 2 : index
    %c0_146 = arith.constant 0 : index
    %c0_147 = arith.constant 0 : index
    %c0_148 = arith.constant 0 : index
    %125 = vector.load %arg3[%c2_145, %c0_146, %c0_147, %c0_148] : memref<3x3x128x128xbf16, #tpu.memory_space<vmem>>, vector<1x1x128x128xbf16>
    %126 = vector.shape_cast %125 : vector<1x1x128x128xbf16> to vector<128x128xbf16>
    %cst_149 = arith.constant dense<0.000000e+00> : vector<64x128xf32>
    %127 = tpu.matmul %124, %126, %cst_149 {dimension_numbers = #tpu.dot_dimension_numbers<[1], [0], [0], [1], [0, 0, 1, 1], [], []>} : vector<64x128xbf16>, vector<128x128xbf16>, vector<64x128xf32> -> vector<64x128xf32>
    %128 = arith.addf %122, %127 : vector<64x128xf32>
    %129 = vector.extract_strided_slice %86 {offsets = [2, 0, 0], sizes = [8, 8, 128], strides = [1, 1, 1]} : vector<10x8x128xbf16> to vector<8x8x128xbf16>
    %130 = vector.shape_cast %129 : vector<8x8x128xbf16> to vector<64x128xbf16>
    %c2_150 = arith.constant 2 : index
    %c1_151 = arith.constant 1 : index
    %c0_152 = arith.constant 0 : index
    %c0_153 = arith.constant 0 : index
    %131 = vector.load %arg3[%c2_150, %c1_151, %c0_152, %c0_153] : memref<3x3x128x128xbf16, #tpu.memory_space<vmem>>, vector<1x1x128x128xbf16>
    %132 = vector.shape_cast %131 : vector<1x1x128x128xbf16> to vector<128x128xbf16>
    %cst_154 = arith.constant dense<0.000000e+00> : vector<64x128xf32>
    %133 = tpu.matmul %130, %132, %cst_154 {dimension_numbers = #tpu.dot_dimension_numbers<[1], [0], [0], [1], [0, 0, 1, 1], [], []>} : vector<64x128xbf16>, vector<128x128xbf16>, vector<64x128xf32> -> vector<64x128xf32>
    %134 = arith.addf %128, %133 : vector<64x128xf32>
    %135 = vector.extract_strided_slice %87 {offsets = [2, 0, 0], sizes = [8, 8, 128], strides = [1, 1, 1]} : vector<10x8x128xbf16> to vector<8x8x128xbf16>
    %136 = vector.shape_cast %135 : vector<8x8x128xbf16> to vector<64x128xbf16>
    %c2_155 = arith.constant 2 : index
    %c2_156 = arith.constant 2 : index
    %c0_157 = arith.constant 0 : index
    %c0_158 = arith.constant 0 : index
    %137 = vector.load %arg3[%c2_155, %c2_156, %c0_157, %c0_158] : memref<3x3x128x128xbf16, #tpu.memory_space<vmem>>, vector<1x1x128x128xbf16>
    %138 = vector.shape_cast %137 : vector<1x1x128x128xbf16> to vector<128x128xbf16>
    %cst_159 = arith.constant dense<0.000000e+00> : vector<64x128xf32>
    %139 = tpu.matmul %136, %138, %cst_159 {dimension_numbers = #tpu.dot_dimension_numbers<[1], [0], [0], [1], [0, 0, 1, 1], [], []>} : vector<64x128xbf16>, vector<128x128xbf16>, vector<64x128xf32> -> vector<64x128xf32>
    %140 = arith.addf %134, %139 : vector<64x128xf32>
    %c0_160 = arith.constant 0 : index
    %c0_161 = arith.constant 0 : index
    %141 = vector.load %arg4[%c0_160, %c0_161] : memref<64x128xbf16, #tpu.memory_space<vmem>>, vector<64x128xbf16>
    %cst_162 = arith.constant dense<0.000000e+00> : vector<64x128xf32>
    %142 = tpu.matmul %20, %141, %cst_162 {dimension_numbers = #tpu.dot_dimension_numbers<[1], [0], [0], [1], [0, 0, 1, 1], [], []>} : vector<64x64xbf16>, vector<64x128xbf16>, vector<64x128xf32> -> vector<64x128xf32>
    %143 = arith.addf %140, %142 : vector<64x128xf32>
    %cst_163 = arith.constant 0.000000e+00 : f32
    %144 = vector.broadcast %cst_163 : f32 to vector<64x128xf32>
    %145 = arith.maximumf %143, %144 : vector<64x128xf32>
    %146 = arith.truncf %145 : vector<64x128xf32> to vector<64x128xbf16>
    %147 = vector.shape_cast %146 : vector<64x128xbf16> to vector<8x8x128xbf16>
    %c1_164 = arith.constant 1 : index
    %c1_165 = arith.constant 1 : index
    %c0_166 = arith.constant 0 : index
    %148 = vector.load %arg10[%c1_164, %c1_165, %c0_166] : memref<10x10x128xbf16, #tpu.memory_space<vmem>>, vector<8x8x128xbf16>
    tpu.vector_store %arg10[%c1_164, %c1_165, %c0_166], %147 {strides = array<i32>} : memref<10x10x128xbf16, #tpu.memory_space<vmem>>, vector<8x8x128xbf16>,
    %c0_167 = arith.constant 0 : index
    %c0_168 = arith.constant 0 : index
    %c0_169 = arith.constant 0 : index
    %149 = vector.load %arg10[%c0_167, %c0_168, %c0_169] : memref<10x10x128xbf16, #tpu.memory_space<vmem>>, vector<10x8x128xbf16>
    %c0_170 = arith.constant 0 : index
    %c1_171 = arith.constant 1 : index
    %c0_172 = arith.constant 0 : index
    %150 = vector.load %arg10[%c0_170, %c1_171, %c0_172] : memref<10x10x128xbf16, #tpu.memory_space<vmem>>, vector<10x8x128xbf16>
    %c0_173 = arith.constant 0 : index
    %c2_174 = arith.constant 2 : index
    %c0_175 = arith.constant 0 : index
    %151 = vector.load %arg10[%c0_173, %c2_174, %c0_175] : memref<10x10x128xbf16, #tpu.memory_space<vmem>>, vector<10x8x128xbf16>
    %152 = vector.extract_strided_slice %149 {offsets = [0, 0, 0], sizes = [8, 8, 128], strides = [1, 1, 1]} : vector<10x8x128xbf16> to vector<8x8x128xbf16>
    %153 = vector.shape_cast %152 : vector<8x8x128xbf16> to vector<64x128xbf16>
    %c0_176 = arith.constant 0 : index
    %c0_177 = arith.constant 0 : index
    %c0_178 = arith.constant 0 : index
    %c0_179 = arith.constant 0 : index
    %154 = vector.load %arg5[%c0_176, %c0_177, %c0_178, %c0_179] : memref<3x3x128x128xbf16, #tpu.memory_space<vmem>>, vector<1x1x128x128xbf16>
    %155 = vector.shape_cast %154 : vector<1x1x128x128xbf16> to vector<128x128xbf16>
    %cst_180 = arith.constant dense<0.000000e+00> : vector<64x128xf32>
    %156 = tpu.matmul %153, %155, %cst_180 {dimension_numbers = #tpu.dot_dimension_numbers<[1], [0], [0], [1], [0, 0, 1, 1], [], []>} : vector<64x128xbf16>, vector<128x128xbf16>, vector<64x128xf32> -> vector<64x128xf32>
    %157 = vector.extract_strided_slice %150 {offsets = [0, 0, 0], sizes = [8, 8, 128], strides = [1, 1, 1]} : vector<10x8x128xbf16> to vector<8x8x128xbf16>
    %158 = vector.shape_cast %157 : vector<8x8x128xbf16> to vector<64x128xbf16>
    %c0_181 = arith.constant 0 : index
    %c1_182 = arith.constant 1 : index
    %c0_183 = arith.constant 0 : index
    %c0_184 = arith.constant 0 : index
    %159 = vector.load %arg5[%c0_181, %c1_182, %c0_183, %c0_184] : memref<3x3x128x128xbf16, #tpu.memory_space<vmem>>, vector<1x1x128x128xbf16>
    %160 = vector.shape_cast %159 : vector<1x1x128x128xbf16> to vector<128x128xbf16>
    %cst_185 = arith.constant dense<0.000000e+00> : vector<64x128xf32>
    %161 = tpu.matmul %158, %160, %cst_185 {dimension_numbers = #tpu.dot_dimension_numbers<[1], [0], [0], [1], [0, 0, 1, 1], [], []>} : vector<64x128xbf16>, vector<128x128xbf16>, vector<64x128xf32> -> vector<64x128xf32>
    %162 = arith.addf %156, %161 : vector<64x128xf32>
    %163 = vector.extract_strided_slice %151 {offsets = [0, 0, 0], sizes = [8, 8, 128], strides = [1, 1, 1]} : vector<10x8x128xbf16> to vector<8x8x128xbf16>
    %164 = vector.shape_cast %163 : vector<8x8x128xbf16> to vector<64x128xbf16>
    %c0_186 = arith.constant 0 : index
    %c2_187 = arith.constant 2 : index
    %c0_188 = arith.constant 0 : index
    %c0_189 = arith.constant 0 : index
    %165 = vector.load %arg5[%c0_186, %c2_187, %c0_188, %c0_189] : memref<3x3x128x128xbf16, #tpu.memory_space<vmem>>, vector<1x1x128x128xbf16>
    %166 = vector.shape_cast %165 : vector<1x1x128x128xbf16> to vector<128x128xbf16>
    %cst_190 = arith.constant dense<0.000000e+00> : vector<64x128xf32>
    %167 = tpu.matmul %164, %166, %cst_190 {dimension_numbers = #tpu.dot_dimension_numbers<[1], [0], [0], [1], [0, 0, 1, 1], [], []>} : vector<64x128xbf16>, vector<128x128xbf16>, vector<64x128xf32> -> vector<64x128xf32>
    %168 = arith.addf %162, %167 : vector<64x128xf32>
    %169 = vector.extract_strided_slice %149 {offsets = [1, 0, 0], sizes = [8, 8, 128], strides = [1, 1, 1]} : vector<10x8x128xbf16> to vector<8x8x128xbf16>
    %170 = vector.shape_cast %169 : vector<8x8x128xbf16> to vector<64x128xbf16>
    %c1_191 = arith.constant 1 : index
    %c0_192 = arith.constant 0 : index
    %c0_193 = arith.constant 0 : index
    %c0_194 = arith.constant 0 : index
    %171 = vector.load %arg5[%c1_191, %c0_192, %c0_193, %c0_194] : memref<3x3x128x128xbf16, #tpu.memory_space<vmem>>, vector<1x1x128x128xbf16>
    %172 = vector.shape_cast %171 : vector<1x1x128x128xbf16> to vector<128x128xbf16>
    %cst_195 = arith.constant dense<0.000000e+00> : vector<64x128xf32>
    %173 = tpu.matmul %170, %172, %cst_195 {dimension_numbers = #tpu.dot_dimension_numbers<[1], [0], [0], [1], [0, 0, 1, 1], [], []>} : vector<64x128xbf16>, vector<128x128xbf16>, vector<64x128xf32> -> vector<64x128xf32>
    %174 = arith.addf %168, %173 : vector<64x128xf32>
    %175 = vector.extract_strided_slice %150 {offsets = [1, 0, 0], sizes = [8, 8, 128], strides = [1, 1, 1]} : vector<10x8x128xbf16> to vector<8x8x128xbf16>
    %176 = vector.shape_cast %175 : vector<8x8x128xbf16> to vector<64x128xbf16>
    %c1_196 = arith.constant 1 : index
    %c1_197 = arith.constant 1 : index
    %c0_198 = arith.constant 0 : index
    %c0_199 = arith.constant 0 : index
    %177 = vector.load %arg5[%c1_196, %c1_197, %c0_198, %c0_199] : memref<3x3x128x128xbf16, #tpu.memory_space<vmem>>, vector<1x1x128x128xbf16>
    %178 = vector.shape_cast %177 : vector<1x1x128x128xbf16> to vector<128x128xbf16>
    %cst_200 = arith.constant dense<0.000000e+00> : vector<64x128xf32>
    %179 = tpu.matmul %176, %178, %cst_200 {dimension_numbers = #tpu.dot_dimension_numbers<[1], [0], [0], [1], [0, 0, 1, 1], [], []>} : vector<64x128xbf16>, vector<128x128xbf16>, vector<64x128xf32> -> vector<64x128xf32>
    %180 = arith.addf %174, %179 : vector<64x128xf32>
    %181 = vector.extract_strided_slice %151 {offsets = [1, 0, 0], sizes = [8, 8, 128], strides = [1, 1, 1]} : vector<10x8x128xbf16> to vector<8x8x128xbf16>
    %182 = vector.shape_cast %181 : vector<8x8x128xbf16> to vector<64x128xbf16>
    %c1_201 = arith.constant 1 : index
    %c2_202 = arith.constant 2 : index
    %c0_203 = arith.constant 0 : index
    %c0_204 = arith.constant 0 : index
    %183 = vector.load %arg5[%c1_201, %c2_202, %c0_203, %c0_204] : memref<3x3x128x128xbf16, #tpu.memory_space<vmem>>, vector<1x1x128x128xbf16>
    %184 = vector.shape_cast %183 : vector<1x1x128x128xbf16> to vector<128x128xbf16>
    %cst_205 = arith.constant dense<0.000000e+00> : vector<64x128xf32>
    %185 = tpu.matmul %182, %184, %cst_205 {dimension_numbers = #tpu.dot_dimension_numbers<[1], [0], [0], [1], [0, 0, 1, 1], [], []>} : vector<64x128xbf16>, vector<128x128xbf16>, vector<64x128xf32> -> vector<64x128xf32>
    %186 = arith.addf %180, %185 : vector<64x128xf32>
    %187 = vector.extract_strided_slice %149 {offsets = [2, 0, 0], sizes = [8, 8, 128], strides = [1, 1, 1]} : vector<10x8x128xbf16> to vector<8x8x128xbf16>
    %188 = vector.shape_cast %187 : vector<8x8x128xbf16> to vector<64x128xbf16>
    %c2_206 = arith.constant 2 : index
    %c0_207 = arith.constant 0 : index
    %c0_208 = arith.constant 0 : index
    %c0_209 = arith.constant 0 : index
    %189 = vector.load %arg5[%c2_206, %c0_207, %c0_208, %c0_209] : memref<3x3x128x128xbf16, #tpu.memory_space<vmem>>, vector<1x1x128x128xbf16>
    %190 = vector.shape_cast %189 : vector<1x1x128x128xbf16> to vector<128x128xbf16>
    %cst_210 = arith.constant dense<0.000000e+00> : vector<64x128xf32>
    %191 = tpu.matmul %188, %190, %cst_210 {dimension_numbers = #tpu.dot_dimension_numbers<[1], [0], [0], [1], [0, 0, 1, 1], [], []>} : vector<64x128xbf16>, vector<128x128xbf16>, vector<64x128xf32> -> vector<64x128xf32>
    %192 = arith.addf %186, %191 : vector<64x128xf32>
    %193 = vector.extract_strided_slice %150 {offsets = [2, 0, 0], sizes = [8, 8, 128], strides = [1, 1, 1]} : vector<10x8x128xbf16> to vector<8x8x128xbf16>
    %194 = vector.shape_cast %193 : vector<8x8x128xbf16> to vector<64x128xbf16>
    %c2_211 = arith.constant 2 : index
    %c1_212 = arith.constant 1 : index
    %c0_213 = arith.constant 0 : index
    %c0_214 = arith.constant 0 : index
    %195 = vector.load %arg5[%c2_211, %c1_212, %c0_213, %c0_214] : memref<3x3x128x128xbf16, #tpu.memory_space<vmem>>, vector<1x1x128x128xbf16>
    %196 = vector.shape_cast %195 : vector<1x1x128x128xbf16> to vector<128x128xbf16>
    %cst_215 = arith.constant dense<0.000000e+00> : vector<64x128xf32>
    %197 = tpu.matmul %194, %196, %cst_215 {dimension_numbers = #tpu.dot_dimension_numbers<[1], [0], [0], [1], [0, 0, 1, 1], [], []>} : vector<64x128xbf16>, vector<128x128xbf16>, vector<64x128xf32> -> vector<64x128xf32>
    %198 = arith.addf %192, %197 : vector<64x128xf32>
    %199 = vector.extract_strided_slice %151 {offsets = [2, 0, 0], sizes = [8, 8, 128], strides = [1, 1, 1]} : vector<10x8x128xbf16> to vector<8x8x128xbf16>
    %200 = vector.shape_cast %199 : vector<8x8x128xbf16> to vector<64x128xbf16>
    %c2_216 = arith.constant 2 : index
    %c2_217 = arith.constant 2 : index
    %c0_218 = arith.constant 0 : index
    %c0_219 = arith.constant 0 : index
    %201 = vector.load %arg5[%c2_216, %c2_217, %c0_218, %c0_219] : memref<3x3x128x128xbf16, #tpu.memory_space<vmem>>, vector<1x1x128x128xbf16>
    %202 = vector.shape_cast %201 : vector<1x1x128x128xbf16> to vector<128x128xbf16>
    %cst_220 = arith.constant dense<0.000000e+00> : vector<64x128xf32>
    %203 = tpu.matmul %200, %202, %cst_220 {dimension_numbers = #tpu.dot_dimension_numbers<[1], [0], [0], [1], [0, 0, 1, 1], [], []>} : vector<64x128xbf16>, vector<128x128xbf16>, vector<64x128xf32> -> vector<64x128xf32>
    %204 = arith.addf %198, %203 : vector<64x128xf32>
    %cst_221 = arith.constant 0.000000e+00 : f32
    %205 = vector.broadcast %cst_221 : f32 to vector<64x128xf32>
    %206 = arith.maximumf %204, %205 : vector<64x128xf32>
    %207 = arith.truncf %206 : vector<64x128xf32> to vector<64x128xbf16>
    %208 = vector.shape_cast %207 : vector<64x128xbf16> to vector<8x8x128xbf16>
    %c1_222 = arith.constant 1 : index
    %c1_223 = arith.constant 1 : index
    %c0_224 = arith.constant 0 : index
    %209 = vector.load %arg9[%c1_222, %c1_223, %c0_224] : memref<10x10x128xbf16, #tpu.memory_space<vmem>>, vector<8x8x128xbf16>
    tpu.vector_store %arg9[%c1_222, %c1_223, %c0_224], %208 {strides = array<i32>} : memref<10x10x128xbf16, #tpu.memory_space<vmem>>, vector<8x8x128xbf16>,
    %c0_225 = arith.constant 0 : index
    %c0_226 = arith.constant 0 : index
    %c0_227 = arith.constant 0 : index
    %210 = vector.load %arg9[%c0_225, %c0_226, %c0_227] : memref<10x10x128xbf16, #tpu.memory_space<vmem>>, vector<10x8x128xbf16>
    %c0_228 = arith.constant 0 : index
    %c1_229 = arith.constant 1 : index
    %c0_230 = arith.constant 0 : index
    %211 = vector.load %arg9[%c0_228, %c1_229, %c0_230] : memref<10x10x128xbf16, #tpu.memory_space<vmem>>, vector<10x8x128xbf16>
    %c0_231 = arith.constant 0 : index
    %c2_232 = arith.constant 2 : index
    %c0_233 = arith.constant 0 : index
    %212 = vector.load %arg9[%c0_231, %c2_232, %c0_233] : memref<10x10x128xbf16, #tpu.memory_space<vmem>>, vector<10x8x128xbf16>
    %213 = vector.extract_strided_slice %210 {offsets = [0, 0, 0], sizes = [8, 8, 128], strides = [1, 1, 1]} : vector<10x8x128xbf16> to vector<8x8x128xbf16>
    %214 = vector.shape_cast %213 : vector<8x8x128xbf16> to vector<64x128xbf16>
    %c0_234 = arith.constant 0 : index
    %c0_235 = arith.constant 0 : index
    %c0_236 = arith.constant 0 : index
    %c0_237 = arith.constant 0 : index
    %215 = vector.load %arg6[%c0_234, %c0_235, %c0_236, %c0_237] : memref<3x3x128x128xbf16, #tpu.memory_space<vmem>>, vector<1x1x128x128xbf16>
    %216 = vector.shape_cast %215 : vector<1x1x128x128xbf16> to vector<128x128xbf16>
    %cst_238 = arith.constant dense<0.000000e+00> : vector<64x128xf32>
    %217 = tpu.matmul %214, %216, %cst_238 {dimension_numbers = #tpu.dot_dimension_numbers<[1], [0], [0], [1], [0, 0, 1, 1], [], []>} : vector<64x128xbf16>, vector<128x128xbf16>, vector<64x128xf32> -> vector<64x128xf32>
    %218 = vector.extract_strided_slice %211 {offsets = [0, 0, 0], sizes = [8, 8, 128], strides = [1, 1, 1]} : vector<10x8x128xbf16> to vector<8x8x128xbf16>
    %219 = vector.shape_cast %218 : vector<8x8x128xbf16> to vector<64x128xbf16>
    %c0_239 = arith.constant 0 : index
    %c1_240 = arith.constant 1 : index
    %c0_241 = arith.constant 0 : index
    %c0_242 = arith.constant 0 : index
    %220 = vector.load %arg6[%c0_239, %c1_240, %c0_241, %c0_242] : memref<3x3x128x128xbf16, #tpu.memory_space<vmem>>, vector<1x1x128x128xbf16>
    %221 = vector.shape_cast %220 : vector<1x1x128x128xbf16> to vector<128x128xbf16>
    %cst_243 = arith.constant dense<0.000000e+00> : vector<64x128xf32>
    %222 = tpu.matmul %219, %221, %cst_243 {dimension_numbers = #tpu.dot_dimension_numbers<[1], [0], [0], [1], [0, 0, 1, 1], [], []>} : vector<64x128xbf16>, vector<128x128xbf16>, vector<64x128xf32> -> vector<64x128xf32>
    %223 = arith.addf %217, %222 : vector<64x128xf32>
    %224 = vector.extract_strided_slice %212 {offsets = [0, 0, 0], sizes = [8, 8, 128], strides = [1, 1, 1]} : vector<10x8x128xbf16> to vector<8x8x128xbf16>
    %225 = vector.shape_cast %224 : vector<8x8x128xbf16> to vector<64x128xbf16>
    %c0_244 = arith.constant 0 : index
    %c2_245 = arith.constant 2 : index
    %c0_246 = arith.constant 0 : index
    %c0_247 = arith.constant 0 : index
    %226 = vector.load %arg6[%c0_244, %c2_245, %c0_246, %c0_247] : memref<3x3x128x128xbf16, #tpu.memory_space<vmem>>, vector<1x1x128x128xbf16>
    %227 = vector.shape_cast %226 : vector<1x1x128x128xbf16> to vector<128x128xbf16>
    %cst_248 = arith.constant dense<0.000000e+00> : vector<64x128xf32>
    %228 = tpu.matmul %225, %227, %cst_248 {dimension_numbers = #tpu.dot_dimension_numbers<[1], [0], [0], [1], [0, 0, 1, 1], [], []>} : vector<64x128xbf16>, vector<128x128xbf16>, vector<64x128xf32> -> vector<64x128xf32>
    %229 = arith.addf %223, %228 : vector<64x128xf32>
    %230 = vector.extract_strided_slice %210 {offsets = [1, 0, 0], sizes = [8, 8, 128], strides = [1, 1, 1]} : vector<10x8x128xbf16> to vector<8x8x128xbf16>
    %231 = vector.shape_cast %230 : vector<8x8x128xbf16> to vector<64x128xbf16>
    %c1_249 = arith.constant 1 : index
    %c0_250 = arith.constant 0 : index
    %c0_251 = arith.constant 0 : index
    %c0_252 = arith.constant 0 : index
    %232 = vector.load %arg6[%c1_249, %c0_250, %c0_251, %c0_252] : memref<3x3x128x128xbf16, #tpu.memory_space<vmem>>, vector<1x1x128x128xbf16>
    %233 = vector.shape_cast %232 : vector<1x1x128x128xbf16> to vector<128x128xbf16>
    %cst_253 = arith.constant dense<0.000000e+00> : vector<64x128xf32>
    %234 = tpu.matmul %231, %233, %cst_253 {dimension_numbers = #tpu.dot_dimension_numbers<[1], [0], [0], [1], [0, 0, 1, 1], [], []>} : vector<64x128xbf16>, vector<128x128xbf16>, vector<64x128xf32> -> vector<64x128xf32>
    %235 = arith.addf %229, %234 : vector<64x128xf32>
    %236 = vector.extract_strided_slice %211 {offsets = [1, 0, 0], sizes = [8, 8, 128], strides = [1, 1, 1]} : vector<10x8x128xbf16> to vector<8x8x128xbf16>
    %237 = vector.shape_cast %236 : vector<8x8x128xbf16> to vector<64x128xbf16>
    %c1_254 = arith.constant 1 : index
    %c1_255 = arith.constant 1 : index
    %c0_256 = arith.constant 0 : index
    %c0_257 = arith.constant 0 : index
    %238 = vector.load %arg6[%c1_254, %c1_255, %c0_256, %c0_257] : memref<3x3x128x128xbf16, #tpu.memory_space<vmem>>, vector<1x1x128x128xbf16>
    %239 = vector.shape_cast %238 : vector<1x1x128x128xbf16> to vector<128x128xbf16>
    %cst_258 = arith.constant dense<0.000000e+00> : vector<64x128xf32>
    %240 = tpu.matmul %237, %239, %cst_258 {dimension_numbers = #tpu.dot_dimension_numbers<[1], [0], [0], [1], [0, 0, 1, 1], [], []>} : vector<64x128xbf16>, vector<128x128xbf16>, vector<64x128xf32> -> vector<64x128xf32>
    %241 = arith.addf %235, %240 : vector<64x128xf32>
    %242 = vector.extract_strided_slice %212 {offsets = [1, 0, 0], sizes = [8, 8, 128], strides = [1, 1, 1]} : vector<10x8x128xbf16> to vector<8x8x128xbf16>
    %243 = vector.shape_cast %242 : vector<8x8x128xbf16> to vector<64x128xbf16>
    %c1_259 = arith.constant 1 : index
    %c2_260 = arith.constant 2 : index
    %c0_261 = arith.constant 0 : index
    %c0_262 = arith.constant 0 : index
    %244 = vector.load %arg6[%c1_259, %c2_260, %c0_261, %c0_262] : memref<3x3x128x128xbf16, #tpu.memory_space<vmem>>, vector<1x1x128x128xbf16>
    %245 = vector.shape_cast %244 : vector<1x1x128x128xbf16> to vector<128x128xbf16>
    %cst_263 = arith.constant dense<0.000000e+00> : vector<64x128xf32>
    %246 = tpu.matmul %243, %245, %cst_263 {dimension_numbers = #tpu.dot_dimension_numbers<[1], [0], [0], [1], [0, 0, 1, 1], [], []>} : vector<64x128xbf16>, vector<128x128xbf16>, vector<64x128xf32> -> vector<64x128xf32>
    %247 = arith.addf %241, %246 : vector<64x128xf32>
    %248 = vector.extract_strided_slice %210 {offsets = [2, 0, 0], sizes = [8, 8, 128], strides = [1, 1, 1]} : vector<10x8x128xbf16> to vector<8x8x128xbf16>
    %249 = vector.shape_cast %248 : vector<8x8x128xbf16> to vector<64x128xbf16>
    %c2_264 = arith.constant 2 : index
    %c0_265 = arith.constant 0 : index
    %c0_266 = arith.constant 0 : index
    %c0_267 = arith.constant 0 : index
    %250 = vector.load %arg6[%c2_264, %c0_265, %c0_266, %c0_267] : memref<3x3x128x128xbf16, #tpu.memory_space<vmem>>, vector<1x1x128x128xbf16>
    %251 = vector.shape_cast %250 : vector<1x1x128x128xbf16> to vector<128x128xbf16>
    %cst_268 = arith.constant dense<0.000000e+00> : vector<64x128xf32>
    %252 = tpu.matmul %249, %251, %cst_268 {dimension_numbers = #tpu.dot_dimension_numbers<[1], [0], [0], [1], [0, 0, 1, 1], [], []>} : vector<64x128xbf16>, vector<128x128xbf16>, vector<64x128xf32> -> vector<64x128xf32>
    %253 = arith.addf %247, %252 : vector<64x128xf32>
    %254 = vector.extract_strided_slice %211 {offsets = [2, 0, 0], sizes = [8, 8, 128], strides = [1, 1, 1]} : vector<10x8x128xbf16> to vector<8x8x128xbf16>
    %255 = vector.shape_cast %254 : vector<8x8x128xbf16> to vector<64x128xbf16>
    %c2_269 = arith.constant 2 : index
    %c1_270 = arith.constant 1 : index
    %c0_271 = arith.constant 0 : index
    %c0_272 = arith.constant 0 : index
    %256 = vector.load %arg6[%c2_269, %c1_270, %c0_271, %c0_272] : memref<3x3x128x128xbf16, #tpu.memory_space<vmem>>, vector<1x1x128x128xbf16>
    %257 = vector.shape_cast %256 : vector<1x1x128x128xbf16> to vector<128x128xbf16>
    %cst_273 = arith.constant dense<0.000000e+00> : vector<64x128xf32>
    %258 = tpu.matmul %255, %257, %cst_273 {dimension_numbers = #tpu.dot_dimension_numbers<[1], [0], [0], [1], [0, 0, 1, 1], [], []>} : vector<64x128xbf16>, vector<128x128xbf16>, vector<64x128xf32> -> vector<64x128xf32>
    %259 = arith.addf %253, %258 : vector<64x128xf32>
    %260 = vector.extract_strided_slice %212 {offsets = [2, 0, 0], sizes = [8, 8, 128], strides = [1, 1, 1]} : vector<10x8x128xbf16> to vector<8x8x128xbf16>
    %261 = vector.shape_cast %260 : vector<8x8x128xbf16> to vector<64x128xbf16>
    %c2_274 = arith.constant 2 : index
    %c2_275 = arith.constant 2 : index
    %c0_276 = arith.constant 0 : index
    %c0_277 = arith.constant 0 : index
    %262 = vector.load %arg6[%c2_274, %c2_275, %c0_276, %c0_277] : memref<3x3x128x128xbf16, #tpu.memory_space<vmem>>, vector<1x1x128x128xbf16>
    %263 = vector.shape_cast %262 : vector<1x1x128x128xbf16> to vector<128x128xbf16>
    %cst_278 = arith.constant dense<0.000000e+00> : vector<64x128xf32>
    %264 = tpu.matmul %261, %263, %cst_278 {dimension_numbers = #tpu.dot_dimension_numbers<[1], [0], [0], [1], [0, 0, 1, 1], [], []>} : vector<64x128xbf16>, vector<128x128xbf16>, vector<64x128xf32> -> vector<64x128xf32>
    %265 = arith.addf %259, %264 : vector<64x128xf32>
    %266 = arith.extf %146 : vector<64x128xbf16> to vector<64x128xf32>
    %267 = arith.addf %265, %266 : vector<64x128xf32>
    %cst_279 = arith.constant 0.000000e+00 : f32
    %268 = vector.broadcast %cst_279 : f32 to vector<64x128xf32>
    %269 = arith.maximumf %267, %268 : vector<64x128xf32>
    %270 = vector.shape_cast %269 : vector<64x128xf32> to vector<4x16x128xf32>
    %271 = vector.extract_strided_slice %270 {offsets = [0, 0, 0], sizes = [4, 8, 128], strides = [1, 1, 1]} : vector<4x16x128xf32> to vector<4x8x128xf32>
    %272 = vector.extract_strided_slice %270 {offsets = [0, 8, 0], sizes = [4, 8, 128], strides = [1, 1, 1]} : vector<4x16x128xf32> to vector<4x8x128xf32>
    %273 = arith.maximumf %271, %272 : vector<4x8x128xf32>
    %274 = vector.shape_cast %273 : vector<4x8x128xf32> to vector<4x4x2x128xf32>
    %275 = vector.extract_strided_slice %274 {offsets = [0, 0, 0, 0], sizes = [4, 4, 1, 128], strides = [1, 1, 1, 1]} : vector<4x4x2x128xf32> to vector<4x4x1x128xf32>
    %276 = vector.shape_cast %275 : vector<4x4x1x128xf32> to vector<4x4x128xf32>
    %277 = vector.extract_strided_slice %274 {offsets = [0, 0, 1, 0], sizes = [4, 4, 1, 128], strides = [1, 1, 1, 1]} : vector<4x4x2x128xf32> to vector<4x4x1x128xf32>
    %278 = vector.shape_cast %277 : vector<4x4x1x128xf32> to vector<4x4x128xf32>
    %279 = arith.maximumf %276, %278 : vector<4x4x128xf32>
    %280 = vector.shape_cast %279 : vector<4x4x128xf32> to vector<1x4x4x128xf32>
    %281 = arith.truncf %280 : vector<1x4x4x128xf32> to vector<1x4x4x128xbf16>
    %c0_280 = arith.constant 0 : index
    %c0_281 = arith.constant 0 : index
    %c0_282 = arith.constant 0 : index
    %c0_283 = arith.constant 0 : index
    %282 = vector.load %arg7[%c0_280, %c0_281, %c0_282, %c0_283] : memref<1x4x4x128xbf16, #tpu.memory_space<vmem>>, vector<1x4x4x128xbf16>
    tpu.vector_store %arg7[%c0_280, %c0_281, %c0_282, %c0_283], %281 {strides = array<i32>} : memref<1x4x4x128xbf16, #tpu.memory_space<vmem>>, vector<1x4x4x128xbf16>,
    return
  }
  func.func @transform_0(%arg0: i32) -> (i32, i32, i32, i32) {
    %c0_i32 = arith.constant 0 : i32
    %c0_i32_0 = arith.constant 0 : i32
    %c0_i32_1 = arith.constant 0 : i32
    %c0_i32_2 = arith.constant 0 : i32
    return %arg0, %c0_i32, %c0_i32_0, %c0_i32_1 : i32, i32, i32, i32
  }
  func.func @transform_1(%arg0: i32) -> (i32, i32, i32, i32) {
    %c0_i32 = arith.constant 0 : i32
    %c0_i32_0 = arith.constant 0 : i32
    %c0_i32_1 = arith.constant 0 : i32
    %c0_i32_2 = arith.constant 0 : i32
    %c0_i32_3 = arith.constant 0 : i32
    return %c0_i32, %c0_i32_0, %c0_i32_1, %c0_i32_2 : i32, i32, i32, i32
  }
  func.func @transform_2(%arg0: i32) -> (i32, i32, i32, i32) {
    %c0_i32 = arith.constant 0 : i32
    %c0_i32_0 = arith.constant 0 : i32
    %c0_i32_1 = arith.constant 0 : i32
    %c0_i32_2 = arith.constant 0 : i32
    %c0_i32_3 = arith.constant 0 : i32
    return %c0_i32, %c0_i32_0, %c0_i32_1, %c0_i32_2 : i32, i32, i32, i32
  }
  func.func @transform_3(%arg0: i32) -> (i32, i32) {
    %c0_i32 = arith.constant 0 : i32
    %c0_i32_0 = arith.constant 0 : i32
    %c0_i32_1 = arith.constant 0 : i32
    return %c0_i32, %c0_i32_0 : i32, i32
  }
  func.func @transform_4(%arg0: i32) -> (i32, i32, i32, i32) {
    %c0_i32 = arith.constant 0 : i32
    %c0_i32_0 = arith.constant 0 : i32
    %c0_i32_1 = arith.constant 0 : i32
    %c0_i32_2 = arith.constant 0 : i32
    %c0_i32_3 = arith.constant 0 : i32
    return %c0_i32, %c0_i32_0, %c0_i32_1, %c0_i32_2 : i32, i32, i32, i32
  }
  func.func @transform_5(%arg0: i32) -> (i32, i32, i32, i32) {
    %c0_i32 = arith.constant 0 : i32
    %c0_i32_0 = arith.constant 0 : i32
    %c0_i32_1 = arith.constant 0 : i32
    %c0_i32_2 = arith.constant 0 : i32
    %c0_i32_3 = arith.constant 0 : i32
    return %c0_i32, %c0_i32_0, %c0_i32_1, %c0_i32_2 : i32, i32, i32, i32
  }
  func.func @transform_6(%arg0: i32) -> (i32, i32, i32, i32) {
    %c0_i32 = arith.constant 0 : i32
    %c0_i32_0 = arith.constant 0 : i32
    %c0_i32_1 = arith.constant 0 : i32
    %c0_i32_2 = arith.constant 0 : i32
    return %arg0, %c0_i32, %c0_i32_0, %c0_i32_1 : i32, i32, i32, i32
  }
}

module attributes {stable_mosaic.version = 11 : i64} {
  func.func @kernel(%arg0: i32, %arg1: memref<1x4x4x128xbf16, #tpu.memory_space<vmem>>, %arg2: memref<3x3x128x256xbf16, #tpu.memory_space<vmem>>, %arg3: memref<3x3x256x256xbf16, #tpu.memory_space<vmem>>, %arg4: memref<128x256xbf16, #tpu.memory_space<vmem>>, %arg5: memref<3x3x256x256xbf16, #tpu.memory_space<vmem>>, %arg6: memref<3x3x256x256xbf16, #tpu.memory_space<vmem>>, %arg7: memref<1x2x2x256xbf16, #tpu.memory_space<vmem>>, %arg8: memref<6x6x128xbf16, #tpu.memory_space<vmem>>, %arg9: memref<6x6x256xbf16, #tpu.memory_space<vmem>>, %arg10: memref<6x6x256xbf16, #tpu.memory_space<vmem>>) attributes {dimension_semantics = [#tpu.dimension_semantics<parallel>], iteration_bounds = array<i64: 2>, scalar_prefetch = 0 : i64, scratch_operands = 3 : i64, tpu.core_type = #tpu.core_type<tc>, window_params = [{transform_indices = @transform_0, window_bounds = array<i64: 1, 4, 4, 128>}, {pipeline_mode = #tpu.pipeline_mode<synchronous>, transform_indices = @transform_1, window_bounds = array<i64: 3, 3, 128, 256>}, {pipeline_mode = #tpu.pipeline_mode<synchronous>, transform_indices = @transform_2, window_bounds = array<i64: 3, 3, 256, 256>}, {pipeline_mode = #tpu.pipeline_mode<synchronous>, transform_indices = @transform_3, window_bounds = array<i64: 128, 256>}, {pipeline_mode = #tpu.pipeline_mode<synchronous>, transform_indices = @transform_4, window_bounds = array<i64: 3, 3, 256, 256>}, {pipeline_mode = #tpu.pipeline_mode<synchronous>, transform_indices = @transform_5, window_bounds = array<i64: 3, 3, 256, 256>}, {transform_indices = @transform_6, window_bounds = array<i64: 1, 2, 2, 256>}]} {
    %cst = arith.constant 0.000000e+00 : bf16
    %0 = vector.broadcast %cst : bf16 to vector<1x6x128xbf16>
    %c0 = arith.constant 0 : index
    %c0_0 = arith.constant 0 : index
    %c0_1 = arith.constant 0 : index
    %1 = vector.load %arg8[%c0, %c0_0, %c0_1] : memref<6x6x128xbf16, #tpu.memory_space<vmem>>, vector<1x6x128xbf16>
    tpu.vector_store %arg8[%c0, %c0_0, %c0_1], %0 {strides = array<i32>} : memref<6x6x128xbf16, #tpu.memory_space<vmem>>, vector<1x6x128xbf16>,
    %c5 = arith.constant 5 : index
    %c0_2 = arith.constant 0 : index
    %c0_3 = arith.constant 0 : index
    %2 = vector.load %arg8[%c5, %c0_2, %c0_3] : memref<6x6x128xbf16, #tpu.memory_space<vmem>>, vector<1x6x128xbf16>
    tpu.vector_store %arg8[%c5, %c0_2, %c0_3], %0 {strides = array<i32>} : memref<6x6x128xbf16, #tpu.memory_space<vmem>>, vector<1x6x128xbf16>,
    %cst_4 = arith.constant 0.000000e+00 : bf16
    %3 = vector.broadcast %cst_4 : bf16 to vector<4x1x128xbf16>
    %c1 = arith.constant 1 : index
    %c0_5 = arith.constant 0 : index
    %c0_6 = arith.constant 0 : index
    %4 = vector.load %arg8[%c1, %c0_5, %c0_6] : memref<6x6x128xbf16, #tpu.memory_space<vmem>>, vector<4x1x128xbf16>
    tpu.vector_store %arg8[%c1, %c0_5, %c0_6], %3 {strides = array<i32>} : memref<6x6x128xbf16, #tpu.memory_space<vmem>>, vector<4x1x128xbf16>,
    %c1_7 = arith.constant 1 : index
    %c5_8 = arith.constant 5 : index
    %c0_9 = arith.constant 0 : index
    %5 = vector.load %arg8[%c1_7, %c5_8, %c0_9] : memref<6x6x128xbf16, #tpu.memory_space<vmem>>, vector<4x1x128xbf16>
    tpu.vector_store %arg8[%c1_7, %c5_8, %c0_9], %3 {strides = array<i32>} : memref<6x6x128xbf16, #tpu.memory_space<vmem>>, vector<4x1x128xbf16>,
    %cst_10 = arith.constant 0.000000e+00 : bf16
    %6 = vector.broadcast %cst_10 : bf16 to vector<1x6x256xbf16>
    %c0_11 = arith.constant 0 : index
    %c0_12 = arith.constant 0 : index
    %c0_13 = arith.constant 0 : index
    %7 = vector.load %arg9[%c0_11, %c0_12, %c0_13] : memref<6x6x256xbf16, #tpu.memory_space<vmem>>, vector<1x6x256xbf16>
    tpu.vector_store %arg9[%c0_11, %c0_12, %c0_13], %6 {strides = array<i32>} : memref<6x6x256xbf16, #tpu.memory_space<vmem>>, vector<1x6x256xbf16>,
    %c5_14 = arith.constant 5 : index
    %c0_15 = arith.constant 0 : index
    %c0_16 = arith.constant 0 : index
    %8 = vector.load %arg9[%c5_14, %c0_15, %c0_16] : memref<6x6x256xbf16, #tpu.memory_space<vmem>>, vector<1x6x256xbf16>
    tpu.vector_store %arg9[%c5_14, %c0_15, %c0_16], %6 {strides = array<i32>} : memref<6x6x256xbf16, #tpu.memory_space<vmem>>, vector<1x6x256xbf16>,
    %cst_17 = arith.constant 0.000000e+00 : bf16
    %9 = vector.broadcast %cst_17 : bf16 to vector<4x1x256xbf16>
    %c1_18 = arith.constant 1 : index
    %c0_19 = arith.constant 0 : index
    %c0_20 = arith.constant 0 : index
    %10 = vector.load %arg9[%c1_18, %c0_19, %c0_20] : memref<6x6x256xbf16, #tpu.memory_space<vmem>>, vector<4x1x256xbf16>
    tpu.vector_store %arg9[%c1_18, %c0_19, %c0_20], %9 {strides = array<i32>} : memref<6x6x256xbf16, #tpu.memory_space<vmem>>, vector<4x1x256xbf16>,
    %c1_21 = arith.constant 1 : index
    %c5_22 = arith.constant 5 : index
    %c0_23 = arith.constant 0 : index
    %11 = vector.load %arg9[%c1_21, %c5_22, %c0_23] : memref<6x6x256xbf16, #tpu.memory_space<vmem>>, vector<4x1x256xbf16>
    tpu.vector_store %arg9[%c1_21, %c5_22, %c0_23], %9 {strides = array<i32>} : memref<6x6x256xbf16, #tpu.memory_space<vmem>>, vector<4x1x256xbf16>,
    %cst_24 = arith.constant 0.000000e+00 : bf16
    %12 = vector.broadcast %cst_24 : bf16 to vector<1x6x256xbf16>
    %c0_25 = arith.constant 0 : index
    %c0_26 = arith.constant 0 : index
    %c0_27 = arith.constant 0 : index
    %13 = vector.load %arg10[%c0_25, %c0_26, %c0_27] : memref<6x6x256xbf16, #tpu.memory_space<vmem>>, vector<1x6x256xbf16>
    tpu.vector_store %arg10[%c0_25, %c0_26, %c0_27], %12 {strides = array<i32>} : memref<6x6x256xbf16, #tpu.memory_space<vmem>>, vector<1x6x256xbf16>,
    %c5_28 = arith.constant 5 : index
    %c0_29 = arith.constant 0 : index
    %c0_30 = arith.constant 0 : index
    %14 = vector.load %arg10[%c5_28, %c0_29, %c0_30] : memref<6x6x256xbf16, #tpu.memory_space<vmem>>, vector<1x6x256xbf16>
    tpu.vector_store %arg10[%c5_28, %c0_29, %c0_30], %12 {strides = array<i32>} : memref<6x6x256xbf16, #tpu.memory_space<vmem>>, vector<1x6x256xbf16>,
    %cst_31 = arith.constant 0.000000e+00 : bf16
    %15 = vector.broadcast %cst_31 : bf16 to vector<4x1x256xbf16>
    %c1_32 = arith.constant 1 : index
    %c0_33 = arith.constant 0 : index
    %c0_34 = arith.constant 0 : index
    %16 = vector.load %arg10[%c1_32, %c0_33, %c0_34] : memref<6x6x256xbf16, #tpu.memory_space<vmem>>, vector<4x1x256xbf16>
    tpu.vector_store %arg10[%c1_32, %c0_33, %c0_34], %15 {strides = array<i32>} : memref<6x6x256xbf16, #tpu.memory_space<vmem>>, vector<4x1x256xbf16>,
    %c1_35 = arith.constant 1 : index
    %c5_36 = arith.constant 5 : index
    %c0_37 = arith.constant 0 : index
    %17 = vector.load %arg10[%c1_35, %c5_36, %c0_37] : memref<6x6x256xbf16, #tpu.memory_space<vmem>>, vector<4x1x256xbf16>
    tpu.vector_store %arg10[%c1_35, %c5_36, %c0_37], %15 {strides = array<i32>} : memref<6x6x256xbf16, #tpu.memory_space<vmem>>, vector<4x1x256xbf16>,
    %c0_38 = arith.constant 0 : index
    %c0_39 = arith.constant 0 : index
    %c0_40 = arith.constant 0 : index
    %c0_41 = arith.constant 0 : index
    %18 = vector.load %arg1[%c0_38, %c0_39, %c0_40, %c0_41] : memref<1x4x4x128xbf16, #tpu.memory_space<vmem>>, vector<1x4x4x128xbf16>
    %19 = vector.shape_cast %18 : vector<1x4x4x128xbf16> to vector<4x4x128xbf16>
    %20 = vector.shape_cast %19 : vector<4x4x128xbf16> to vector<16x128xbf16>
    %c0_42 = arith.constant 0 : index
    %c0_43 = arith.constant 0 : index
    %c0_44 = arith.constant 0 : index
    %c0_45 = arith.constant 0 : index
    %21 = vector.load %arg1[%c0_42, %c0_43, %c0_44, %c0_45] : memref<1x4x4x128xbf16, #tpu.memory_space<vmem>>, vector<1x4x4x128xbf16>
    %22 = vector.shape_cast %21 : vector<1x4x4x128xbf16> to vector<4x4x128xbf16>
    %c1_46 = arith.constant 1 : index
    %c1_47 = arith.constant 1 : index
    %c0_48 = arith.constant 0 : index
    %23 = vector.load %arg8[%c1_46, %c1_47, %c0_48] : memref<6x6x128xbf16, #tpu.memory_space<vmem>>, vector<4x4x128xbf16>
    tpu.vector_store %arg8[%c1_46, %c1_47, %c0_48], %22 {strides = array<i32>} : memref<6x6x128xbf16, #tpu.memory_space<vmem>>, vector<4x4x128xbf16>,
    %c0_49 = arith.constant 0 : index
    %c0_50 = arith.constant 0 : index
    %c0_51 = arith.constant 0 : index
    %24 = vector.load %arg8[%c0_49, %c0_50, %c0_51] : memref<6x6x128xbf16, #tpu.memory_space<vmem>>, vector<6x4x128xbf16>
    %c0_52 = arith.constant 0 : index
    %c1_53 = arith.constant 1 : index
    %c0_54 = arith.constant 0 : index
    %25 = vector.load %arg8[%c0_52, %c1_53, %c0_54] : memref<6x6x128xbf16, #tpu.memory_space<vmem>>, vector<6x4x128xbf16>
    %c0_55 = arith.constant 0 : index
    %c2 = arith.constant 2 : index
    %c0_56 = arith.constant 0 : index
    %26 = vector.load %arg8[%c0_55, %c2, %c0_56] : memref<6x6x128xbf16, #tpu.memory_space<vmem>>, vector<6x4x128xbf16>
    %27 = vector.extract_strided_slice %24 {offsets = [0, 0, 0], sizes = [4, 4, 128], strides = [1, 1, 1]} : vector<6x4x128xbf16> to vector<4x4x128xbf16>
    %28 = vector.shape_cast %27 : vector<4x4x128xbf16> to vector<16x128xbf16>
    %c0_57 = arith.constant 0 : index
    %c0_58 = arith.constant 0 : index
    %c0_59 = arith.constant 0 : index
    %c0_60 = arith.constant 0 : index
    %29 = vector.load %arg2[%c0_57, %c0_58, %c0_59, %c0_60] : memref<3x3x128x256xbf16, #tpu.memory_space<vmem>>, vector<1x1x128x256xbf16>
    %30 = vector.shape_cast %29 : vector<1x1x128x256xbf16> to vector<128x256xbf16>
    %cst_61 = arith.constant dense<0.000000e+00> : vector<16x256xf32>
    %31 = tpu.matmul %28, %30, %cst_61 {dimension_numbers = #tpu.dot_dimension_numbers<[1], [0], [0], [1], [0, 0, 1, 1], [], []>} : vector<16x128xbf16>, vector<128x256xbf16>, vector<16x256xf32> -> vector<16x256xf32>
    %32 = vector.extract_strided_slice %25 {offsets = [0, 0, 0], sizes = [4, 4, 128], strides = [1, 1, 1]} : vector<6x4x128xbf16> to vector<4x4x128xbf16>
    %33 = vector.shape_cast %32 : vector<4x4x128xbf16> to vector<16x128xbf16>
    %c0_62 = arith.constant 0 : index
    %c1_63 = arith.constant 1 : index
    %c0_64 = arith.constant 0 : index
    %c0_65 = arith.constant 0 : index
    %34 = vector.load %arg2[%c0_62, %c1_63, %c0_64, %c0_65] : memref<3x3x128x256xbf16, #tpu.memory_space<vmem>>, vector<1x1x128x256xbf16>
    %35 = vector.shape_cast %34 : vector<1x1x128x256xbf16> to vector<128x256xbf16>
    %cst_66 = arith.constant dense<0.000000e+00> : vector<16x256xf32>
    %36 = tpu.matmul %33, %35, %cst_66 {dimension_numbers = #tpu.dot_dimension_numbers<[1], [0], [0], [1], [0, 0, 1, 1], [], []>} : vector<16x128xbf16>, vector<128x256xbf16>, vector<16x256xf32> -> vector<16x256xf32>
    %37 = arith.addf %31, %36 : vector<16x256xf32>
    %38 = vector.extract_strided_slice %26 {offsets = [0, 0, 0], sizes = [4, 4, 128], strides = [1, 1, 1]} : vector<6x4x128xbf16> to vector<4x4x128xbf16>
    %39 = vector.shape_cast %38 : vector<4x4x128xbf16> to vector<16x128xbf16>
    %c0_67 = arith.constant 0 : index
    %c2_68 = arith.constant 2 : index
    %c0_69 = arith.constant 0 : index
    %c0_70 = arith.constant 0 : index
    %40 = vector.load %arg2[%c0_67, %c2_68, %c0_69, %c0_70] : memref<3x3x128x256xbf16, #tpu.memory_space<vmem>>, vector<1x1x128x256xbf16>
    %41 = vector.shape_cast %40 : vector<1x1x128x256xbf16> to vector<128x256xbf16>
    %cst_71 = arith.constant dense<0.000000e+00> : vector<16x256xf32>
    %42 = tpu.matmul %39, %41, %cst_71 {dimension_numbers = #tpu.dot_dimension_numbers<[1], [0], [0], [1], [0, 0, 1, 1], [], []>} : vector<16x128xbf16>, vector<128x256xbf16>, vector<16x256xf32> -> vector<16x256xf32>
    %43 = arith.addf %37, %42 : vector<16x256xf32>
    %44 = vector.extract_strided_slice %24 {offsets = [1, 0, 0], sizes = [4, 4, 128], strides = [1, 1, 1]} : vector<6x4x128xbf16> to vector<4x4x128xbf16>
    %45 = vector.shape_cast %44 : vector<4x4x128xbf16> to vector<16x128xbf16>
    %c1_72 = arith.constant 1 : index
    %c0_73 = arith.constant 0 : index
    %c0_74 = arith.constant 0 : index
    %c0_75 = arith.constant 0 : index
    %46 = vector.load %arg2[%c1_72, %c0_73, %c0_74, %c0_75] : memref<3x3x128x256xbf16, #tpu.memory_space<vmem>>, vector<1x1x128x256xbf16>
    %47 = vector.shape_cast %46 : vector<1x1x128x256xbf16> to vector<128x256xbf16>
    %cst_76 = arith.constant dense<0.000000e+00> : vector<16x256xf32>
    %48 = tpu.matmul %45, %47, %cst_76 {dimension_numbers = #tpu.dot_dimension_numbers<[1], [0], [0], [1], [0, 0, 1, 1], [], []>} : vector<16x128xbf16>, vector<128x256xbf16>, vector<16x256xf32> -> vector<16x256xf32>
    %49 = arith.addf %43, %48 : vector<16x256xf32>
    %50 = vector.extract_strided_slice %25 {offsets = [1, 0, 0], sizes = [4, 4, 128], strides = [1, 1, 1]} : vector<6x4x128xbf16> to vector<4x4x128xbf16>
    %51 = vector.shape_cast %50 : vector<4x4x128xbf16> to vector<16x128xbf16>
    %c1_77 = arith.constant 1 : index
    %c1_78 = arith.constant 1 : index
    %c0_79 = arith.constant 0 : index
    %c0_80 = arith.constant 0 : index
    %52 = vector.load %arg2[%c1_77, %c1_78, %c0_79, %c0_80] : memref<3x3x128x256xbf16, #tpu.memory_space<vmem>>, vector<1x1x128x256xbf16>
    %53 = vector.shape_cast %52 : vector<1x1x128x256xbf16> to vector<128x256xbf16>
    %cst_81 = arith.constant dense<0.000000e+00> : vector<16x256xf32>
    %54 = tpu.matmul %51, %53, %cst_81 {dimension_numbers = #tpu.dot_dimension_numbers<[1], [0], [0], [1], [0, 0, 1, 1], [], []>} : vector<16x128xbf16>, vector<128x256xbf16>, vector<16x256xf32> -> vector<16x256xf32>
    %55 = arith.addf %49, %54 : vector<16x256xf32>
    %56 = vector.extract_strided_slice %26 {offsets = [1, 0, 0], sizes = [4, 4, 128], strides = [1, 1, 1]} : vector<6x4x128xbf16> to vector<4x4x128xbf16>
    %57 = vector.shape_cast %56 : vector<4x4x128xbf16> to vector<16x128xbf16>
    %c1_82 = arith.constant 1 : index
    %c2_83 = arith.constant 2 : index
    %c0_84 = arith.constant 0 : index
    %c0_85 = arith.constant 0 : index
    %58 = vector.load %arg2[%c1_82, %c2_83, %c0_84, %c0_85] : memref<3x3x128x256xbf16, #tpu.memory_space<vmem>>, vector<1x1x128x256xbf16>
    %59 = vector.shape_cast %58 : vector<1x1x128x256xbf16> to vector<128x256xbf16>
    %cst_86 = arith.constant dense<0.000000e+00> : vector<16x256xf32>
    %60 = tpu.matmul %57, %59, %cst_86 {dimension_numbers = #tpu.dot_dimension_numbers<[1], [0], [0], [1], [0, 0, 1, 1], [], []>} : vector<16x128xbf16>, vector<128x256xbf16>, vector<16x256xf32> -> vector<16x256xf32>
    %61 = arith.addf %55, %60 : vector<16x256xf32>
    %62 = vector.extract_strided_slice %24 {offsets = [2, 0, 0], sizes = [4, 4, 128], strides = [1, 1, 1]} : vector<6x4x128xbf16> to vector<4x4x128xbf16>
    %63 = vector.shape_cast %62 : vector<4x4x128xbf16> to vector<16x128xbf16>
    %c2_87 = arith.constant 2 : index
    %c0_88 = arith.constant 0 : index
    %c0_89 = arith.constant 0 : index
    %c0_90 = arith.constant 0 : index
    %64 = vector.load %arg2[%c2_87, %c0_88, %c0_89, %c0_90] : memref<3x3x128x256xbf16, #tpu.memory_space<vmem>>, vector<1x1x128x256xbf16>
    %65 = vector.shape_cast %64 : vector<1x1x128x256xbf16> to vector<128x256xbf16>
    %cst_91 = arith.constant dense<0.000000e+00> : vector<16x256xf32>
    %66 = tpu.matmul %63, %65, %cst_91 {dimension_numbers = #tpu.dot_dimension_numbers<[1], [0], [0], [1], [0, 0, 1, 1], [], []>} : vector<16x128xbf16>, vector<128x256xbf16>, vector<16x256xf32> -> vector<16x256xf32>
    %67 = arith.addf %61, %66 : vector<16x256xf32>
    %68 = vector.extract_strided_slice %25 {offsets = [2, 0, 0], sizes = [4, 4, 128], strides = [1, 1, 1]} : vector<6x4x128xbf16> to vector<4x4x128xbf16>
    %69 = vector.shape_cast %68 : vector<4x4x128xbf16> to vector<16x128xbf16>
    %c2_92 = arith.constant 2 : index
    %c1_93 = arith.constant 1 : index
    %c0_94 = arith.constant 0 : index
    %c0_95 = arith.constant 0 : index
    %70 = vector.load %arg2[%c2_92, %c1_93, %c0_94, %c0_95] : memref<3x3x128x256xbf16, #tpu.memory_space<vmem>>, vector<1x1x128x256xbf16>
    %71 = vector.shape_cast %70 : vector<1x1x128x256xbf16> to vector<128x256xbf16>
    %cst_96 = arith.constant dense<0.000000e+00> : vector<16x256xf32>
    %72 = tpu.matmul %69, %71, %cst_96 {dimension_numbers = #tpu.dot_dimension_numbers<[1], [0], [0], [1], [0, 0, 1, 1], [], []>} : vector<16x128xbf16>, vector<128x256xbf16>, vector<16x256xf32> -> vector<16x256xf32>
    %73 = arith.addf %67, %72 : vector<16x256xf32>
    %74 = vector.extract_strided_slice %26 {offsets = [2, 0, 0], sizes = [4, 4, 128], strides = [1, 1, 1]} : vector<6x4x128xbf16> to vector<4x4x128xbf16>
    %75 = vector.shape_cast %74 : vector<4x4x128xbf16> to vector<16x128xbf16>
    %c2_97 = arith.constant 2 : index
    %c2_98 = arith.constant 2 : index
    %c0_99 = arith.constant 0 : index
    %c0_100 = arith.constant 0 : index
    %76 = vector.load %arg2[%c2_97, %c2_98, %c0_99, %c0_100] : memref<3x3x128x256xbf16, #tpu.memory_space<vmem>>, vector<1x1x128x256xbf16>
    %77 = vector.shape_cast %76 : vector<1x1x128x256xbf16> to vector<128x256xbf16>
    %cst_101 = arith.constant dense<0.000000e+00> : vector<16x256xf32>
    %78 = tpu.matmul %75, %77, %cst_101 {dimension_numbers = #tpu.dot_dimension_numbers<[1], [0], [0], [1], [0, 0, 1, 1], [], []>} : vector<16x128xbf16>, vector<128x256xbf16>, vector<16x256xf32> -> vector<16x256xf32>
    %79 = arith.addf %73, %78 : vector<16x256xf32>
    %cst_102 = arith.constant 0.000000e+00 : f32
    %80 = vector.broadcast %cst_102 : f32 to vector<16x256xf32>
    %81 = arith.maximumf %79, %80 : vector<16x256xf32>
    %82 = arith.truncf %81 : vector<16x256xf32> to vector<16x256xbf16>
    %83 = vector.shape_cast %82 : vector<16x256xbf16> to vector<4x4x256xbf16>
    %c1_103 = arith.constant 1 : index
    %c1_104 = arith.constant 1 : index
    %c0_105 = arith.constant 0 : index
    %84 = vector.load %arg9[%c1_103, %c1_104, %c0_105] : memref<6x6x256xbf16, #tpu.memory_space<vmem>>, vector<4x4x256xbf16>
    tpu.vector_store %arg9[%c1_103, %c1_104, %c0_105], %83 {strides = array<i32>} : memref<6x6x256xbf16, #tpu.memory_space<vmem>>, vector<4x4x256xbf16>,
    %c0_106 = arith.constant 0 : index
    %c0_107 = arith.constant 0 : index
    %c0_108 = arith.constant 0 : index
    %85 = vector.load %arg9[%c0_106, %c0_107, %c0_108] : memref<6x6x256xbf16, #tpu.memory_space<vmem>>, vector<6x4x256xbf16>
    %c0_109 = arith.constant 0 : index
    %c1_110 = arith.constant 1 : index
    %c0_111 = arith.constant 0 : index
    %86 = vector.load %arg9[%c0_109, %c1_110, %c0_111] : memref<6x6x256xbf16, #tpu.memory_space<vmem>>, vector<6x4x256xbf16>
    %c0_112 = arith.constant 0 : index
    %c2_113 = arith.constant 2 : index
    %c0_114 = arith.constant 0 : index
    %87 = vector.load %arg9[%c0_112, %c2_113, %c0_114] : memref<6x6x256xbf16, #tpu.memory_space<vmem>>, vector<6x4x256xbf16>
    %88 = vector.extract_strided_slice %85 {offsets = [0, 0, 0], sizes = [4, 4, 256], strides = [1, 1, 1]} : vector<6x4x256xbf16> to vector<4x4x256xbf16>
    %89 = vector.shape_cast %88 : vector<4x4x256xbf16> to vector<16x256xbf16>
    %c0_115 = arith.constant 0 : index
    %c0_116 = arith.constant 0 : index
    %c0_117 = arith.constant 0 : index
    %c0_118 = arith.constant 0 : index
    %90 = vector.load %arg3[%c0_115, %c0_116, %c0_117, %c0_118] : memref<3x3x256x256xbf16, #tpu.memory_space<vmem>>, vector<1x1x256x256xbf16>
    %91 = vector.shape_cast %90 : vector<1x1x256x256xbf16> to vector<256x256xbf16>
    %cst_119 = arith.constant dense<0.000000e+00> : vector<16x256xf32>
    %92 = tpu.matmul %89, %91, %cst_119 {dimension_numbers = #tpu.dot_dimension_numbers<[1], [0], [0], [1], [0, 0, 1, 1], [], []>} : vector<16x256xbf16>, vector<256x256xbf16>, vector<16x256xf32> -> vector<16x256xf32>
    %93 = vector.extract_strided_slice %86 {offsets = [0, 0, 0], sizes = [4, 4, 256], strides = [1, 1, 1]} : vector<6x4x256xbf16> to vector<4x4x256xbf16>
    %94 = vector.shape_cast %93 : vector<4x4x256xbf16> to vector<16x256xbf16>
    %c0_120 = arith.constant 0 : index
    %c1_121 = arith.constant 1 : index
    %c0_122 = arith.constant 0 : index
    %c0_123 = arith.constant 0 : index
    %95 = vector.load %arg3[%c0_120, %c1_121, %c0_122, %c0_123] : memref<3x3x256x256xbf16, #tpu.memory_space<vmem>>, vector<1x1x256x256xbf16>
    %96 = vector.shape_cast %95 : vector<1x1x256x256xbf16> to vector<256x256xbf16>
    %cst_124 = arith.constant dense<0.000000e+00> : vector<16x256xf32>
    %97 = tpu.matmul %94, %96, %cst_124 {dimension_numbers = #tpu.dot_dimension_numbers<[1], [0], [0], [1], [0, 0, 1, 1], [], []>} : vector<16x256xbf16>, vector<256x256xbf16>, vector<16x256xf32> -> vector<16x256xf32>
    %98 = arith.addf %92, %97 : vector<16x256xf32>
    %99 = vector.extract_strided_slice %87 {offsets = [0, 0, 0], sizes = [4, 4, 256], strides = [1, 1, 1]} : vector<6x4x256xbf16> to vector<4x4x256xbf16>
    %100 = vector.shape_cast %99 : vector<4x4x256xbf16> to vector<16x256xbf16>
    %c0_125 = arith.constant 0 : index
    %c2_126 = arith.constant 2 : index
    %c0_127 = arith.constant 0 : index
    %c0_128 = arith.constant 0 : index
    %101 = vector.load %arg3[%c0_125, %c2_126, %c0_127, %c0_128] : memref<3x3x256x256xbf16, #tpu.memory_space<vmem>>, vector<1x1x256x256xbf16>
    %102 = vector.shape_cast %101 : vector<1x1x256x256xbf16> to vector<256x256xbf16>
    %cst_129 = arith.constant dense<0.000000e+00> : vector<16x256xf32>
    %103 = tpu.matmul %100, %102, %cst_129 {dimension_numbers = #tpu.dot_dimension_numbers<[1], [0], [0], [1], [0, 0, 1, 1], [], []>} : vector<16x256xbf16>, vector<256x256xbf16>, vector<16x256xf32> -> vector<16x256xf32>
    %104 = arith.addf %98, %103 : vector<16x256xf32>
    %105 = vector.extract_strided_slice %85 {offsets = [1, 0, 0], sizes = [4, 4, 256], strides = [1, 1, 1]} : vector<6x4x256xbf16> to vector<4x4x256xbf16>
    %106 = vector.shape_cast %105 : vector<4x4x256xbf16> to vector<16x256xbf16>
    %c1_130 = arith.constant 1 : index
    %c0_131 = arith.constant 0 : index
    %c0_132 = arith.constant 0 : index
    %c0_133 = arith.constant 0 : index
    %107 = vector.load %arg3[%c1_130, %c0_131, %c0_132, %c0_133] : memref<3x3x256x256xbf16, #tpu.memory_space<vmem>>, vector<1x1x256x256xbf16>
    %108 = vector.shape_cast %107 : vector<1x1x256x256xbf16> to vector<256x256xbf16>
    %cst_134 = arith.constant dense<0.000000e+00> : vector<16x256xf32>
    %109 = tpu.matmul %106, %108, %cst_134 {dimension_numbers = #tpu.dot_dimension_numbers<[1], [0], [0], [1], [0, 0, 1, 1], [], []>} : vector<16x256xbf16>, vector<256x256xbf16>, vector<16x256xf32> -> vector<16x256xf32>
    %110 = arith.addf %104, %109 : vector<16x256xf32>
    %111 = vector.extract_strided_slice %86 {offsets = [1, 0, 0], sizes = [4, 4, 256], strides = [1, 1, 1]} : vector<6x4x256xbf16> to vector<4x4x256xbf16>
    %112 = vector.shape_cast %111 : vector<4x4x256xbf16> to vector<16x256xbf16>
    %c1_135 = arith.constant 1 : index
    %c1_136 = arith.constant 1 : index
    %c0_137 = arith.constant 0 : index
    %c0_138 = arith.constant 0 : index
    %113 = vector.load %arg3[%c1_135, %c1_136, %c0_137, %c0_138] : memref<3x3x256x256xbf16, #tpu.memory_space<vmem>>, vector<1x1x256x256xbf16>
    %114 = vector.shape_cast %113 : vector<1x1x256x256xbf16> to vector<256x256xbf16>
    %cst_139 = arith.constant dense<0.000000e+00> : vector<16x256xf32>
    %115 = tpu.matmul %112, %114, %cst_139 {dimension_numbers = #tpu.dot_dimension_numbers<[1], [0], [0], [1], [0, 0, 1, 1], [], []>} : vector<16x256xbf16>, vector<256x256xbf16>, vector<16x256xf32> -> vector<16x256xf32>
    %116 = arith.addf %110, %115 : vector<16x256xf32>
    %117 = vector.extract_strided_slice %87 {offsets = [1, 0, 0], sizes = [4, 4, 256], strides = [1, 1, 1]} : vector<6x4x256xbf16> to vector<4x4x256xbf16>
    %118 = vector.shape_cast %117 : vector<4x4x256xbf16> to vector<16x256xbf16>
    %c1_140 = arith.constant 1 : index
    %c2_141 = arith.constant 2 : index
    %c0_142 = arith.constant 0 : index
    %c0_143 = arith.constant 0 : index
    %119 = vector.load %arg3[%c1_140, %c2_141, %c0_142, %c0_143] : memref<3x3x256x256xbf16, #tpu.memory_space<vmem>>, vector<1x1x256x256xbf16>
    %120 = vector.shape_cast %119 : vector<1x1x256x256xbf16> to vector<256x256xbf16>
    %cst_144 = arith.constant dense<0.000000e+00> : vector<16x256xf32>
    %121 = tpu.matmul %118, %120, %cst_144 {dimension_numbers = #tpu.dot_dimension_numbers<[1], [0], [0], [1], [0, 0, 1, 1], [], []>} : vector<16x256xbf16>, vector<256x256xbf16>, vector<16x256xf32> -> vector<16x256xf32>
    %122 = arith.addf %116, %121 : vector<16x256xf32>
    %123 = vector.extract_strided_slice %85 {offsets = [2, 0, 0], sizes = [4, 4, 256], strides = [1, 1, 1]} : vector<6x4x256xbf16> to vector<4x4x256xbf16>
    %124 = vector.shape_cast %123 : vector<4x4x256xbf16> to vector<16x256xbf16>
    %c2_145 = arith.constant 2 : index
    %c0_146 = arith.constant 0 : index
    %c0_147 = arith.constant 0 : index
    %c0_148 = arith.constant 0 : index
    %125 = vector.load %arg3[%c2_145, %c0_146, %c0_147, %c0_148] : memref<3x3x256x256xbf16, #tpu.memory_space<vmem>>, vector<1x1x256x256xbf16>
    %126 = vector.shape_cast %125 : vector<1x1x256x256xbf16> to vector<256x256xbf16>
    %cst_149 = arith.constant dense<0.000000e+00> : vector<16x256xf32>
    %127 = tpu.matmul %124, %126, %cst_149 {dimension_numbers = #tpu.dot_dimension_numbers<[1], [0], [0], [1], [0, 0, 1, 1], [], []>} : vector<16x256xbf16>, vector<256x256xbf16>, vector<16x256xf32> -> vector<16x256xf32>
    %128 = arith.addf %122, %127 : vector<16x256xf32>
    %129 = vector.extract_strided_slice %86 {offsets = [2, 0, 0], sizes = [4, 4, 256], strides = [1, 1, 1]} : vector<6x4x256xbf16> to vector<4x4x256xbf16>
    %130 = vector.shape_cast %129 : vector<4x4x256xbf16> to vector<16x256xbf16>
    %c2_150 = arith.constant 2 : index
    %c1_151 = arith.constant 1 : index
    %c0_152 = arith.constant 0 : index
    %c0_153 = arith.constant 0 : index
    %131 = vector.load %arg3[%c2_150, %c1_151, %c0_152, %c0_153] : memref<3x3x256x256xbf16, #tpu.memory_space<vmem>>, vector<1x1x256x256xbf16>
    %132 = vector.shape_cast %131 : vector<1x1x256x256xbf16> to vector<256x256xbf16>
    %cst_154 = arith.constant dense<0.000000e+00> : vector<16x256xf32>
    %133 = tpu.matmul %130, %132, %cst_154 {dimension_numbers = #tpu.dot_dimension_numbers<[1], [0], [0], [1], [0, 0, 1, 1], [], []>} : vector<16x256xbf16>, vector<256x256xbf16>, vector<16x256xf32> -> vector<16x256xf32>
    %134 = arith.addf %128, %133 : vector<16x256xf32>
    %135 = vector.extract_strided_slice %87 {offsets = [2, 0, 0], sizes = [4, 4, 256], strides = [1, 1, 1]} : vector<6x4x256xbf16> to vector<4x4x256xbf16>
    %136 = vector.shape_cast %135 : vector<4x4x256xbf16> to vector<16x256xbf16>
    %c2_155 = arith.constant 2 : index
    %c2_156 = arith.constant 2 : index
    %c0_157 = arith.constant 0 : index
    %c0_158 = arith.constant 0 : index
    %137 = vector.load %arg3[%c2_155, %c2_156, %c0_157, %c0_158] : memref<3x3x256x256xbf16, #tpu.memory_space<vmem>>, vector<1x1x256x256xbf16>
    %138 = vector.shape_cast %137 : vector<1x1x256x256xbf16> to vector<256x256xbf16>
    %cst_159 = arith.constant dense<0.000000e+00> : vector<16x256xf32>
    %139 = tpu.matmul %136, %138, %cst_159 {dimension_numbers = #tpu.dot_dimension_numbers<[1], [0], [0], [1], [0, 0, 1, 1], [], []>} : vector<16x256xbf16>, vector<256x256xbf16>, vector<16x256xf32> -> vector<16x256xf32>
    %140 = arith.addf %134, %139 : vector<16x256xf32>
    %c0_160 = arith.constant 0 : index
    %c0_161 = arith.constant 0 : index
    %141 = vector.load %arg4[%c0_160, %c0_161] : memref<128x256xbf16, #tpu.memory_space<vmem>>, vector<128x256xbf16>
    %cst_162 = arith.constant dense<0.000000e+00> : vector<16x256xf32>
    %142 = tpu.matmul %20, %141, %cst_162 {dimension_numbers = #tpu.dot_dimension_numbers<[1], [0], [0], [1], [0, 0, 1, 1], [], []>} : vector<16x128xbf16>, vector<128x256xbf16>, vector<16x256xf32> -> vector<16x256xf32>
    %143 = arith.addf %140, %142 : vector<16x256xf32>
    %cst_163 = arith.constant 0.000000e+00 : f32
    %144 = vector.broadcast %cst_163 : f32 to vector<16x256xf32>
    %145 = arith.maximumf %143, %144 : vector<16x256xf32>
    %146 = arith.truncf %145 : vector<16x256xf32> to vector<16x256xbf16>
    %147 = vector.shape_cast %146 : vector<16x256xbf16> to vector<4x4x256xbf16>
    %c1_164 = arith.constant 1 : index
    %c1_165 = arith.constant 1 : index
    %c0_166 = arith.constant 0 : index
    %148 = vector.load %arg10[%c1_164, %c1_165, %c0_166] : memref<6x6x256xbf16, #tpu.memory_space<vmem>>, vector<4x4x256xbf16>
    tpu.vector_store %arg10[%c1_164, %c1_165, %c0_166], %147 {strides = array<i32>} : memref<6x6x256xbf16, #tpu.memory_space<vmem>>, vector<4x4x256xbf16>,
    %c0_167 = arith.constant 0 : index
    %c0_168 = arith.constant 0 : index
    %c0_169 = arith.constant 0 : index
    %149 = vector.load %arg10[%c0_167, %c0_168, %c0_169] : memref<6x6x256xbf16, #tpu.memory_space<vmem>>, vector<6x4x256xbf16>
    %c0_170 = arith.constant 0 : index
    %c1_171 = arith.constant 1 : index
    %c0_172 = arith.constant 0 : index
    %150 = vector.load %arg10[%c0_170, %c1_171, %c0_172] : memref<6x6x256xbf16, #tpu.memory_space<vmem>>, vector<6x4x256xbf16>
    %c0_173 = arith.constant 0 : index
    %c2_174 = arith.constant 2 : index
    %c0_175 = arith.constant 0 : index
    %151 = vector.load %arg10[%c0_173, %c2_174, %c0_175] : memref<6x6x256xbf16, #tpu.memory_space<vmem>>, vector<6x4x256xbf16>
    %152 = vector.extract_strided_slice %149 {offsets = [0, 0, 0], sizes = [4, 4, 256], strides = [1, 1, 1]} : vector<6x4x256xbf16> to vector<4x4x256xbf16>
    %153 = vector.shape_cast %152 : vector<4x4x256xbf16> to vector<16x256xbf16>
    %c0_176 = arith.constant 0 : index
    %c0_177 = arith.constant 0 : index
    %c0_178 = arith.constant 0 : index
    %c0_179 = arith.constant 0 : index
    %154 = vector.load %arg5[%c0_176, %c0_177, %c0_178, %c0_179] : memref<3x3x256x256xbf16, #tpu.memory_space<vmem>>, vector<1x1x256x256xbf16>
    %155 = vector.shape_cast %154 : vector<1x1x256x256xbf16> to vector<256x256xbf16>
    %cst_180 = arith.constant dense<0.000000e+00> : vector<16x256xf32>
    %156 = tpu.matmul %153, %155, %cst_180 {dimension_numbers = #tpu.dot_dimension_numbers<[1], [0], [0], [1], [0, 0, 1, 1], [], []>} : vector<16x256xbf16>, vector<256x256xbf16>, vector<16x256xf32> -> vector<16x256xf32>
    %157 = vector.extract_strided_slice %150 {offsets = [0, 0, 0], sizes = [4, 4, 256], strides = [1, 1, 1]} : vector<6x4x256xbf16> to vector<4x4x256xbf16>
    %158 = vector.shape_cast %157 : vector<4x4x256xbf16> to vector<16x256xbf16>
    %c0_181 = arith.constant 0 : index
    %c1_182 = arith.constant 1 : index
    %c0_183 = arith.constant 0 : index
    %c0_184 = arith.constant 0 : index
    %159 = vector.load %arg5[%c0_181, %c1_182, %c0_183, %c0_184] : memref<3x3x256x256xbf16, #tpu.memory_space<vmem>>, vector<1x1x256x256xbf16>
    %160 = vector.shape_cast %159 : vector<1x1x256x256xbf16> to vector<256x256xbf16>
    %cst_185 = arith.constant dense<0.000000e+00> : vector<16x256xf32>
    %161 = tpu.matmul %158, %160, %cst_185 {dimension_numbers = #tpu.dot_dimension_numbers<[1], [0], [0], [1], [0, 0, 1, 1], [], []>} : vector<16x256xbf16>, vector<256x256xbf16>, vector<16x256xf32> -> vector<16x256xf32>
    %162 = arith.addf %156, %161 : vector<16x256xf32>
    %163 = vector.extract_strided_slice %151 {offsets = [0, 0, 0], sizes = [4, 4, 256], strides = [1, 1, 1]} : vector<6x4x256xbf16> to vector<4x4x256xbf16>
    %164 = vector.shape_cast %163 : vector<4x4x256xbf16> to vector<16x256xbf16>
    %c0_186 = arith.constant 0 : index
    %c2_187 = arith.constant 2 : index
    %c0_188 = arith.constant 0 : index
    %c0_189 = arith.constant 0 : index
    %165 = vector.load %arg5[%c0_186, %c2_187, %c0_188, %c0_189] : memref<3x3x256x256xbf16, #tpu.memory_space<vmem>>, vector<1x1x256x256xbf16>
    %166 = vector.shape_cast %165 : vector<1x1x256x256xbf16> to vector<256x256xbf16>
    %cst_190 = arith.constant dense<0.000000e+00> : vector<16x256xf32>
    %167 = tpu.matmul %164, %166, %cst_190 {dimension_numbers = #tpu.dot_dimension_numbers<[1], [0], [0], [1], [0, 0, 1, 1], [], []>} : vector<16x256xbf16>, vector<256x256xbf16>, vector<16x256xf32> -> vector<16x256xf32>
    %168 = arith.addf %162, %167 : vector<16x256xf32>
    %169 = vector.extract_strided_slice %149 {offsets = [1, 0, 0], sizes = [4, 4, 256], strides = [1, 1, 1]} : vector<6x4x256xbf16> to vector<4x4x256xbf16>
    %170 = vector.shape_cast %169 : vector<4x4x256xbf16> to vector<16x256xbf16>
    %c1_191 = arith.constant 1 : index
    %c0_192 = arith.constant 0 : index
    %c0_193 = arith.constant 0 : index
    %c0_194 = arith.constant 0 : index
    %171 = vector.load %arg5[%c1_191, %c0_192, %c0_193, %c0_194] : memref<3x3x256x256xbf16, #tpu.memory_space<vmem>>, vector<1x1x256x256xbf16>
    %172 = vector.shape_cast %171 : vector<1x1x256x256xbf16> to vector<256x256xbf16>
    %cst_195 = arith.constant dense<0.000000e+00> : vector<16x256xf32>
    %173 = tpu.matmul %170, %172, %cst_195 {dimension_numbers = #tpu.dot_dimension_numbers<[1], [0], [0], [1], [0, 0, 1, 1], [], []>} : vector<16x256xbf16>, vector<256x256xbf16>, vector<16x256xf32> -> vector<16x256xf32>
    %174 = arith.addf %168, %173 : vector<16x256xf32>
    %175 = vector.extract_strided_slice %150 {offsets = [1, 0, 0], sizes = [4, 4, 256], strides = [1, 1, 1]} : vector<6x4x256xbf16> to vector<4x4x256xbf16>
    %176 = vector.shape_cast %175 : vector<4x4x256xbf16> to vector<16x256xbf16>
    %c1_196 = arith.constant 1 : index
    %c1_197 = arith.constant 1 : index
    %c0_198 = arith.constant 0 : index
    %c0_199 = arith.constant 0 : index
    %177 = vector.load %arg5[%c1_196, %c1_197, %c0_198, %c0_199] : memref<3x3x256x256xbf16, #tpu.memory_space<vmem>>, vector<1x1x256x256xbf16>
    %178 = vector.shape_cast %177 : vector<1x1x256x256xbf16> to vector<256x256xbf16>
    %cst_200 = arith.constant dense<0.000000e+00> : vector<16x256xf32>
    %179 = tpu.matmul %176, %178, %cst_200 {dimension_numbers = #tpu.dot_dimension_numbers<[1], [0], [0], [1], [0, 0, 1, 1], [], []>} : vector<16x256xbf16>, vector<256x256xbf16>, vector<16x256xf32> -> vector<16x256xf32>
    %180 = arith.addf %174, %179 : vector<16x256xf32>
    %181 = vector.extract_strided_slice %151 {offsets = [1, 0, 0], sizes = [4, 4, 256], strides = [1, 1, 1]} : vector<6x4x256xbf16> to vector<4x4x256xbf16>
    %182 = vector.shape_cast %181 : vector<4x4x256xbf16> to vector<16x256xbf16>
    %c1_201 = arith.constant 1 : index
    %c2_202 = arith.constant 2 : index
    %c0_203 = arith.constant 0 : index
    %c0_204 = arith.constant 0 : index
    %183 = vector.load %arg5[%c1_201, %c2_202, %c0_203, %c0_204] : memref<3x3x256x256xbf16, #tpu.memory_space<vmem>>, vector<1x1x256x256xbf16>
    %184 = vector.shape_cast %183 : vector<1x1x256x256xbf16> to vector<256x256xbf16>
    %cst_205 = arith.constant dense<0.000000e+00> : vector<16x256xf32>
    %185 = tpu.matmul %182, %184, %cst_205 {dimension_numbers = #tpu.dot_dimension_numbers<[1], [0], [0], [1], [0, 0, 1, 1], [], []>} : vector<16x256xbf16>, vector<256x256xbf16>, vector<16x256xf32> -> vector<16x256xf32>
    %186 = arith.addf %180, %185 : vector<16x256xf32>
    %187 = vector.extract_strided_slice %149 {offsets = [2, 0, 0], sizes = [4, 4, 256], strides = [1, 1, 1]} : vector<6x4x256xbf16> to vector<4x4x256xbf16>
    %188 = vector.shape_cast %187 : vector<4x4x256xbf16> to vector<16x256xbf16>
    %c2_206 = arith.constant 2 : index
    %c0_207 = arith.constant 0 : index
    %c0_208 = arith.constant 0 : index
    %c0_209 = arith.constant 0 : index
    %189 = vector.load %arg5[%c2_206, %c0_207, %c0_208, %c0_209] : memref<3x3x256x256xbf16, #tpu.memory_space<vmem>>, vector<1x1x256x256xbf16>
    %190 = vector.shape_cast %189 : vector<1x1x256x256xbf16> to vector<256x256xbf16>
    %cst_210 = arith.constant dense<0.000000e+00> : vector<16x256xf32>
    %191 = tpu.matmul %188, %190, %cst_210 {dimension_numbers = #tpu.dot_dimension_numbers<[1], [0], [0], [1], [0, 0, 1, 1], [], []>} : vector<16x256xbf16>, vector<256x256xbf16>, vector<16x256xf32> -> vector<16x256xf32>
    %192 = arith.addf %186, %191 : vector<16x256xf32>
    %193 = vector.extract_strided_slice %150 {offsets = [2, 0, 0], sizes = [4, 4, 256], strides = [1, 1, 1]} : vector<6x4x256xbf16> to vector<4x4x256xbf16>
    %194 = vector.shape_cast %193 : vector<4x4x256xbf16> to vector<16x256xbf16>
    %c2_211 = arith.constant 2 : index
    %c1_212 = arith.constant 1 : index
    %c0_213 = arith.constant 0 : index
    %c0_214 = arith.constant 0 : index
    %195 = vector.load %arg5[%c2_211, %c1_212, %c0_213, %c0_214] : memref<3x3x256x256xbf16, #tpu.memory_space<vmem>>, vector<1x1x256x256xbf16>
    %196 = vector.shape_cast %195 : vector<1x1x256x256xbf16> to vector<256x256xbf16>
    %cst_215 = arith.constant dense<0.000000e+00> : vector<16x256xf32>
    %197 = tpu.matmul %194, %196, %cst_215 {dimension_numbers = #tpu.dot_dimension_numbers<[1], [0], [0], [1], [0, 0, 1, 1], [], []>} : vector<16x256xbf16>, vector<256x256xbf16>, vector<16x256xf32> -> vector<16x256xf32>
    %198 = arith.addf %192, %197 : vector<16x256xf32>
    %199 = vector.extract_strided_slice %151 {offsets = [2, 0, 0], sizes = [4, 4, 256], strides = [1, 1, 1]} : vector<6x4x256xbf16> to vector<4x4x256xbf16>
    %200 = vector.shape_cast %199 : vector<4x4x256xbf16> to vector<16x256xbf16>
    %c2_216 = arith.constant 2 : index
    %c2_217 = arith.constant 2 : index
    %c0_218 = arith.constant 0 : index
    %c0_219 = arith.constant 0 : index
    %201 = vector.load %arg5[%c2_216, %c2_217, %c0_218, %c0_219] : memref<3x3x256x256xbf16, #tpu.memory_space<vmem>>, vector<1x1x256x256xbf16>
    %202 = vector.shape_cast %201 : vector<1x1x256x256xbf16> to vector<256x256xbf16>
    %cst_220 = arith.constant dense<0.000000e+00> : vector<16x256xf32>
    %203 = tpu.matmul %200, %202, %cst_220 {dimension_numbers = #tpu.dot_dimension_numbers<[1], [0], [0], [1], [0, 0, 1, 1], [], []>} : vector<16x256xbf16>, vector<256x256xbf16>, vector<16x256xf32> -> vector<16x256xf32>
    %204 = arith.addf %198, %203 : vector<16x256xf32>
    %cst_221 = arith.constant 0.000000e+00 : f32
    %205 = vector.broadcast %cst_221 : f32 to vector<16x256xf32>
    %206 = arith.maximumf %204, %205 : vector<16x256xf32>
    %207 = arith.truncf %206 : vector<16x256xf32> to vector<16x256xbf16>
    %208 = vector.shape_cast %207 : vector<16x256xbf16> to vector<4x4x256xbf16>
    %c1_222 = arith.constant 1 : index
    %c1_223 = arith.constant 1 : index
    %c0_224 = arith.constant 0 : index
    %209 = vector.load %arg9[%c1_222, %c1_223, %c0_224] : memref<6x6x256xbf16, #tpu.memory_space<vmem>>, vector<4x4x256xbf16>
    tpu.vector_store %arg9[%c1_222, %c1_223, %c0_224], %208 {strides = array<i32>} : memref<6x6x256xbf16, #tpu.memory_space<vmem>>, vector<4x4x256xbf16>,
    %c0_225 = arith.constant 0 : index
    %c0_226 = arith.constant 0 : index
    %c0_227 = arith.constant 0 : index
    %210 = vector.load %arg9[%c0_225, %c0_226, %c0_227] : memref<6x6x256xbf16, #tpu.memory_space<vmem>>, vector<6x4x256xbf16>
    %c0_228 = arith.constant 0 : index
    %c1_229 = arith.constant 1 : index
    %c0_230 = arith.constant 0 : index
    %211 = vector.load %arg9[%c0_228, %c1_229, %c0_230] : memref<6x6x256xbf16, #tpu.memory_space<vmem>>, vector<6x4x256xbf16>
    %c0_231 = arith.constant 0 : index
    %c2_232 = arith.constant 2 : index
    %c0_233 = arith.constant 0 : index
    %212 = vector.load %arg9[%c0_231, %c2_232, %c0_233] : memref<6x6x256xbf16, #tpu.memory_space<vmem>>, vector<6x4x256xbf16>
    %213 = vector.extract_strided_slice %210 {offsets = [0, 0, 0], sizes = [4, 4, 256], strides = [1, 1, 1]} : vector<6x4x256xbf16> to vector<4x4x256xbf16>
    %214 = vector.shape_cast %213 : vector<4x4x256xbf16> to vector<16x256xbf16>
    %c0_234 = arith.constant 0 : index
    %c0_235 = arith.constant 0 : index
    %c0_236 = arith.constant 0 : index
    %c0_237 = arith.constant 0 : index
    %215 = vector.load %arg6[%c0_234, %c0_235, %c0_236, %c0_237] : memref<3x3x256x256xbf16, #tpu.memory_space<vmem>>, vector<1x1x256x256xbf16>
    %216 = vector.shape_cast %215 : vector<1x1x256x256xbf16> to vector<256x256xbf16>
    %cst_238 = arith.constant dense<0.000000e+00> : vector<16x256xf32>
    %217 = tpu.matmul %214, %216, %cst_238 {dimension_numbers = #tpu.dot_dimension_numbers<[1], [0], [0], [1], [0, 0, 1, 1], [], []>} : vector<16x256xbf16>, vector<256x256xbf16>, vector<16x256xf32> -> vector<16x256xf32>
    %218 = vector.extract_strided_slice %211 {offsets = [0, 0, 0], sizes = [4, 4, 256], strides = [1, 1, 1]} : vector<6x4x256xbf16> to vector<4x4x256xbf16>
    %219 = vector.shape_cast %218 : vector<4x4x256xbf16> to vector<16x256xbf16>
    %c0_239 = arith.constant 0 : index
    %c1_240 = arith.constant 1 : index
    %c0_241 = arith.constant 0 : index
    %c0_242 = arith.constant 0 : index
    %220 = vector.load %arg6[%c0_239, %c1_240, %c0_241, %c0_242] : memref<3x3x256x256xbf16, #tpu.memory_space<vmem>>, vector<1x1x256x256xbf16>
    %221 = vector.shape_cast %220 : vector<1x1x256x256xbf16> to vector<256x256xbf16>
    %cst_243 = arith.constant dense<0.000000e+00> : vector<16x256xf32>
    %222 = tpu.matmul %219, %221, %cst_243 {dimension_numbers = #tpu.dot_dimension_numbers<[1], [0], [0], [1], [0, 0, 1, 1], [], []>} : vector<16x256xbf16>, vector<256x256xbf16>, vector<16x256xf32> -> vector<16x256xf32>
    %223 = arith.addf %217, %222 : vector<16x256xf32>
    %224 = vector.extract_strided_slice %212 {offsets = [0, 0, 0], sizes = [4, 4, 256], strides = [1, 1, 1]} : vector<6x4x256xbf16> to vector<4x4x256xbf16>
    %225 = vector.shape_cast %224 : vector<4x4x256xbf16> to vector<16x256xbf16>
    %c0_244 = arith.constant 0 : index
    %c2_245 = arith.constant 2 : index
    %c0_246 = arith.constant 0 : index
    %c0_247 = arith.constant 0 : index
    %226 = vector.load %arg6[%c0_244, %c2_245, %c0_246, %c0_247] : memref<3x3x256x256xbf16, #tpu.memory_space<vmem>>, vector<1x1x256x256xbf16>
    %227 = vector.shape_cast %226 : vector<1x1x256x256xbf16> to vector<256x256xbf16>
    %cst_248 = arith.constant dense<0.000000e+00> : vector<16x256xf32>
    %228 = tpu.matmul %225, %227, %cst_248 {dimension_numbers = #tpu.dot_dimension_numbers<[1], [0], [0], [1], [0, 0, 1, 1], [], []>} : vector<16x256xbf16>, vector<256x256xbf16>, vector<16x256xf32> -> vector<16x256xf32>
    %229 = arith.addf %223, %228 : vector<16x256xf32>
    %230 = vector.extract_strided_slice %210 {offsets = [1, 0, 0], sizes = [4, 4, 256], strides = [1, 1, 1]} : vector<6x4x256xbf16> to vector<4x4x256xbf16>
    %231 = vector.shape_cast %230 : vector<4x4x256xbf16> to vector<16x256xbf16>
    %c1_249 = arith.constant 1 : index
    %c0_250 = arith.constant 0 : index
    %c0_251 = arith.constant 0 : index
    %c0_252 = arith.constant 0 : index
    %232 = vector.load %arg6[%c1_249, %c0_250, %c0_251, %c0_252] : memref<3x3x256x256xbf16, #tpu.memory_space<vmem>>, vector<1x1x256x256xbf16>
    %233 = vector.shape_cast %232 : vector<1x1x256x256xbf16> to vector<256x256xbf16>
    %cst_253 = arith.constant dense<0.000000e+00> : vector<16x256xf32>
    %234 = tpu.matmul %231, %233, %cst_253 {dimension_numbers = #tpu.dot_dimension_numbers<[1], [0], [0], [1], [0, 0, 1, 1], [], []>} : vector<16x256xbf16>, vector<256x256xbf16>, vector<16x256xf32> -> vector<16x256xf32>
    %235 = arith.addf %229, %234 : vector<16x256xf32>
    %236 = vector.extract_strided_slice %211 {offsets = [1, 0, 0], sizes = [4, 4, 256], strides = [1, 1, 1]} : vector<6x4x256xbf16> to vector<4x4x256xbf16>
    %237 = vector.shape_cast %236 : vector<4x4x256xbf16> to vector<16x256xbf16>
    %c1_254 = arith.constant 1 : index
    %c1_255 = arith.constant 1 : index
    %c0_256 = arith.constant 0 : index
    %c0_257 = arith.constant 0 : index
    %238 = vector.load %arg6[%c1_254, %c1_255, %c0_256, %c0_257] : memref<3x3x256x256xbf16, #tpu.memory_space<vmem>>, vector<1x1x256x256xbf16>
    %239 = vector.shape_cast %238 : vector<1x1x256x256xbf16> to vector<256x256xbf16>
    %cst_258 = arith.constant dense<0.000000e+00> : vector<16x256xf32>
    %240 = tpu.matmul %237, %239, %cst_258 {dimension_numbers = #tpu.dot_dimension_numbers<[1], [0], [0], [1], [0, 0, 1, 1], [], []>} : vector<16x256xbf16>, vector<256x256xbf16>, vector<16x256xf32> -> vector<16x256xf32>
    %241 = arith.addf %235, %240 : vector<16x256xf32>
    %242 = vector.extract_strided_slice %212 {offsets = [1, 0, 0], sizes = [4, 4, 256], strides = [1, 1, 1]} : vector<6x4x256xbf16> to vector<4x4x256xbf16>
    %243 = vector.shape_cast %242 : vector<4x4x256xbf16> to vector<16x256xbf16>
    %c1_259 = arith.constant 1 : index
    %c2_260 = arith.constant 2 : index
    %c0_261 = arith.constant 0 : index
    %c0_262 = arith.constant 0 : index
    %244 = vector.load %arg6[%c1_259, %c2_260, %c0_261, %c0_262] : memref<3x3x256x256xbf16, #tpu.memory_space<vmem>>, vector<1x1x256x256xbf16>
    %245 = vector.shape_cast %244 : vector<1x1x256x256xbf16> to vector<256x256xbf16>
    %cst_263 = arith.constant dense<0.000000e+00> : vector<16x256xf32>
    %246 = tpu.matmul %243, %245, %cst_263 {dimension_numbers = #tpu.dot_dimension_numbers<[1], [0], [0], [1], [0, 0, 1, 1], [], []>} : vector<16x256xbf16>, vector<256x256xbf16>, vector<16x256xf32> -> vector<16x256xf32>
    %247 = arith.addf %241, %246 : vector<16x256xf32>
    %248 = vector.extract_strided_slice %210 {offsets = [2, 0, 0], sizes = [4, 4, 256], strides = [1, 1, 1]} : vector<6x4x256xbf16> to vector<4x4x256xbf16>
    %249 = vector.shape_cast %248 : vector<4x4x256xbf16> to vector<16x256xbf16>
    %c2_264 = arith.constant 2 : index
    %c0_265 = arith.constant 0 : index
    %c0_266 = arith.constant 0 : index
    %c0_267 = arith.constant 0 : index
    %250 = vector.load %arg6[%c2_264, %c0_265, %c0_266, %c0_267] : memref<3x3x256x256xbf16, #tpu.memory_space<vmem>>, vector<1x1x256x256xbf16>
    %251 = vector.shape_cast %250 : vector<1x1x256x256xbf16> to vector<256x256xbf16>
    %cst_268 = arith.constant dense<0.000000e+00> : vector<16x256xf32>
    %252 = tpu.matmul %249, %251, %cst_268 {dimension_numbers = #tpu.dot_dimension_numbers<[1], [0], [0], [1], [0, 0, 1, 1], [], []>} : vector<16x256xbf16>, vector<256x256xbf16>, vector<16x256xf32> -> vector<16x256xf32>
    %253 = arith.addf %247, %252 : vector<16x256xf32>
    %254 = vector.extract_strided_slice %211 {offsets = [2, 0, 0], sizes = [4, 4, 256], strides = [1, 1, 1]} : vector<6x4x256xbf16> to vector<4x4x256xbf16>
    %255 = vector.shape_cast %254 : vector<4x4x256xbf16> to vector<16x256xbf16>
    %c2_269 = arith.constant 2 : index
    %c1_270 = arith.constant 1 : index
    %c0_271 = arith.constant 0 : index
    %c0_272 = arith.constant 0 : index
    %256 = vector.load %arg6[%c2_269, %c1_270, %c0_271, %c0_272] : memref<3x3x256x256xbf16, #tpu.memory_space<vmem>>, vector<1x1x256x256xbf16>
    %257 = vector.shape_cast %256 : vector<1x1x256x256xbf16> to vector<256x256xbf16>
    %cst_273 = arith.constant dense<0.000000e+00> : vector<16x256xf32>
    %258 = tpu.matmul %255, %257, %cst_273 {dimension_numbers = #tpu.dot_dimension_numbers<[1], [0], [0], [1], [0, 0, 1, 1], [], []>} : vector<16x256xbf16>, vector<256x256xbf16>, vector<16x256xf32> -> vector<16x256xf32>
    %259 = arith.addf %253, %258 : vector<16x256xf32>
    %260 = vector.extract_strided_slice %212 {offsets = [2, 0, 0], sizes = [4, 4, 256], strides = [1, 1, 1]} : vector<6x4x256xbf16> to vector<4x4x256xbf16>
    %261 = vector.shape_cast %260 : vector<4x4x256xbf16> to vector<16x256xbf16>
    %c2_274 = arith.constant 2 : index
    %c2_275 = arith.constant 2 : index
    %c0_276 = arith.constant 0 : index
    %c0_277 = arith.constant 0 : index
    %262 = vector.load %arg6[%c2_274, %c2_275, %c0_276, %c0_277] : memref<3x3x256x256xbf16, #tpu.memory_space<vmem>>, vector<1x1x256x256xbf16>
    %263 = vector.shape_cast %262 : vector<1x1x256x256xbf16> to vector<256x256xbf16>
    %cst_278 = arith.constant dense<0.000000e+00> : vector<16x256xf32>
    %264 = tpu.matmul %261, %263, %cst_278 {dimension_numbers = #tpu.dot_dimension_numbers<[1], [0], [0], [1], [0, 0, 1, 1], [], []>} : vector<16x256xbf16>, vector<256x256xbf16>, vector<16x256xf32> -> vector<16x256xf32>
    %265 = arith.addf %259, %264 : vector<16x256xf32>
    %266 = arith.extf %146 : vector<16x256xbf16> to vector<16x256xf32>
    %267 = arith.addf %265, %266 : vector<16x256xf32>
    %cst_279 = arith.constant 0.000000e+00 : f32
    %268 = vector.broadcast %cst_279 : f32 to vector<16x256xf32>
    %269 = arith.maximumf %267, %268 : vector<16x256xf32>
    %270 = vector.shape_cast %269 : vector<16x256xf32> to vector<2x8x256xf32>
    %271 = vector.extract_strided_slice %270 {offsets = [0, 0, 0], sizes = [2, 4, 256], strides = [1, 1, 1]} : vector<2x8x256xf32> to vector<2x4x256xf32>
    %272 = vector.extract_strided_slice %270 {offsets = [0, 4, 0], sizes = [2, 4, 256], strides = [1, 1, 1]} : vector<2x8x256xf32> to vector<2x4x256xf32>
    %273 = arith.maximumf %271, %272 : vector<2x4x256xf32>
    %274 = vector.shape_cast %273 : vector<2x4x256xf32> to vector<2x2x2x256xf32>
    %275 = vector.extract_strided_slice %274 {offsets = [0, 0, 0, 0], sizes = [2, 2, 1, 256], strides = [1, 1, 1, 1]} : vector<2x2x2x256xf32> to vector<2x2x1x256xf32>
    %276 = vector.shape_cast %275 : vector<2x2x1x256xf32> to vector<2x2x256xf32>
    %277 = vector.extract_strided_slice %274 {offsets = [0, 0, 1, 0], sizes = [2, 2, 1, 256], strides = [1, 1, 1, 1]} : vector<2x2x2x256xf32> to vector<2x2x1x256xf32>
    %278 = vector.shape_cast %277 : vector<2x2x1x256xf32> to vector<2x2x256xf32>
    %279 = arith.maximumf %276, %278 : vector<2x2x256xf32>
    %280 = vector.shape_cast %279 : vector<2x2x256xf32> to vector<1x2x2x256xf32>
    %281 = arith.truncf %280 : vector<1x2x2x256xf32> to vector<1x2x2x256xbf16>
    %c0_280 = arith.constant 0 : index
    %c0_281 = arith.constant 0 : index
    %c0_282 = arith.constant 0 : index
    %c0_283 = arith.constant 0 : index
    %282 = vector.load %arg7[%c0_280, %c0_281, %c0_282, %c0_283] : memref<1x2x2x256xbf16, #tpu.memory_space<vmem>>, vector<1x2x2x256xbf16>
    tpu.vector_store %arg7[%c0_280, %c0_281, %c0_282, %c0_283], %281 {strides = array<i32>} : memref<1x2x2x256xbf16, #tpu.memory_space<vmem>>, vector<1x2x2x256xbf16>,
    return
  }
  func.func @transform_0(%arg0: i32) -> (i32, i32, i32, i32) {
    %c0_i32 = arith.constant 0 : i32
    %c0_i32_0 = arith.constant 0 : i32
    %c0_i32_1 = arith.constant 0 : i32
    %c0_i32_2 = arith.constant 0 : i32
    return %arg0, %c0_i32, %c0_i32_0, %c0_i32_1 : i32, i32, i32, i32
  }
  func.func @transform_1(%arg0: i32) -> (i32, i32, i32, i32) {
    %c0_i32 = arith.constant 0 : i32
    %c0_i32_0 = arith.constant 0 : i32
    %c0_i32_1 = arith.constant 0 : i32
    %c0_i32_2 = arith.constant 0 : i32
    %c0_i32_3 = arith.constant 0 : i32
    return %c0_i32, %c0_i32_0, %c0_i32_1, %c0_i32_2 : i32, i32, i32, i32
  }
  func.func @transform_2(%arg0: i32) -> (i32, i32, i32, i32) {
    %c0_i32 = arith.constant 0 : i32
    %c0_i32_0 = arith.constant 0 : i32
    %c0_i32_1 = arith.constant 0 : i32
    %c0_i32_2 = arith.constant 0 : i32
    %c0_i32_3 = arith.constant 0 : i32
    return %c0_i32, %c0_i32_0, %c0_i32_1, %c0_i32_2 : i32, i32, i32, i32
  }
  func.func @transform_3(%arg0: i32) -> (i32, i32) {
    %c0_i32 = arith.constant 0 : i32
    %c0_i32_0 = arith.constant 0 : i32
    %c0_i32_1 = arith.constant 0 : i32
    return %c0_i32, %c0_i32_0 : i32, i32
  }
  func.func @transform_4(%arg0: i32) -> (i32, i32, i32, i32) {
    %c0_i32 = arith.constant 0 : i32
    %c0_i32_0 = arith.constant 0 : i32
    %c0_i32_1 = arith.constant 0 : i32
    %c0_i32_2 = arith.constant 0 : i32
    %c0_i32_3 = arith.constant 0 : i32
    return %c0_i32, %c0_i32_0, %c0_i32_1, %c0_i32_2 : i32, i32, i32, i32
  }
  func.func @transform_5(%arg0: i32) -> (i32, i32, i32, i32) {
    %c0_i32 = arith.constant 0 : i32
    %c0_i32_0 = arith.constant 0 : i32
    %c0_i32_1 = arith.constant 0 : i32
    %c0_i32_2 = arith.constant 0 : i32
    %c0_i32_3 = arith.constant 0 : i32
    return %c0_i32, %c0_i32_0, %c0_i32_1, %c0_i32_2 : i32, i32, i32, i32
  }
  func.func @transform_6(%arg0: i32) -> (i32, i32, i32, i32) {
    %c0_i32 = arith.constant 0 : i32
    %c0_i32_0 = arith.constant 0 : i32
    %c0_i32_1 = arith.constant 0 : i32
    %c0_i32_2 = arith.constant 0 : i32
    return %arg0, %c0_i32, %c0_i32_0, %c0_i32_1 : i32, i32, i32, i32
  }
}

module attributes {stable_mosaic.version = 11 : i64} {
  func.func @kernel(%arg0: i32, %arg1: memref<1x2x2x256xbf16, #tpu.memory_space<vmem>>, %arg2: memref<1x2x2x256xbf16, #tpu.memory_space<vmem>>, %arg3: memref<256x256xbf16, #tpu.memory_space<vmem>>, %arg4: memref<256x256xbf16, #tpu.memory_space<vmem>>, %arg5: memref<1x2x2x256xbf16, #tpu.memory_space<vmem>>) attributes {dimension_semantics = [#tpu.dimension_semantics<parallel>], iteration_bounds = array<i64: 2>, scalar_prefetch = 0 : i64, scratch_operands = 0 : i64, tpu.core_type = #tpu.core_type<tc>, window_params = [{transform_indices = @transform_0, window_bounds = array<i64: 1, 2, 2, 256>}, {transform_indices = @transform_1, window_bounds = array<i64: 1, 2, 2, 256>}, {pipeline_mode = #tpu.pipeline_mode<synchronous>, transform_indices = @transform_2, window_bounds = array<i64: 256, 256>}, {pipeline_mode = #tpu.pipeline_mode<synchronous>, transform_indices = @transform_3, window_bounds = array<i64: 256, 256>}, {transform_indices = @transform_4, window_bounds = array<i64: 1, 2, 2, 256>}]} {
    %c0 = arith.constant 0 : index
    %c0_0 = arith.constant 0 : index
    %c0_1 = arith.constant 0 : index
    %c0_2 = arith.constant 0 : index
    %0 = vector.load %arg1[%c0, %c0_0, %c0_1, %c0_2] : memref<1x2x2x256xbf16, #tpu.memory_space<vmem>>, vector<1x2x2x256xbf16>
    %1 = vector.shape_cast %0 : vector<1x2x2x256xbf16> to vector<2x2x256xbf16>
    %2 = vector.shape_cast %1 : vector<2x2x256xbf16> to vector<4x256xbf16>
    %c0_3 = arith.constant 0 : index
    %c0_4 = arith.constant 0 : index
    %3 = vector.load %arg3[%c0_3, %c0_4] : memref<256x256xbf16, #tpu.memory_space<vmem>>, vector<256x256xbf16>
    %cst = arith.constant dense<0.000000e+00> : vector<4x256xf32>
    %4 = tpu.matmul %2, %3, %cst {dimension_numbers = #tpu.dot_dimension_numbers<[1], [0], [0], [1], [0, 0, 1, 1], [], []>} : vector<4x256xbf16>, vector<256x256xbf16>, vector<4x256xf32> -> vector<4x256xf32>
    %c0_5 = arith.constant 0 : index
    %c0_6 = arith.constant 0 : index
    %c0_7 = arith.constant 0 : index
    %c0_8 = arith.constant 0 : index
    %5 = vector.load %arg2[%c0_5, %c0_6, %c0_7, %c0_8] : memref<1x2x2x256xbf16, #tpu.memory_space<vmem>>, vector<1x2x2x256xbf16>
    %6 = vector.shape_cast %5 : vector<1x2x2x256xbf16> to vector<2x2x256xbf16>
    %7 = vector.shape_cast %6 : vector<2x2x256xbf16> to vector<4x256xbf16>
    %c0_9 = arith.constant 0 : index
    %c0_10 = arith.constant 0 : index
    %8 = vector.load %arg4[%c0_9, %c0_10] : memref<256x256xbf16, #tpu.memory_space<vmem>>, vector<256x256xbf16>
    %cst_11 = arith.constant dense<0.000000e+00> : vector<4x256xf32>
    %9 = tpu.matmul %7, %8, %cst_11 {dimension_numbers = #tpu.dot_dimension_numbers<[1], [0], [0], [1], [0, 0, 1, 1], [], []>} : vector<4x256xbf16>, vector<256x256xbf16>, vector<4x256xf32> -> vector<4x256xf32>
    %10 = arith.addf %4, %9 : vector<4x256xf32>
    %11 = vector.shape_cast %10 : vector<4x256xf32> to vector<1x2x2x256xf32>
    %12 = arith.truncf %11 : vector<1x2x2x256xf32> to vector<1x2x2x256xbf16>
    %c0_12 = arith.constant 0 : index
    %c0_13 = arith.constant 0 : index
    %c0_14 = arith.constant 0 : index
    %c0_15 = arith.constant 0 : index
    %13 = vector.load %arg5[%c0_12, %c0_13, %c0_14, %c0_15] : memref<1x2x2x256xbf16, #tpu.memory_space<vmem>>, vector<1x2x2x256xbf16>
    tpu.vector_store %arg5[%c0_12, %c0_13, %c0_14, %c0_15], %12 {strides = array<i32>} : memref<1x2x2x256xbf16, #tpu.memory_space<vmem>>, vector<1x2x2x256xbf16>,
    return
  }
  func.func @transform_0(%arg0: i32) -> (i32, i32, i32, i32) {
    %c0_i32 = arith.constant 0 : i32
    %c0_i32_0 = arith.constant 0 : i32
    %c0_i32_1 = arith.constant 0 : i32
    %c0_i32_2 = arith.constant 0 : i32
    return %arg0, %c0_i32, %c0_i32_0, %c0_i32_1 : i32, i32, i32, i32
  }
  func.func @transform_1(%arg0: i32) -> (i32, i32, i32, i32) {
    %c0_i32 = arith.constant 0 : i32
    %c0_i32_0 = arith.constant 0 : i32
    %c0_i32_1 = arith.constant 0 : i32
    %c0_i32_2 = arith.constant 0 : i32
    return %arg0, %c0_i32, %c0_i32_0, %c0_i32_1 : i32, i32, i32, i32
  }
  func.func @transform_2(%arg0: i32) -> (i32, i32) {
    %c0_i32 = arith.constant 0 : i32
    %c0_i32_0 = arith.constant 0 : i32
    %c0_i32_1 = arith.constant 0 : i32
    return %c0_i32, %c0_i32_0 : i32, i32
  }
  func.func @transform_3(%arg0: i32) -> (i32, i32) {
    %c0_i32 = arith.constant 0 : i32
    %c0_i32_0 = arith.constant 0 : i32
    %c0_i32_1 = arith.constant 0 : i32
    return %c0_i32, %c0_i32_0 : i32, i32
  }
  func.func @transform_4(%arg0: i32) -> (i32, i32, i32, i32) {
    %c0_i32 = arith.constant 0 : i32
    %c0_i32_0 = arith.constant 0 : i32
    %c0_i32_1 = arith.constant 0 : i32
    %c0_i32_2 = arith.constant 0 : i32
    return %arg0, %c0_i32, %c0_i32_0, %c0_i32_1 : i32, i32, i32, i32
  }
}

module attributes {stable_mosaic.version = 11 : i64} {
  func.func @kernel(%arg0: i32, %arg1: memref<1x2x2x256xbf16, #tpu.memory_space<vmem>>, %arg2: memref<3x3x256x512xbf16, #tpu.memory_space<vmem>>, %arg3: memref<3x3x512x512xbf16, #tpu.memory_space<vmem>>, %arg4: memref<256x512xbf16, #tpu.memory_space<vmem>>, %arg5: memref<3x3x512x512xbf16, #tpu.memory_space<vmem>>, %arg6: memref<3x3x512x512xbf16, #tpu.memory_space<vmem>>, %arg7: memref<1x2x2x512xbf16, #tpu.memory_space<vmem>>, %arg8: memref<4x4x256xbf16, #tpu.memory_space<vmem>>, %arg9: memref<4x4x512xbf16, #tpu.memory_space<vmem>>, %arg10: memref<4x4x512xbf16, #tpu.memory_space<vmem>>) attributes {dimension_semantics = [#tpu.dimension_semantics<parallel>], iteration_bounds = array<i64: 2>, scalar_prefetch = 0 : i64, scratch_operands = 3 : i64, tpu.core_type = #tpu.core_type<tc>, window_params = [{transform_indices = @transform_0, window_bounds = array<i64: 1, 2, 2, 256>}, {pipeline_mode = #tpu.pipeline_mode<synchronous>, transform_indices = @transform_1, window_bounds = array<i64: 3, 3, 256, 512>}, {pipeline_mode = #tpu.pipeline_mode<synchronous>, transform_indices = @transform_2, window_bounds = array<i64: 3, 3, 512, 512>}, {pipeline_mode = #tpu.pipeline_mode<synchronous>, transform_indices = @transform_3, window_bounds = array<i64: 256, 512>}, {pipeline_mode = #tpu.pipeline_mode<synchronous>, transform_indices = @transform_4, window_bounds = array<i64: 3, 3, 512, 512>}, {pipeline_mode = #tpu.pipeline_mode<synchronous>, transform_indices = @transform_5, window_bounds = array<i64: 3, 3, 512, 512>}, {transform_indices = @transform_6, window_bounds = array<i64: 1, 2, 2, 512>}]} {
    %cst = arith.constant 0.000000e+00 : bf16
    %0 = vector.broadcast %cst : bf16 to vector<1x4x256xbf16>
    %c0 = arith.constant 0 : index
    %c0_0 = arith.constant 0 : index
    %c0_1 = arith.constant 0 : index
    %1 = vector.load %arg8[%c0, %c0_0, %c0_1] : memref<4x4x256xbf16, #tpu.memory_space<vmem>>, vector<1x4x256xbf16>
    tpu.vector_store %arg8[%c0, %c0_0, %c0_1], %0 {strides = array<i32>} : memref<4x4x256xbf16, #tpu.memory_space<vmem>>, vector<1x4x256xbf16>,
    %c3 = arith.constant 3 : index
    %c0_2 = arith.constant 0 : index
    %c0_3 = arith.constant 0 : index
    %2 = vector.load %arg8[%c3, %c0_2, %c0_3] : memref<4x4x256xbf16, #tpu.memory_space<vmem>>, vector<1x4x256xbf16>
    tpu.vector_store %arg8[%c3, %c0_2, %c0_3], %0 {strides = array<i32>} : memref<4x4x256xbf16, #tpu.memory_space<vmem>>, vector<1x4x256xbf16>,
    %cst_4 = arith.constant 0.000000e+00 : bf16
    %3 = vector.broadcast %cst_4 : bf16 to vector<2x1x256xbf16>
    %c1 = arith.constant 1 : index
    %c0_5 = arith.constant 0 : index
    %c0_6 = arith.constant 0 : index
    %4 = vector.load %arg8[%c1, %c0_5, %c0_6] : memref<4x4x256xbf16, #tpu.memory_space<vmem>>, vector<2x1x256xbf16>
    tpu.vector_store %arg8[%c1, %c0_5, %c0_6], %3 {strides = array<i32>} : memref<4x4x256xbf16, #tpu.memory_space<vmem>>, vector<2x1x256xbf16>,
    %c1_7 = arith.constant 1 : index
    %c3_8 = arith.constant 3 : index
    %c0_9 = arith.constant 0 : index
    %5 = vector.load %arg8[%c1_7, %c3_8, %c0_9] : memref<4x4x256xbf16, #tpu.memory_space<vmem>>, vector<2x1x256xbf16>
    tpu.vector_store %arg8[%c1_7, %c3_8, %c0_9], %3 {strides = array<i32>} : memref<4x4x256xbf16, #tpu.memory_space<vmem>>, vector<2x1x256xbf16>,
    %cst_10 = arith.constant 0.000000e+00 : bf16
    %6 = vector.broadcast %cst_10 : bf16 to vector<1x4x512xbf16>
    %c0_11 = arith.constant 0 : index
    %c0_12 = arith.constant 0 : index
    %c0_13 = arith.constant 0 : index
    %7 = vector.load %arg9[%c0_11, %c0_12, %c0_13] : memref<4x4x512xbf16, #tpu.memory_space<vmem>>, vector<1x4x512xbf16>
    tpu.vector_store %arg9[%c0_11, %c0_12, %c0_13], %6 {strides = array<i32>} : memref<4x4x512xbf16, #tpu.memory_space<vmem>>, vector<1x4x512xbf16>,
    %c3_14 = arith.constant 3 : index
    %c0_15 = arith.constant 0 : index
    %c0_16 = arith.constant 0 : index
    %8 = vector.load %arg9[%c3_14, %c0_15, %c0_16] : memref<4x4x512xbf16, #tpu.memory_space<vmem>>, vector<1x4x512xbf16>
    tpu.vector_store %arg9[%c3_14, %c0_15, %c0_16], %6 {strides = array<i32>} : memref<4x4x512xbf16, #tpu.memory_space<vmem>>, vector<1x4x512xbf16>,
    %cst_17 = arith.constant 0.000000e+00 : bf16
    %9 = vector.broadcast %cst_17 : bf16 to vector<2x1x512xbf16>
    %c1_18 = arith.constant 1 : index
    %c0_19 = arith.constant 0 : index
    %c0_20 = arith.constant 0 : index
    %10 = vector.load %arg9[%c1_18, %c0_19, %c0_20] : memref<4x4x512xbf16, #tpu.memory_space<vmem>>, vector<2x1x512xbf16>
    tpu.vector_store %arg9[%c1_18, %c0_19, %c0_20], %9 {strides = array<i32>} : memref<4x4x512xbf16, #tpu.memory_space<vmem>>, vector<2x1x512xbf16>,
    %c1_21 = arith.constant 1 : index
    %c3_22 = arith.constant 3 : index
    %c0_23 = arith.constant 0 : index
    %11 = vector.load %arg9[%c1_21, %c3_22, %c0_23] : memref<4x4x512xbf16, #tpu.memory_space<vmem>>, vector<2x1x512xbf16>
    tpu.vector_store %arg9[%c1_21, %c3_22, %c0_23], %9 {strides = array<i32>} : memref<4x4x512xbf16, #tpu.memory_space<vmem>>, vector<2x1x512xbf16>,
    %cst_24 = arith.constant 0.000000e+00 : bf16
    %12 = vector.broadcast %cst_24 : bf16 to vector<1x4x512xbf16>
    %c0_25 = arith.constant 0 : index
    %c0_26 = arith.constant 0 : index
    %c0_27 = arith.constant 0 : index
    %13 = vector.load %arg10[%c0_25, %c0_26, %c0_27] : memref<4x4x512xbf16, #tpu.memory_space<vmem>>, vector<1x4x512xbf16>
    tpu.vector_store %arg10[%c0_25, %c0_26, %c0_27], %12 {strides = array<i32>} : memref<4x4x512xbf16, #tpu.memory_space<vmem>>, vector<1x4x512xbf16>,
    %c3_28 = arith.constant 3 : index
    %c0_29 = arith.constant 0 : index
    %c0_30 = arith.constant 0 : index
    %14 = vector.load %arg10[%c3_28, %c0_29, %c0_30] : memref<4x4x512xbf16, #tpu.memory_space<vmem>>, vector<1x4x512xbf16>
    tpu.vector_store %arg10[%c3_28, %c0_29, %c0_30], %12 {strides = array<i32>} : memref<4x4x512xbf16, #tpu.memory_space<vmem>>, vector<1x4x512xbf16>,
    %cst_31 = arith.constant 0.000000e+00 : bf16
    %15 = vector.broadcast %cst_31 : bf16 to vector<2x1x512xbf16>
    %c1_32 = arith.constant 1 : index
    %c0_33 = arith.constant 0 : index
    %c0_34 = arith.constant 0 : index
    %16 = vector.load %arg10[%c1_32, %c0_33, %c0_34] : memref<4x4x512xbf16, #tpu.memory_space<vmem>>, vector<2x1x512xbf16>
    tpu.vector_store %arg10[%c1_32, %c0_33, %c0_34], %15 {strides = array<i32>} : memref<4x4x512xbf16, #tpu.memory_space<vmem>>, vector<2x1x512xbf16>,
    %c1_35 = arith.constant 1 : index
    %c3_36 = arith.constant 3 : index
    %c0_37 = arith.constant 0 : index
    %17 = vector.load %arg10[%c1_35, %c3_36, %c0_37] : memref<4x4x512xbf16, #tpu.memory_space<vmem>>, vector<2x1x512xbf16>
    tpu.vector_store %arg10[%c1_35, %c3_36, %c0_37], %15 {strides = array<i32>} : memref<4x4x512xbf16, #tpu.memory_space<vmem>>, vector<2x1x512xbf16>,
    %c0_38 = arith.constant 0 : index
    %c0_39 = arith.constant 0 : index
    %c0_40 = arith.constant 0 : index
    %c0_41 = arith.constant 0 : index
    %18 = vector.load %arg1[%c0_38, %c0_39, %c0_40, %c0_41] : memref<1x2x2x256xbf16, #tpu.memory_space<vmem>>, vector<1x2x2x256xbf16>
    %19 = vector.shape_cast %18 : vector<1x2x2x256xbf16> to vector<2x2x256xbf16>
    %20 = vector.shape_cast %19 : vector<2x2x256xbf16> to vector<4x256xbf16>
    %c0_42 = arith.constant 0 : index
    %c0_43 = arith.constant 0 : index
    %c0_44 = arith.constant 0 : index
    %c0_45 = arith.constant 0 : index
    %21 = vector.load %arg1[%c0_42, %c0_43, %c0_44, %c0_45] : memref<1x2x2x256xbf16, #tpu.memory_space<vmem>>, vector<1x2x2x256xbf16>
    %22 = vector.shape_cast %21 : vector<1x2x2x256xbf16> to vector<2x2x256xbf16>
    %c1_46 = arith.constant 1 : index
    %c1_47 = arith.constant 1 : index
    %c0_48 = arith.constant 0 : index
    %23 = vector.load %arg8[%c1_46, %c1_47, %c0_48] : memref<4x4x256xbf16, #tpu.memory_space<vmem>>, vector<2x2x256xbf16>
    tpu.vector_store %arg8[%c1_46, %c1_47, %c0_48], %22 {strides = array<i32>} : memref<4x4x256xbf16, #tpu.memory_space<vmem>>, vector<2x2x256xbf16>,
    %c0_49 = arith.constant 0 : index
    %c0_50 = arith.constant 0 : index
    %c0_51 = arith.constant 0 : index
    %24 = vector.load %arg8[%c0_49, %c0_50, %c0_51] : memref<4x4x256xbf16, #tpu.memory_space<vmem>>, vector<4x2x256xbf16>
    %c0_52 = arith.constant 0 : index
    %c1_53 = arith.constant 1 : index
    %c0_54 = arith.constant 0 : index
    %25 = vector.load %arg8[%c0_52, %c1_53, %c0_54] : memref<4x4x256xbf16, #tpu.memory_space<vmem>>, vector<4x2x256xbf16>
    %c0_55 = arith.constant 0 : index
    %c2 = arith.constant 2 : index
    %c0_56 = arith.constant 0 : index
    %26 = vector.load %arg8[%c0_55, %c2, %c0_56] : memref<4x4x256xbf16, #tpu.memory_space<vmem>>, vector<4x2x256xbf16>
    %27 = vector.extract_strided_slice %24 {offsets = [0, 0, 0], sizes = [2, 2, 256], strides = [1, 1, 1]} : vector<4x2x256xbf16> to vector<2x2x256xbf16>
    %28 = vector.shape_cast %27 : vector<2x2x256xbf16> to vector<4x256xbf16>
    %c0_57 = arith.constant 0 : index
    %c0_58 = arith.constant 0 : index
    %c0_59 = arith.constant 0 : index
    %c0_60 = arith.constant 0 : index
    %29 = vector.load %arg2[%c0_57, %c0_58, %c0_59, %c0_60] : memref<3x3x256x512xbf16, #tpu.memory_space<vmem>>, vector<1x1x256x512xbf16>
    %30 = vector.shape_cast %29 : vector<1x1x256x512xbf16> to vector<256x512xbf16>
    %cst_61 = arith.constant dense<0.000000e+00> : vector<4x512xf32>
    %31 = tpu.matmul %28, %30, %cst_61 {dimension_numbers = #tpu.dot_dimension_numbers<[1], [0], [0], [1], [0, 0, 1, 1], [], []>} : vector<4x256xbf16>, vector<256x512xbf16>, vector<4x512xf32> -> vector<4x512xf32>
    %32 = vector.extract_strided_slice %25 {offsets = [0, 0, 0], sizes = [2, 2, 256], strides = [1, 1, 1]} : vector<4x2x256xbf16> to vector<2x2x256xbf16>
    %33 = vector.shape_cast %32 : vector<2x2x256xbf16> to vector<4x256xbf16>
    %c0_62 = arith.constant 0 : index
    %c1_63 = arith.constant 1 : index
    %c0_64 = arith.constant 0 : index
    %c0_65 = arith.constant 0 : index
    %34 = vector.load %arg2[%c0_62, %c1_63, %c0_64, %c0_65] : memref<3x3x256x512xbf16, #tpu.memory_space<vmem>>, vector<1x1x256x512xbf16>
    %35 = vector.shape_cast %34 : vector<1x1x256x512xbf16> to vector<256x512xbf16>
    %cst_66 = arith.constant dense<0.000000e+00> : vector<4x512xf32>
    %36 = tpu.matmul %33, %35, %cst_66 {dimension_numbers = #tpu.dot_dimension_numbers<[1], [0], [0], [1], [0, 0, 1, 1], [], []>} : vector<4x256xbf16>, vector<256x512xbf16>, vector<4x512xf32> -> vector<4x512xf32>
    %37 = arith.addf %31, %36 : vector<4x512xf32>
    %38 = vector.extract_strided_slice %26 {offsets = [0, 0, 0], sizes = [2, 2, 256], strides = [1, 1, 1]} : vector<4x2x256xbf16> to vector<2x2x256xbf16>
    %39 = vector.shape_cast %38 : vector<2x2x256xbf16> to vector<4x256xbf16>
    %c0_67 = arith.constant 0 : index
    %c2_68 = arith.constant 2 : index
    %c0_69 = arith.constant 0 : index
    %c0_70 = arith.constant 0 : index
    %40 = vector.load %arg2[%c0_67, %c2_68, %c0_69, %c0_70] : memref<3x3x256x512xbf16, #tpu.memory_space<vmem>>, vector<1x1x256x512xbf16>
    %41 = vector.shape_cast %40 : vector<1x1x256x512xbf16> to vector<256x512xbf16>
    %cst_71 = arith.constant dense<0.000000e+00> : vector<4x512xf32>
    %42 = tpu.matmul %39, %41, %cst_71 {dimension_numbers = #tpu.dot_dimension_numbers<[1], [0], [0], [1], [0, 0, 1, 1], [], []>} : vector<4x256xbf16>, vector<256x512xbf16>, vector<4x512xf32> -> vector<4x512xf32>
    %43 = arith.addf %37, %42 : vector<4x512xf32>
    %44 = vector.extract_strided_slice %24 {offsets = [1, 0, 0], sizes = [2, 2, 256], strides = [1, 1, 1]} : vector<4x2x256xbf16> to vector<2x2x256xbf16>
    %45 = vector.shape_cast %44 : vector<2x2x256xbf16> to vector<4x256xbf16>
    %c1_72 = arith.constant 1 : index
    %c0_73 = arith.constant 0 : index
    %c0_74 = arith.constant 0 : index
    %c0_75 = arith.constant 0 : index
    %46 = vector.load %arg2[%c1_72, %c0_73, %c0_74, %c0_75] : memref<3x3x256x512xbf16, #tpu.memory_space<vmem>>, vector<1x1x256x512xbf16>
    %47 = vector.shape_cast %46 : vector<1x1x256x512xbf16> to vector<256x512xbf16>
    %cst_76 = arith.constant dense<0.000000e+00> : vector<4x512xf32>
    %48 = tpu.matmul %45, %47, %cst_76 {dimension_numbers = #tpu.dot_dimension_numbers<[1], [0], [0], [1], [0, 0, 1, 1], [], []>} : vector<4x256xbf16>, vector<256x512xbf16>, vector<4x512xf32> -> vector<4x512xf32>
    %49 = arith.addf %43, %48 : vector<4x512xf32>
    %50 = vector.extract_strided_slice %25 {offsets = [1, 0, 0], sizes = [2, 2, 256], strides = [1, 1, 1]} : vector<4x2x256xbf16> to vector<2x2x256xbf16>
    %51 = vector.shape_cast %50 : vector<2x2x256xbf16> to vector<4x256xbf16>
    %c1_77 = arith.constant 1 : index
    %c1_78 = arith.constant 1 : index
    %c0_79 = arith.constant 0 : index
    %c0_80 = arith.constant 0 : index
    %52 = vector.load %arg2[%c1_77, %c1_78, %c0_79, %c0_80] : memref<3x3x256x512xbf16, #tpu.memory_space<vmem>>, vector<1x1x256x512xbf16>
    %53 = vector.shape_cast %52 : vector<1x1x256x512xbf16> to vector<256x512xbf16>
    %cst_81 = arith.constant dense<0.000000e+00> : vector<4x512xf32>
    %54 = tpu.matmul %51, %53, %cst_81 {dimension_numbers = #tpu.dot_dimension_numbers<[1], [0], [0], [1], [0, 0, 1, 1], [], []>} : vector<4x256xbf16>, vector<256x512xbf16>, vector<4x512xf32> -> vector<4x512xf32>
    %55 = arith.addf %49, %54 : vector<4x512xf32>
    %56 = vector.extract_strided_slice %26 {offsets = [1, 0, 0], sizes = [2, 2, 256], strides = [1, 1, 1]} : vector<4x2x256xbf16> to vector<2x2x256xbf16>
    %57 = vector.shape_cast %56 : vector<2x2x256xbf16> to vector<4x256xbf16>
    %c1_82 = arith.constant 1 : index
    %c2_83 = arith.constant 2 : index
    %c0_84 = arith.constant 0 : index
    %c0_85 = arith.constant 0 : index
    %58 = vector.load %arg2[%c1_82, %c2_83, %c0_84, %c0_85] : memref<3x3x256x512xbf16, #tpu.memory_space<vmem>>, vector<1x1x256x512xbf16>
    %59 = vector.shape_cast %58 : vector<1x1x256x512xbf16> to vector<256x512xbf16>
    %cst_86 = arith.constant dense<0.000000e+00> : vector<4x512xf32>
    %60 = tpu.matmul %57, %59, %cst_86 {dimension_numbers = #tpu.dot_dimension_numbers<[1], [0], [0], [1], [0, 0, 1, 1], [], []>} : vector<4x256xbf16>, vector<256x512xbf16>, vector<4x512xf32> -> vector<4x512xf32>
    %61 = arith.addf %55, %60 : vector<4x512xf32>
    %62 = vector.extract_strided_slice %24 {offsets = [2, 0, 0], sizes = [2, 2, 256], strides = [1, 1, 1]} : vector<4x2x256xbf16> to vector<2x2x256xbf16>
    %63 = vector.shape_cast %62 : vector<2x2x256xbf16> to vector<4x256xbf16>
    %c2_87 = arith.constant 2 : index
    %c0_88 = arith.constant 0 : index
    %c0_89 = arith.constant 0 : index
    %c0_90 = arith.constant 0 : index
    %64 = vector.load %arg2[%c2_87, %c0_88, %c0_89, %c0_90] : memref<3x3x256x512xbf16, #tpu.memory_space<vmem>>, vector<1x1x256x512xbf16>
    %65 = vector.shape_cast %64 : vector<1x1x256x512xbf16> to vector<256x512xbf16>
    %cst_91 = arith.constant dense<0.000000e+00> : vector<4x512xf32>
    %66 = tpu.matmul %63, %65, %cst_91 {dimension_numbers = #tpu.dot_dimension_numbers<[1], [0], [0], [1], [0, 0, 1, 1], [], []>} : vector<4x256xbf16>, vector<256x512xbf16>, vector<4x512xf32> -> vector<4x512xf32>
    %67 = arith.addf %61, %66 : vector<4x512xf32>
    %68 = vector.extract_strided_slice %25 {offsets = [2, 0, 0], sizes = [2, 2, 256], strides = [1, 1, 1]} : vector<4x2x256xbf16> to vector<2x2x256xbf16>
    %69 = vector.shape_cast %68 : vector<2x2x256xbf16> to vector<4x256xbf16>
    %c2_92 = arith.constant 2 : index
    %c1_93 = arith.constant 1 : index
    %c0_94 = arith.constant 0 : index
    %c0_95 = arith.constant 0 : index
    %70 = vector.load %arg2[%c2_92, %c1_93, %c0_94, %c0_95] : memref<3x3x256x512xbf16, #tpu.memory_space<vmem>>, vector<1x1x256x512xbf16>
    %71 = vector.shape_cast %70 : vector<1x1x256x512xbf16> to vector<256x512xbf16>
    %cst_96 = arith.constant dense<0.000000e+00> : vector<4x512xf32>
    %72 = tpu.matmul %69, %71, %cst_96 {dimension_numbers = #tpu.dot_dimension_numbers<[1], [0], [0], [1], [0, 0, 1, 1], [], []>} : vector<4x256xbf16>, vector<256x512xbf16>, vector<4x512xf32> -> vector<4x512xf32>
    %73 = arith.addf %67, %72 : vector<4x512xf32>
    %74 = vector.extract_strided_slice %26 {offsets = [2, 0, 0], sizes = [2, 2, 256], strides = [1, 1, 1]} : vector<4x2x256xbf16> to vector<2x2x256xbf16>
    %75 = vector.shape_cast %74 : vector<2x2x256xbf16> to vector<4x256xbf16>
    %c2_97 = arith.constant 2 : index
    %c2_98 = arith.constant 2 : index
    %c0_99 = arith.constant 0 : index
    %c0_100 = arith.constant 0 : index
    %76 = vector.load %arg2[%c2_97, %c2_98, %c0_99, %c0_100] : memref<3x3x256x512xbf16, #tpu.memory_space<vmem>>, vector<1x1x256x512xbf16>
    %77 = vector.shape_cast %76 : vector<1x1x256x512xbf16> to vector<256x512xbf16>
    %cst_101 = arith.constant dense<0.000000e+00> : vector<4x512xf32>
    %78 = tpu.matmul %75, %77, %cst_101 {dimension_numbers = #tpu.dot_dimension_numbers<[1], [0], [0], [1], [0, 0, 1, 1], [], []>} : vector<4x256xbf16>, vector<256x512xbf16>, vector<4x512xf32> -> vector<4x512xf32>
    %79 = arith.addf %73, %78 : vector<4x512xf32>
    %cst_102 = arith.constant 0.000000e+00 : f32
    %80 = vector.broadcast %cst_102 : f32 to vector<4x512xf32>
    %81 = arith.maximumf %79, %80 : vector<4x512xf32>
    %82 = arith.truncf %81 : vector<4x512xf32> to vector<4x512xbf16>
    %83 = vector.shape_cast %82 : vector<4x512xbf16> to vector<2x2x512xbf16>
    %c1_103 = arith.constant 1 : index
    %c1_104 = arith.constant 1 : index
    %c0_105 = arith.constant 0 : index
    %84 = vector.load %arg9[%c1_103, %c1_104, %c0_105] : memref<4x4x512xbf16, #tpu.memory_space<vmem>>, vector<2x2x512xbf16>
    tpu.vector_store %arg9[%c1_103, %c1_104, %c0_105], %83 {strides = array<i32>} : memref<4x4x512xbf16, #tpu.memory_space<vmem>>, vector<2x2x512xbf16>,
    %c0_106 = arith.constant 0 : index
    %c0_107 = arith.constant 0 : index
    %c0_108 = arith.constant 0 : index
    %85 = vector.load %arg9[%c0_106, %c0_107, %c0_108] : memref<4x4x512xbf16, #tpu.memory_space<vmem>>, vector<4x2x512xbf16>
    %c0_109 = arith.constant 0 : index
    %c1_110 = arith.constant 1 : index
    %c0_111 = arith.constant 0 : index
    %86 = vector.load %arg9[%c0_109, %c1_110, %c0_111] : memref<4x4x512xbf16, #tpu.memory_space<vmem>>, vector<4x2x512xbf16>
    %c0_112 = arith.constant 0 : index
    %c2_113 = arith.constant 2 : index
    %c0_114 = arith.constant 0 : index
    %87 = vector.load %arg9[%c0_112, %c2_113, %c0_114] : memref<4x4x512xbf16, #tpu.memory_space<vmem>>, vector<4x2x512xbf16>
    %88 = vector.extract_strided_slice %85 {offsets = [0, 0, 0], sizes = [2, 2, 512], strides = [1, 1, 1]} : vector<4x2x512xbf16> to vector<2x2x512xbf16>
    %89 = vector.shape_cast %88 : vector<2x2x512xbf16> to vector<4x512xbf16>
    %c0_115 = arith.constant 0 : index
    %c0_116 = arith.constant 0 : index
    %c0_117 = arith.constant 0 : index
    %c0_118 = arith.constant 0 : index
    %90 = vector.load %arg3[%c0_115, %c0_116, %c0_117, %c0_118] : memref<3x3x512x512xbf16, #tpu.memory_space<vmem>>, vector<1x1x512x512xbf16>
    %91 = vector.shape_cast %90 : vector<1x1x512x512xbf16> to vector<512x512xbf16>
    %cst_119 = arith.constant dense<0.000000e+00> : vector<4x512xf32>
    %92 = tpu.matmul %89, %91, %cst_119 {dimension_numbers = #tpu.dot_dimension_numbers<[1], [0], [0], [1], [0, 0, 1, 1], [], []>} : vector<4x512xbf16>, vector<512x512xbf16>, vector<4x512xf32> -> vector<4x512xf32>
    %93 = vector.extract_strided_slice %86 {offsets = [0, 0, 0], sizes = [2, 2, 512], strides = [1, 1, 1]} : vector<4x2x512xbf16> to vector<2x2x512xbf16>
    %94 = vector.shape_cast %93 : vector<2x2x512xbf16> to vector<4x512xbf16>
    %c0_120 = arith.constant 0 : index
    %c1_121 = arith.constant 1 : index
    %c0_122 = arith.constant 0 : index
    %c0_123 = arith.constant 0 : index
    %95 = vector.load %arg3[%c0_120, %c1_121, %c0_122, %c0_123] : memref<3x3x512x512xbf16, #tpu.memory_space<vmem>>, vector<1x1x512x512xbf16>
    %96 = vector.shape_cast %95 : vector<1x1x512x512xbf16> to vector<512x512xbf16>
    %cst_124 = arith.constant dense<0.000000e+00> : vector<4x512xf32>
    %97 = tpu.matmul %94, %96, %cst_124 {dimension_numbers = #tpu.dot_dimension_numbers<[1], [0], [0], [1], [0, 0, 1, 1], [], []>} : vector<4x512xbf16>, vector<512x512xbf16>, vector<4x512xf32> -> vector<4x512xf32>
    %98 = arith.addf %92, %97 : vector<4x512xf32>
    %99 = vector.extract_strided_slice %87 {offsets = [0, 0, 0], sizes = [2, 2, 512], strides = [1, 1, 1]} : vector<4x2x512xbf16> to vector<2x2x512xbf16>
    %100 = vector.shape_cast %99 : vector<2x2x512xbf16> to vector<4x512xbf16>
    %c0_125 = arith.constant 0 : index
    %c2_126 = arith.constant 2 : index
    %c0_127 = arith.constant 0 : index
    %c0_128 = arith.constant 0 : index
    %101 = vector.load %arg3[%c0_125, %c2_126, %c0_127, %c0_128] : memref<3x3x512x512xbf16, #tpu.memory_space<vmem>>, vector<1x1x512x512xbf16>
    %102 = vector.shape_cast %101 : vector<1x1x512x512xbf16> to vector<512x512xbf16>
    %cst_129 = arith.constant dense<0.000000e+00> : vector<4x512xf32>
    %103 = tpu.matmul %100, %102, %cst_129 {dimension_numbers = #tpu.dot_dimension_numbers<[1], [0], [0], [1], [0, 0, 1, 1], [], []>} : vector<4x512xbf16>, vector<512x512xbf16>, vector<4x512xf32> -> vector<4x512xf32>
    %104 = arith.addf %98, %103 : vector<4x512xf32>
    %105 = vector.extract_strided_slice %85 {offsets = [1, 0, 0], sizes = [2, 2, 512], strides = [1, 1, 1]} : vector<4x2x512xbf16> to vector<2x2x512xbf16>
    %106 = vector.shape_cast %105 : vector<2x2x512xbf16> to vector<4x512xbf16>
    %c1_130 = arith.constant 1 : index
    %c0_131 = arith.constant 0 : index
    %c0_132 = arith.constant 0 : index
    %c0_133 = arith.constant 0 : index
    %107 = vector.load %arg3[%c1_130, %c0_131, %c0_132, %c0_133] : memref<3x3x512x512xbf16, #tpu.memory_space<vmem>>, vector<1x1x512x512xbf16>
    %108 = vector.shape_cast %107 : vector<1x1x512x512xbf16> to vector<512x512xbf16>
    %cst_134 = arith.constant dense<0.000000e+00> : vector<4x512xf32>
    %109 = tpu.matmul %106, %108, %cst_134 {dimension_numbers = #tpu.dot_dimension_numbers<[1], [0], [0], [1], [0, 0, 1, 1], [], []>} : vector<4x512xbf16>, vector<512x512xbf16>, vector<4x512xf32> -> vector<4x512xf32>
    %110 = arith.addf %104, %109 : vector<4x512xf32>
    %111 = vector.extract_strided_slice %86 {offsets = [1, 0, 0], sizes = [2, 2, 512], strides = [1, 1, 1]} : vector<4x2x512xbf16> to vector<2x2x512xbf16>
    %112 = vector.shape_cast %111 : vector<2x2x512xbf16> to vector<4x512xbf16>
    %c1_135 = arith.constant 1 : index
    %c1_136 = arith.constant 1 : index
    %c0_137 = arith.constant 0 : index
    %c0_138 = arith.constant 0 : index
    %113 = vector.load %arg3[%c1_135, %c1_136, %c0_137, %c0_138] : memref<3x3x512x512xbf16, #tpu.memory_space<vmem>>, vector<1x1x512x512xbf16>
    %114 = vector.shape_cast %113 : vector<1x1x512x512xbf16> to vector<512x512xbf16>
    %cst_139 = arith.constant dense<0.000000e+00> : vector<4x512xf32>
    %115 = tpu.matmul %112, %114, %cst_139 {dimension_numbers = #tpu.dot_dimension_numbers<[1], [0], [0], [1], [0, 0, 1, 1], [], []>} : vector<4x512xbf16>, vector<512x512xbf16>, vector<4x512xf32> -> vector<4x512xf32>
    %116 = arith.addf %110, %115 : vector<4x512xf32>
    %117 = vector.extract_strided_slice %87 {offsets = [1, 0, 0], sizes = [2, 2, 512], strides = [1, 1, 1]} : vector<4x2x512xbf16> to vector<2x2x512xbf16>
    %118 = vector.shape_cast %117 : vector<2x2x512xbf16> to vector<4x512xbf16>
    %c1_140 = arith.constant 1 : index
    %c2_141 = arith.constant 2 : index
    %c0_142 = arith.constant 0 : index
    %c0_143 = arith.constant 0 : index
    %119 = vector.load %arg3[%c1_140, %c2_141, %c0_142, %c0_143] : memref<3x3x512x512xbf16, #tpu.memory_space<vmem>>, vector<1x1x512x512xbf16>
    %120 = vector.shape_cast %119 : vector<1x1x512x512xbf16> to vector<512x512xbf16>
    %cst_144 = arith.constant dense<0.000000e+00> : vector<4x512xf32>
    %121 = tpu.matmul %118, %120, %cst_144 {dimension_numbers = #tpu.dot_dimension_numbers<[1], [0], [0], [1], [0, 0, 1, 1], [], []>} : vector<4x512xbf16>, vector<512x512xbf16>, vector<4x512xf32> -> vector<4x512xf32>
    %122 = arith.addf %116, %121 : vector<4x512xf32>
    %123 = vector.extract_strided_slice %85 {offsets = [2, 0, 0], sizes = [2, 2, 512], strides = [1, 1, 1]} : vector<4x2x512xbf16> to vector<2x2x512xbf16>
    %124 = vector.shape_cast %123 : vector<2x2x512xbf16> to vector<4x512xbf16>
    %c2_145 = arith.constant 2 : index
    %c0_146 = arith.constant 0 : index
    %c0_147 = arith.constant 0 : index
    %c0_148 = arith.constant 0 : index
    %125 = vector.load %arg3[%c2_145, %c0_146, %c0_147, %c0_148] : memref<3x3x512x512xbf16, #tpu.memory_space<vmem>>, vector<1x1x512x512xbf16>
    %126 = vector.shape_cast %125 : vector<1x1x512x512xbf16> to vector<512x512xbf16>
    %cst_149 = arith.constant dense<0.000000e+00> : vector<4x512xf32>
    %127 = tpu.matmul %124, %126, %cst_149 {dimension_numbers = #tpu.dot_dimension_numbers<[1], [0], [0], [1], [0, 0, 1, 1], [], []>} : vector<4x512xbf16>, vector<512x512xbf16>, vector<4x512xf32> -> vector<4x512xf32>
    %128 = arith.addf %122, %127 : vector<4x512xf32>
    %129 = vector.extract_strided_slice %86 {offsets = [2, 0, 0], sizes = [2, 2, 512], strides = [1, 1, 1]} : vector<4x2x512xbf16> to vector<2x2x512xbf16>
    %130 = vector.shape_cast %129 : vector<2x2x512xbf16> to vector<4x512xbf16>
    %c2_150 = arith.constant 2 : index
    %c1_151 = arith.constant 1 : index
    %c0_152 = arith.constant 0 : index
    %c0_153 = arith.constant 0 : index
    %131 = vector.load %arg3[%c2_150, %c1_151, %c0_152, %c0_153] : memref<3x3x512x512xbf16, #tpu.memory_space<vmem>>, vector<1x1x512x512xbf16>
    %132 = vector.shape_cast %131 : vector<1x1x512x512xbf16> to vector<512x512xbf16>
    %cst_154 = arith.constant dense<0.000000e+00> : vector<4x512xf32>
    %133 = tpu.matmul %130, %132, %cst_154 {dimension_numbers = #tpu.dot_dimension_numbers<[1], [0], [0], [1], [0, 0, 1, 1], [], []>} : vector<4x512xbf16>, vector<512x512xbf16>, vector<4x512xf32> -> vector<4x512xf32>
    %134 = arith.addf %128, %133 : vector<4x512xf32>
    %135 = vector.extract_strided_slice %87 {offsets = [2, 0, 0], sizes = [2, 2, 512], strides = [1, 1, 1]} : vector<4x2x512xbf16> to vector<2x2x512xbf16>
    %136 = vector.shape_cast %135 : vector<2x2x512xbf16> to vector<4x512xbf16>
    %c2_155 = arith.constant 2 : index
    %c2_156 = arith.constant 2 : index
    %c0_157 = arith.constant 0 : index
    %c0_158 = arith.constant 0 : index
    %137 = vector.load %arg3[%c2_155, %c2_156, %c0_157, %c0_158] : memref<3x3x512x512xbf16, #tpu.memory_space<vmem>>, vector<1x1x512x512xbf16>
    %138 = vector.shape_cast %137 : vector<1x1x512x512xbf16> to vector<512x512xbf16>
    %cst_159 = arith.constant dense<0.000000e+00> : vector<4x512xf32>
    %139 = tpu.matmul %136, %138, %cst_159 {dimension_numbers = #tpu.dot_dimension_numbers<[1], [0], [0], [1], [0, 0, 1, 1], [], []>} : vector<4x512xbf16>, vector<512x512xbf16>, vector<4x512xf32> -> vector<4x512xf32>
    %140 = arith.addf %134, %139 : vector<4x512xf32>
    %c0_160 = arith.constant 0 : index
    %c0_161 = arith.constant 0 : index
    %141 = vector.load %arg4[%c0_160, %c0_161] : memref<256x512xbf16, #tpu.memory_space<vmem>>, vector<256x512xbf16>
    %cst_162 = arith.constant dense<0.000000e+00> : vector<4x512xf32>
    %142 = tpu.matmul %20, %141, %cst_162 {dimension_numbers = #tpu.dot_dimension_numbers<[1], [0], [0], [1], [0, 0, 1, 1], [], []>} : vector<4x256xbf16>, vector<256x512xbf16>, vector<4x512xf32> -> vector<4x512xf32>
    %143 = arith.addf %140, %142 : vector<4x512xf32>
    %cst_163 = arith.constant 0.000000e+00 : f32
    %144 = vector.broadcast %cst_163 : f32 to vector<4x512xf32>
    %145 = arith.maximumf %143, %144 : vector<4x512xf32>
    %146 = arith.truncf %145 : vector<4x512xf32> to vector<4x512xbf16>
    %147 = vector.shape_cast %146 : vector<4x512xbf16> to vector<2x2x512xbf16>
    %c1_164 = arith.constant 1 : index
    %c1_165 = arith.constant 1 : index
    %c0_166 = arith.constant 0 : index
    %148 = vector.load %arg10[%c1_164, %c1_165, %c0_166] : memref<4x4x512xbf16, #tpu.memory_space<vmem>>, vector<2x2x512xbf16>
    tpu.vector_store %arg10[%c1_164, %c1_165, %c0_166], %147 {strides = array<i32>} : memref<4x4x512xbf16, #tpu.memory_space<vmem>>, vector<2x2x512xbf16>,
    %c0_167 = arith.constant 0 : index
    %c0_168 = arith.constant 0 : index
    %c0_169 = arith.constant 0 : index
    %149 = vector.load %arg10[%c0_167, %c0_168, %c0_169] : memref<4x4x512xbf16, #tpu.memory_space<vmem>>, vector<4x2x512xbf16>
    %c0_170 = arith.constant 0 : index
    %c1_171 = arith.constant 1 : index
    %c0_172 = arith.constant 0 : index
    %150 = vector.load %arg10[%c0_170, %c1_171, %c0_172] : memref<4x4x512xbf16, #tpu.memory_space<vmem>>, vector<4x2x512xbf16>
    %c0_173 = arith.constant 0 : index
    %c2_174 = arith.constant 2 : index
    %c0_175 = arith.constant 0 : index
    %151 = vector.load %arg10[%c0_173, %c2_174, %c0_175] : memref<4x4x512xbf16, #tpu.memory_space<vmem>>, vector<4x2x512xbf16>
    %152 = vector.extract_strided_slice %149 {offsets = [0, 0, 0], sizes = [2, 2, 512], strides = [1, 1, 1]} : vector<4x2x512xbf16> to vector<2x2x512xbf16>
    %153 = vector.shape_cast %152 : vector<2x2x512xbf16> to vector<4x512xbf16>
    %c0_176 = arith.constant 0 : index
    %c0_177 = arith.constant 0 : index
    %c0_178 = arith.constant 0 : index
    %c0_179 = arith.constant 0 : index
    %154 = vector.load %arg5[%c0_176, %c0_177, %c0_178, %c0_179] : memref<3x3x512x512xbf16, #tpu.memory_space<vmem>>, vector<1x1x512x512xbf16>
    %155 = vector.shape_cast %154 : vector<1x1x512x512xbf16> to vector<512x512xbf16>
    %cst_180 = arith.constant dense<0.000000e+00> : vector<4x512xf32>
    %156 = tpu.matmul %153, %155, %cst_180 {dimension_numbers = #tpu.dot_dimension_numbers<[1], [0], [0], [1], [0, 0, 1, 1], [], []>} : vector<4x512xbf16>, vector<512x512xbf16>, vector<4x512xf32> -> vector<4x512xf32>
    %157 = vector.extract_strided_slice %150 {offsets = [0, 0, 0], sizes = [2, 2, 512], strides = [1, 1, 1]} : vector<4x2x512xbf16> to vector<2x2x512xbf16>
    %158 = vector.shape_cast %157 : vector<2x2x512xbf16> to vector<4x512xbf16>
    %c0_181 = arith.constant 0 : index
    %c1_182 = arith.constant 1 : index
    %c0_183 = arith.constant 0 : index
    %c0_184 = arith.constant 0 : index
    %159 = vector.load %arg5[%c0_181, %c1_182, %c0_183, %c0_184] : memref<3x3x512x512xbf16, #tpu.memory_space<vmem>>, vector<1x1x512x512xbf16>
    %160 = vector.shape_cast %159 : vector<1x1x512x512xbf16> to vector<512x512xbf16>
    %cst_185 = arith.constant dense<0.000000e+00> : vector<4x512xf32>
    %161 = tpu.matmul %158, %160, %cst_185 {dimension_numbers = #tpu.dot_dimension_numbers<[1], [0], [0], [1], [0, 0, 1, 1], [], []>} : vector<4x512xbf16>, vector<512x512xbf16>, vector<4x512xf32> -> vector<4x512xf32>
    %162 = arith.addf %156, %161 : vector<4x512xf32>
    %163 = vector.extract_strided_slice %151 {offsets = [0, 0, 0], sizes = [2, 2, 512], strides = [1, 1, 1]} : vector<4x2x512xbf16> to vector<2x2x512xbf16>
    %164 = vector.shape_cast %163 : vector<2x2x512xbf16> to vector<4x512xbf16>
    %c0_186 = arith.constant 0 : index
    %c2_187 = arith.constant 2 : index
    %c0_188 = arith.constant 0 : index
    %c0_189 = arith.constant 0 : index
    %165 = vector.load %arg5[%c0_186, %c2_187, %c0_188, %c0_189] : memref<3x3x512x512xbf16, #tpu.memory_space<vmem>>, vector<1x1x512x512xbf16>
    %166 = vector.shape_cast %165 : vector<1x1x512x512xbf16> to vector<512x512xbf16>
    %cst_190 = arith.constant dense<0.000000e+00> : vector<4x512xf32>
    %167 = tpu.matmul %164, %166, %cst_190 {dimension_numbers = #tpu.dot_dimension_numbers<[1], [0], [0], [1], [0, 0, 1, 1], [], []>} : vector<4x512xbf16>, vector<512x512xbf16>, vector<4x512xf32> -> vector<4x512xf32>
    %168 = arith.addf %162, %167 : vector<4x512xf32>
    %169 = vector.extract_strided_slice %149 {offsets = [1, 0, 0], sizes = [2, 2, 512], strides = [1, 1, 1]} : vector<4x2x512xbf16> to vector<2x2x512xbf16>
    %170 = vector.shape_cast %169 : vector<2x2x512xbf16> to vector<4x512xbf16>
    %c1_191 = arith.constant 1 : index
    %c0_192 = arith.constant 0 : index
    %c0_193 = arith.constant 0 : index
    %c0_194 = arith.constant 0 : index
    %171 = vector.load %arg5[%c1_191, %c0_192, %c0_193, %c0_194] : memref<3x3x512x512xbf16, #tpu.memory_space<vmem>>, vector<1x1x512x512xbf16>
    %172 = vector.shape_cast %171 : vector<1x1x512x512xbf16> to vector<512x512xbf16>
    %cst_195 = arith.constant dense<0.000000e+00> : vector<4x512xf32>
    %173 = tpu.matmul %170, %172, %cst_195 {dimension_numbers = #tpu.dot_dimension_numbers<[1], [0], [0], [1], [0, 0, 1, 1], [], []>} : vector<4x512xbf16>, vector<512x512xbf16>, vector<4x512xf32> -> vector<4x512xf32>
    %174 = arith.addf %168, %173 : vector<4x512xf32>
    %175 = vector.extract_strided_slice %150 {offsets = [1, 0, 0], sizes = [2, 2, 512], strides = [1, 1, 1]} : vector<4x2x512xbf16> to vector<2x2x512xbf16>
    %176 = vector.shape_cast %175 : vector<2x2x512xbf16> to vector<4x512xbf16>
    %c1_196 = arith.constant 1 : index
    %c1_197 = arith.constant 1 : index
    %c0_198 = arith.constant 0 : index
    %c0_199 = arith.constant 0 : index
    %177 = vector.load %arg5[%c1_196, %c1_197, %c0_198, %c0_199] : memref<3x3x512x512xbf16, #tpu.memory_space<vmem>>, vector<1x1x512x512xbf16>
    %178 = vector.shape_cast %177 : vector<1x1x512x512xbf16> to vector<512x512xbf16>
    %cst_200 = arith.constant dense<0.000000e+00> : vector<4x512xf32>
    %179 = tpu.matmul %176, %178, %cst_200 {dimension_numbers = #tpu.dot_dimension_numbers<[1], [0], [0], [1], [0, 0, 1, 1], [], []>} : vector<4x512xbf16>, vector<512x512xbf16>, vector<4x512xf32> -> vector<4x512xf32>
    %180 = arith.addf %174, %179 : vector<4x512xf32>
    %181 = vector.extract_strided_slice %151 {offsets = [1, 0, 0], sizes = [2, 2, 512], strides = [1, 1, 1]} : vector<4x2x512xbf16> to vector<2x2x512xbf16>
    %182 = vector.shape_cast %181 : vector<2x2x512xbf16> to vector<4x512xbf16>
    %c1_201 = arith.constant 1 : index
    %c2_202 = arith.constant 2 : index
    %c0_203 = arith.constant 0 : index
    %c0_204 = arith.constant 0 : index
    %183 = vector.load %arg5[%c1_201, %c2_202, %c0_203, %c0_204] : memref<3x3x512x512xbf16, #tpu.memory_space<vmem>>, vector<1x1x512x512xbf16>
    %184 = vector.shape_cast %183 : vector<1x1x512x512xbf16> to vector<512x512xbf16>
    %cst_205 = arith.constant dense<0.000000e+00> : vector<4x512xf32>
    %185 = tpu.matmul %182, %184, %cst_205 {dimension_numbers = #tpu.dot_dimension_numbers<[1], [0], [0], [1], [0, 0, 1, 1], [], []>} : vector<4x512xbf16>, vector<512x512xbf16>, vector<4x512xf32> -> vector<4x512xf32>
    %186 = arith.addf %180, %185 : vector<4x512xf32>
    %187 = vector.extract_strided_slice %149 {offsets = [2, 0, 0], sizes = [2, 2, 512], strides = [1, 1, 1]} : vector<4x2x512xbf16> to vector<2x2x512xbf16>
    %188 = vector.shape_cast %187 : vector<2x2x512xbf16> to vector<4x512xbf16>
    %c2_206 = arith.constant 2 : index
    %c0_207 = arith.constant 0 : index
    %c0_208 = arith.constant 0 : index
    %c0_209 = arith.constant 0 : index
    %189 = vector.load %arg5[%c2_206, %c0_207, %c0_208, %c0_209] : memref<3x3x512x512xbf16, #tpu.memory_space<vmem>>, vector<1x1x512x512xbf16>
    %190 = vector.shape_cast %189 : vector<1x1x512x512xbf16> to vector<512x512xbf16>
    %cst_210 = arith.constant dense<0.000000e+00> : vector<4x512xf32>
    %191 = tpu.matmul %188, %190, %cst_210 {dimension_numbers = #tpu.dot_dimension_numbers<[1], [0], [0], [1], [0, 0, 1, 1], [], []>} : vector<4x512xbf16>, vector<512x512xbf16>, vector<4x512xf32> -> vector<4x512xf32>
    %192 = arith.addf %186, %191 : vector<4x512xf32>
    %193 = vector.extract_strided_slice %150 {offsets = [2, 0, 0], sizes = [2, 2, 512], strides = [1, 1, 1]} : vector<4x2x512xbf16> to vector<2x2x512xbf16>
    %194 = vector.shape_cast %193 : vector<2x2x512xbf16> to vector<4x512xbf16>
    %c2_211 = arith.constant 2 : index
    %c1_212 = arith.constant 1 : index
    %c0_213 = arith.constant 0 : index
    %c0_214 = arith.constant 0 : index
    %195 = vector.load %arg5[%c2_211, %c1_212, %c0_213, %c0_214] : memref<3x3x512x512xbf16, #tpu.memory_space<vmem>>, vector<1x1x512x512xbf16>
    %196 = vector.shape_cast %195 : vector<1x1x512x512xbf16> to vector<512x512xbf16>
    %cst_215 = arith.constant dense<0.000000e+00> : vector<4x512xf32>
    %197 = tpu.matmul %194, %196, %cst_215 {dimension_numbers = #tpu.dot_dimension_numbers<[1], [0], [0], [1], [0, 0, 1, 1], [], []>} : vector<4x512xbf16>, vector<512x512xbf16>, vector<4x512xf32> -> vector<4x512xf32>
    %198 = arith.addf %192, %197 : vector<4x512xf32>
    %199 = vector.extract_strided_slice %151 {offsets = [2, 0, 0], sizes = [2, 2, 512], strides = [1, 1, 1]} : vector<4x2x512xbf16> to vector<2x2x512xbf16>
    %200 = vector.shape_cast %199 : vector<2x2x512xbf16> to vector<4x512xbf16>
    %c2_216 = arith.constant 2 : index
    %c2_217 = arith.constant 2 : index
    %c0_218 = arith.constant 0 : index
    %c0_219 = arith.constant 0 : index
    %201 = vector.load %arg5[%c2_216, %c2_217, %c0_218, %c0_219] : memref<3x3x512x512xbf16, #tpu.memory_space<vmem>>, vector<1x1x512x512xbf16>
    %202 = vector.shape_cast %201 : vector<1x1x512x512xbf16> to vector<512x512xbf16>
    %cst_220 = arith.constant dense<0.000000e+00> : vector<4x512xf32>
    %203 = tpu.matmul %200, %202, %cst_220 {dimension_numbers = #tpu.dot_dimension_numbers<[1], [0], [0], [1], [0, 0, 1, 1], [], []>} : vector<4x512xbf16>, vector<512x512xbf16>, vector<4x512xf32> -> vector<4x512xf32>
    %204 = arith.addf %198, %203 : vector<4x512xf32>
    %cst_221 = arith.constant 0.000000e+00 : f32
    %205 = vector.broadcast %cst_221 : f32 to vector<4x512xf32>
    %206 = arith.maximumf %204, %205 : vector<4x512xf32>
    %207 = arith.truncf %206 : vector<4x512xf32> to vector<4x512xbf16>
    %208 = vector.shape_cast %207 : vector<4x512xbf16> to vector<2x2x512xbf16>
    %c1_222 = arith.constant 1 : index
    %c1_223 = arith.constant 1 : index
    %c0_224 = arith.constant 0 : index
    %209 = vector.load %arg9[%c1_222, %c1_223, %c0_224] : memref<4x4x512xbf16, #tpu.memory_space<vmem>>, vector<2x2x512xbf16>
    tpu.vector_store %arg9[%c1_222, %c1_223, %c0_224], %208 {strides = array<i32>} : memref<4x4x512xbf16, #tpu.memory_space<vmem>>, vector<2x2x512xbf16>,
    %c0_225 = arith.constant 0 : index
    %c0_226 = arith.constant 0 : index
    %c0_227 = arith.constant 0 : index
    %210 = vector.load %arg9[%c0_225, %c0_226, %c0_227] : memref<4x4x512xbf16, #tpu.memory_space<vmem>>, vector<4x2x512xbf16>
    %c0_228 = arith.constant 0 : index
    %c1_229 = arith.constant 1 : index
    %c0_230 = arith.constant 0 : index
    %211 = vector.load %arg9[%c0_228, %c1_229, %c0_230] : memref<4x4x512xbf16, #tpu.memory_space<vmem>>, vector<4x2x512xbf16>
    %c0_231 = arith.constant 0 : index
    %c2_232 = arith.constant 2 : index
    %c0_233 = arith.constant 0 : index
    %212 = vector.load %arg9[%c0_231, %c2_232, %c0_233] : memref<4x4x512xbf16, #tpu.memory_space<vmem>>, vector<4x2x512xbf16>
    %213 = vector.extract_strided_slice %210 {offsets = [0, 0, 0], sizes = [2, 2, 512], strides = [1, 1, 1]} : vector<4x2x512xbf16> to vector<2x2x512xbf16>
    %214 = vector.shape_cast %213 : vector<2x2x512xbf16> to vector<4x512xbf16>
    %c0_234 = arith.constant 0 : index
    %c0_235 = arith.constant 0 : index
    %c0_236 = arith.constant 0 : index
    %c0_237 = arith.constant 0 : index
    %215 = vector.load %arg6[%c0_234, %c0_235, %c0_236, %c0_237] : memref<3x3x512x512xbf16, #tpu.memory_space<vmem>>, vector<1x1x512x512xbf16>
    %216 = vector.shape_cast %215 : vector<1x1x512x512xbf16> to vector<512x512xbf16>
    %cst_238 = arith.constant dense<0.000000e+00> : vector<4x512xf32>
    %217 = tpu.matmul %214, %216, %cst_238 {dimension_numbers = #tpu.dot_dimension_numbers<[1], [0], [0], [1], [0, 0, 1, 1], [], []>} : vector<4x512xbf16>, vector<512x512xbf16>, vector<4x512xf32> -> vector<4x512xf32>
    %218 = vector.extract_strided_slice %211 {offsets = [0, 0, 0], sizes = [2, 2, 512], strides = [1, 1, 1]} : vector<4x2x512xbf16> to vector<2x2x512xbf16>
    %219 = vector.shape_cast %218 : vector<2x2x512xbf16> to vector<4x512xbf16>
    %c0_239 = arith.constant 0 : index
    %c1_240 = arith.constant 1 : index
    %c0_241 = arith.constant 0 : index
    %c0_242 = arith.constant 0 : index
    %220 = vector.load %arg6[%c0_239, %c1_240, %c0_241, %c0_242] : memref<3x3x512x512xbf16, #tpu.memory_space<vmem>>, vector<1x1x512x512xbf16>
    %221 = vector.shape_cast %220 : vector<1x1x512x512xbf16> to vector<512x512xbf16>
    %cst_243 = arith.constant dense<0.000000e+00> : vector<4x512xf32>
    %222 = tpu.matmul %219, %221, %cst_243 {dimension_numbers = #tpu.dot_dimension_numbers<[1], [0], [0], [1], [0, 0, 1, 1], [], []>} : vector<4x512xbf16>, vector<512x512xbf16>, vector<4x512xf32> -> vector<4x512xf32>
    %223 = arith.addf %217, %222 : vector<4x512xf32>
    %224 = vector.extract_strided_slice %212 {offsets = [0, 0, 0], sizes = [2, 2, 512], strides = [1, 1, 1]} : vector<4x2x512xbf16> to vector<2x2x512xbf16>
    %225 = vector.shape_cast %224 : vector<2x2x512xbf16> to vector<4x512xbf16>
    %c0_244 = arith.constant 0 : index
    %c2_245 = arith.constant 2 : index
    %c0_246 = arith.constant 0 : index
    %c0_247 = arith.constant 0 : index
    %226 = vector.load %arg6[%c0_244, %c2_245, %c0_246, %c0_247] : memref<3x3x512x512xbf16, #tpu.memory_space<vmem>>, vector<1x1x512x512xbf16>
    %227 = vector.shape_cast %226 : vector<1x1x512x512xbf16> to vector<512x512xbf16>
    %cst_248 = arith.constant dense<0.000000e+00> : vector<4x512xf32>
    %228 = tpu.matmul %225, %227, %cst_248 {dimension_numbers = #tpu.dot_dimension_numbers<[1], [0], [0], [1], [0, 0, 1, 1], [], []>} : vector<4x512xbf16>, vector<512x512xbf16>, vector<4x512xf32> -> vector<4x512xf32>
    %229 = arith.addf %223, %228 : vector<4x512xf32>
    %230 = vector.extract_strided_slice %210 {offsets = [1, 0, 0], sizes = [2, 2, 512], strides = [1, 1, 1]} : vector<4x2x512xbf16> to vector<2x2x512xbf16>
    %231 = vector.shape_cast %230 : vector<2x2x512xbf16> to vector<4x512xbf16>
    %c1_249 = arith.constant 1 : index
    %c0_250 = arith.constant 0 : index
    %c0_251 = arith.constant 0 : index
    %c0_252 = arith.constant 0 : index
    %232 = vector.load %arg6[%c1_249, %c0_250, %c0_251, %c0_252] : memref<3x3x512x512xbf16, #tpu.memory_space<vmem>>, vector<1x1x512x512xbf16>
    %233 = vector.shape_cast %232 : vector<1x1x512x512xbf16> to vector<512x512xbf16>
    %cst_253 = arith.constant dense<0.000000e+00> : vector<4x512xf32>
    %234 = tpu.matmul %231, %233, %cst_253 {dimension_numbers = #tpu.dot_dimension_numbers<[1], [0], [0], [1], [0, 0, 1, 1], [], []>} : vector<4x512xbf16>, vector<512x512xbf16>, vector<4x512xf32> -> vector<4x512xf32>
    %235 = arith.addf %229, %234 : vector<4x512xf32>
    %236 = vector.extract_strided_slice %211 {offsets = [1, 0, 0], sizes = [2, 2, 512], strides = [1, 1, 1]} : vector<4x2x512xbf16> to vector<2x2x512xbf16>
    %237 = vector.shape_cast %236 : vector<2x2x512xbf16> to vector<4x512xbf16>
    %c1_254 = arith.constant 1 : index
    %c1_255 = arith.constant 1 : index
    %c0_256 = arith.constant 0 : index
    %c0_257 = arith.constant 0 : index
    %238 = vector.load %arg6[%c1_254, %c1_255, %c0_256, %c0_257] : memref<3x3x512x512xbf16, #tpu.memory_space<vmem>>, vector<1x1x512x512xbf16>
    %239 = vector.shape_cast %238 : vector<1x1x512x512xbf16> to vector<512x512xbf16>
    %cst_258 = arith.constant dense<0.000000e+00> : vector<4x512xf32>
    %240 = tpu.matmul %237, %239, %cst_258 {dimension_numbers = #tpu.dot_dimension_numbers<[1], [0], [0], [1], [0, 0, 1, 1], [], []>} : vector<4x512xbf16>, vector<512x512xbf16>, vector<4x512xf32> -> vector<4x512xf32>
    %241 = arith.addf %235, %240 : vector<4x512xf32>
    %242 = vector.extract_strided_slice %212 {offsets = [1, 0, 0], sizes = [2, 2, 512], strides = [1, 1, 1]} : vector<4x2x512xbf16> to vector<2x2x512xbf16>
    %243 = vector.shape_cast %242 : vector<2x2x512xbf16> to vector<4x512xbf16>
    %c1_259 = arith.constant 1 : index
    %c2_260 = arith.constant 2 : index
    %c0_261 = arith.constant 0 : index
    %c0_262 = arith.constant 0 : index
    %244 = vector.load %arg6[%c1_259, %c2_260, %c0_261, %c0_262] : memref<3x3x512x512xbf16, #tpu.memory_space<vmem>>, vector<1x1x512x512xbf16>
    %245 = vector.shape_cast %244 : vector<1x1x512x512xbf16> to vector<512x512xbf16>
    %cst_263 = arith.constant dense<0.000000e+00> : vector<4x512xf32>
    %246 = tpu.matmul %243, %245, %cst_263 {dimension_numbers = #tpu.dot_dimension_numbers<[1], [0], [0], [1], [0, 0, 1, 1], [], []>} : vector<4x512xbf16>, vector<512x512xbf16>, vector<4x512xf32> -> vector<4x512xf32>
    %247 = arith.addf %241, %246 : vector<4x512xf32>
    %248 = vector.extract_strided_slice %210 {offsets = [2, 0, 0], sizes = [2, 2, 512], strides = [1, 1, 1]} : vector<4x2x512xbf16> to vector<2x2x512xbf16>
    %249 = vector.shape_cast %248 : vector<2x2x512xbf16> to vector<4x512xbf16>
    %c2_264 = arith.constant 2 : index
    %c0_265 = arith.constant 0 : index
    %c0_266 = arith.constant 0 : index
    %c0_267 = arith.constant 0 : index
    %250 = vector.load %arg6[%c2_264, %c0_265, %c0_266, %c0_267] : memref<3x3x512x512xbf16, #tpu.memory_space<vmem>>, vector<1x1x512x512xbf16>
    %251 = vector.shape_cast %250 : vector<1x1x512x512xbf16> to vector<512x512xbf16>
    %cst_268 = arith.constant dense<0.000000e+00> : vector<4x512xf32>
    %252 = tpu.matmul %249, %251, %cst_268 {dimension_numbers = #tpu.dot_dimension_numbers<[1], [0], [0], [1], [0, 0, 1, 1], [], []>} : vector<4x512xbf16>, vector<512x512xbf16>, vector<4x512xf32> -> vector<4x512xf32>
    %253 = arith.addf %247, %252 : vector<4x512xf32>
    %254 = vector.extract_strided_slice %211 {offsets = [2, 0, 0], sizes = [2, 2, 512], strides = [1, 1, 1]} : vector<4x2x512xbf16> to vector<2x2x512xbf16>
    %255 = vector.shape_cast %254 : vector<2x2x512xbf16> to vector<4x512xbf16>
    %c2_269 = arith.constant 2 : index
    %c1_270 = arith.constant 1 : index
    %c0_271 = arith.constant 0 : index
    %c0_272 = arith.constant 0 : index
    %256 = vector.load %arg6[%c2_269, %c1_270, %c0_271, %c0_272] : memref<3x3x512x512xbf16, #tpu.memory_space<vmem>>, vector<1x1x512x512xbf16>
    %257 = vector.shape_cast %256 : vector<1x1x512x512xbf16> to vector<512x512xbf16>
    %cst_273 = arith.constant dense<0.000000e+00> : vector<4x512xf32>
    %258 = tpu.matmul %255, %257, %cst_273 {dimension_numbers = #tpu.dot_dimension_numbers<[1], [0], [0], [1], [0, 0, 1, 1], [], []>} : vector<4x512xbf16>, vector<512x512xbf16>, vector<4x512xf32> -> vector<4x512xf32>
    %259 = arith.addf %253, %258 : vector<4x512xf32>
    %260 = vector.extract_strided_slice %212 {offsets = [2, 0, 0], sizes = [2, 2, 512], strides = [1, 1, 1]} : vector<4x2x512xbf16> to vector<2x2x512xbf16>
    %261 = vector.shape_cast %260 : vector<2x2x512xbf16> to vector<4x512xbf16>
    %c2_274 = arith.constant 2 : index
    %c2_275 = arith.constant 2 : index
    %c0_276 = arith.constant 0 : index
    %c0_277 = arith.constant 0 : index
    %262 = vector.load %arg6[%c2_274, %c2_275, %c0_276, %c0_277] : memref<3x3x512x512xbf16, #tpu.memory_space<vmem>>, vector<1x1x512x512xbf16>
    %263 = vector.shape_cast %262 : vector<1x1x512x512xbf16> to vector<512x512xbf16>
    %cst_278 = arith.constant dense<0.000000e+00> : vector<4x512xf32>
    %264 = tpu.matmul %261, %263, %cst_278 {dimension_numbers = #tpu.dot_dimension_numbers<[1], [0], [0], [1], [0, 0, 1, 1], [], []>} : vector<4x512xbf16>, vector<512x512xbf16>, vector<4x512xf32> -> vector<4x512xf32>
    %265 = arith.addf %259, %264 : vector<4x512xf32>
    %266 = arith.extf %146 : vector<4x512xbf16> to vector<4x512xf32>
    %267 = arith.addf %265, %266 : vector<4x512xf32>
    %cst_279 = arith.constant 0.000000e+00 : f32
    %268 = vector.broadcast %cst_279 : f32 to vector<4x512xf32>
    %269 = arith.maximumf %267, %268 : vector<4x512xf32>
    %270 = vector.shape_cast %269 : vector<4x512xf32> to vector<1x2x2x512xf32>
    %271 = arith.truncf %270 : vector<1x2x2x512xf32> to vector<1x2x2x512xbf16>
    %c0_280 = arith.constant 0 : index
    %c0_281 = arith.constant 0 : index
    %c0_282 = arith.constant 0 : index
    %c0_283 = arith.constant 0 : index
    %272 = vector.load %arg7[%c0_280, %c0_281, %c0_282, %c0_283] : memref<1x2x2x512xbf16, #tpu.memory_space<vmem>>, vector<1x2x2x512xbf16>
    tpu.vector_store %arg7[%c0_280, %c0_281, %c0_282, %c0_283], %271 {strides = array<i32>} : memref<1x2x2x512xbf16, #tpu.memory_space<vmem>>, vector<1x2x2x512xbf16>,
    return
  }
  func.func @transform_0(%arg0: i32) -> (i32, i32, i32, i32) {
    %c0_i32 = arith.constant 0 : i32
    %c0_i32_0 = arith.constant 0 : i32
    %c0_i32_1 = arith.constant 0 : i32
    %c0_i32_2 = arith.constant 0 : i32
    return %arg0, %c0_i32, %c0_i32_0, %c0_i32_1 : i32, i32, i32, i32
  }
  func.func @transform_1(%arg0: i32) -> (i32, i32, i32, i32) {
    %c0_i32 = arith.constant 0 : i32
    %c0_i32_0 = arith.constant 0 : i32
    %c0_i32_1 = arith.constant 0 : i32
    %c0_i32_2 = arith.constant 0 : i32
    %c0_i32_3 = arith.constant 0 : i32
    return %c0_i32, %c0_i32_0, %c0_i32_1, %c0_i32_2 : i32, i32, i32, i32
  }
  func.func @transform_2(%arg0: i32) -> (i32, i32, i32, i32) {
    %c0_i32 = arith.constant 0 : i32
    %c0_i32_0 = arith.constant 0 : i32
    %c0_i32_1 = arith.constant 0 : i32
    %c0_i32_2 = arith.constant 0 : i32
    %c0_i32_3 = arith.constant 0 : i32
    return %c0_i32, %c0_i32_0, %c0_i32_1, %c0_i32_2 : i32, i32, i32, i32
  }
  func.func @transform_3(%arg0: i32) -> (i32, i32) {
    %c0_i32 = arith.constant 0 : i32
    %c0_i32_0 = arith.constant 0 : i32
    %c0_i32_1 = arith.constant 0 : i32
    return %c0_i32, %c0_i32_0 : i32, i32
  }
  func.func @transform_4(%arg0: i32) -> (i32, i32, i32, i32) {
    %c0_i32 = arith.constant 0 : i32
    %c0_i32_0 = arith.constant 0 : i32
    %c0_i32_1 = arith.constant 0 : i32
    %c0_i32_2 = arith.constant 0 : i32
    %c0_i32_3 = arith.constant 0 : i32
    return %c0_i32, %c0_i32_0, %c0_i32_1, %c0_i32_2 : i32, i32, i32, i32
  }
  func.func @transform_5(%arg0: i32) -> (i32, i32, i32, i32) {
    %c0_i32 = arith.constant 0 : i32
    %c0_i32_0 = arith.constant 0 : i32
    %c0_i32_1 = arith.constant 0 : i32
    %c0_i32_2 = arith.constant 0 : i32
    %c0_i32_3 = arith.constant 0 : i32
    return %c0_i32, %c0_i32_0, %c0_i32_1, %c0_i32_2 : i32, i32, i32, i32
  }
  func.func @transform_6(%arg0: i32) -> (i32, i32, i32, i32) {
    %c0_i32 = arith.constant 0 : i32
    %c0_i32_0 = arith.constant 0 : i32
    %c0_i32_1 = arith.constant 0 : i32
    %c0_i32_2 = arith.constant 0 : i32
    return %arg0, %c0_i32, %c0_i32_0, %c0_i32_1 : i32, i32, i32, i32
  }
}

module attributes {stable_mosaic.version = 11 : i64} {
  func.func @kernel(%arg0: i32, %arg1: memref<1x2x2x512xbf16, #tpu.memory_space<vmem>>, %arg2: memref<3x3x512x256xbf16, #tpu.memory_space<vmem>>, %arg3: memref<3x3x256x128xbf16, #tpu.memory_space<vmem>>, %arg4: memref<512x128xbf16, #tpu.memory_space<vmem>>, %arg5: memref<1x128xbf16, #tpu.memory_space<vmem>>, %arg6: memref<1x1xf32, #tpu.memory_space<vmem>>, %arg7: memref<1x1x4xf32, #tpu.memory_space<vmem>>, %arg8: memref<4x4x512xbf16, #tpu.memory_space<vmem>>, %arg9: memref<4x4x256xbf16, #tpu.memory_space<vmem>>) attributes {dimension_semantics = [#tpu.dimension_semantics<parallel>], iteration_bounds = array<i64: 2>, scalar_prefetch = 0 : i64, scratch_operands = 2 : i64, tpu.core_type = #tpu.core_type<tc>, window_params = [{transform_indices = @transform_0, window_bounds = array<i64: 1, 2, 2, 512>}, {pipeline_mode = #tpu.pipeline_mode<synchronous>, transform_indices = @transform_1, window_bounds = array<i64: 3, 3, 512, 256>}, {pipeline_mode = #tpu.pipeline_mode<synchronous>, transform_indices = @transform_2, window_bounds = array<i64: 3, 3, 256, 128>}, {pipeline_mode = #tpu.pipeline_mode<synchronous>, transform_indices = @transform_3, window_bounds = array<i64: 512, 128>}, {pipeline_mode = #tpu.pipeline_mode<synchronous>, transform_indices = @transform_4, window_bounds = array<i64: 1, 128>}, {pipeline_mode = #tpu.pipeline_mode<synchronous>, transform_indices = @transform_5, window_bounds = array<i64: 1, 1>}, {transform_indices = @transform_6, window_bounds = array<i64: 1, 1, 4>}]} {
    %cst = arith.constant 0.000000e+00 : bf16
    %0 = vector.broadcast %cst : bf16 to vector<1x4x512xbf16>
    %c0 = arith.constant 0 : index
    %c0_0 = arith.constant 0 : index
    %c0_1 = arith.constant 0 : index
    %1 = vector.load %arg8[%c0, %c0_0, %c0_1] : memref<4x4x512xbf16, #tpu.memory_space<vmem>>, vector<1x4x512xbf16>
    tpu.vector_store %arg8[%c0, %c0_0, %c0_1], %0 {strides = array<i32>} : memref<4x4x512xbf16, #tpu.memory_space<vmem>>, vector<1x4x512xbf16>,
    %c3 = arith.constant 3 : index
    %c0_2 = arith.constant 0 : index
    %c0_3 = arith.constant 0 : index
    %2 = vector.load %arg8[%c3, %c0_2, %c0_3] : memref<4x4x512xbf16, #tpu.memory_space<vmem>>, vector<1x4x512xbf16>
    tpu.vector_store %arg8[%c3, %c0_2, %c0_3], %0 {strides = array<i32>} : memref<4x4x512xbf16, #tpu.memory_space<vmem>>, vector<1x4x512xbf16>,
    %cst_4 = arith.constant 0.000000e+00 : bf16
    %3 = vector.broadcast %cst_4 : bf16 to vector<2x1x512xbf16>
    %c1 = arith.constant 1 : index
    %c0_5 = arith.constant 0 : index
    %c0_6 = arith.constant 0 : index
    %4 = vector.load %arg8[%c1, %c0_5, %c0_6] : memref<4x4x512xbf16, #tpu.memory_space<vmem>>, vector<2x1x512xbf16>
    tpu.vector_store %arg8[%c1, %c0_5, %c0_6], %3 {strides = array<i32>} : memref<4x4x512xbf16, #tpu.memory_space<vmem>>, vector<2x1x512xbf16>,
    %c1_7 = arith.constant 1 : index
    %c3_8 = arith.constant 3 : index
    %c0_9 = arith.constant 0 : index
    %5 = vector.load %arg8[%c1_7, %c3_8, %c0_9] : memref<4x4x512xbf16, #tpu.memory_space<vmem>>, vector<2x1x512xbf16>
    tpu.vector_store %arg8[%c1_7, %c3_8, %c0_9], %3 {strides = array<i32>} : memref<4x4x512xbf16, #tpu.memory_space<vmem>>, vector<2x1x512xbf16>,
    %cst_10 = arith.constant 0.000000e+00 : bf16
    %6 = vector.broadcast %cst_10 : bf16 to vector<1x4x256xbf16>
    %c0_11 = arith.constant 0 : index
    %c0_12 = arith.constant 0 : index
    %c0_13 = arith.constant 0 : index
    %7 = vector.load %arg9[%c0_11, %c0_12, %c0_13] : memref<4x4x256xbf16, #tpu.memory_space<vmem>>, vector<1x4x256xbf16>
    tpu.vector_store %arg9[%c0_11, %c0_12, %c0_13], %6 {strides = array<i32>} : memref<4x4x256xbf16, #tpu.memory_space<vmem>>, vector<1x4x256xbf16>,
    %c3_14 = arith.constant 3 : index
    %c0_15 = arith.constant 0 : index
    %c0_16 = arith.constant 0 : index
    %8 = vector.load %arg9[%c3_14, %c0_15, %c0_16] : memref<4x4x256xbf16, #tpu.memory_space<vmem>>, vector<1x4x256xbf16>
    tpu.vector_store %arg9[%c3_14, %c0_15, %c0_16], %6 {strides = array<i32>} : memref<4x4x256xbf16, #tpu.memory_space<vmem>>, vector<1x4x256xbf16>,
    %cst_17 = arith.constant 0.000000e+00 : bf16
    %9 = vector.broadcast %cst_17 : bf16 to vector<2x1x256xbf16>
    %c1_18 = arith.constant 1 : index
    %c0_19 = arith.constant 0 : index
    %c0_20 = arith.constant 0 : index
    %10 = vector.load %arg9[%c1_18, %c0_19, %c0_20] : memref<4x4x256xbf16, #tpu.memory_space<vmem>>, vector<2x1x256xbf16>
    tpu.vector_store %arg9[%c1_18, %c0_19, %c0_20], %9 {strides = array<i32>} : memref<4x4x256xbf16, #tpu.memory_space<vmem>>, vector<2x1x256xbf16>,
    %c1_21 = arith.constant 1 : index
    %c3_22 = arith.constant 3 : index
    %c0_23 = arith.constant 0 : index
    %11 = vector.load %arg9[%c1_21, %c3_22, %c0_23] : memref<4x4x256xbf16, #tpu.memory_space<vmem>>, vector<2x1x256xbf16>
    tpu.vector_store %arg9[%c1_21, %c3_22, %c0_23], %9 {strides = array<i32>} : memref<4x4x256xbf16, #tpu.memory_space<vmem>>, vector<2x1x256xbf16>,
    %c0_24 = arith.constant 0 : index
    %c0_25 = arith.constant 0 : index
    %c0_26 = arith.constant 0 : index
    %c0_27 = arith.constant 0 : index
    %12 = vector.load %arg1[%c0_24, %c0_25, %c0_26, %c0_27] : memref<1x2x2x512xbf16, #tpu.memory_space<vmem>>, vector<1x2x2x512xbf16>
    %13 = vector.shape_cast %12 : vector<1x2x2x512xbf16> to vector<2x2x512xbf16>
    %c1_28 = arith.constant 1 : index
    %c1_29 = arith.constant 1 : index
    %c0_30 = arith.constant 0 : index
    %14 = vector.load %arg8[%c1_28, %c1_29, %c0_30] : memref<4x4x512xbf16, #tpu.memory_space<vmem>>, vector<2x2x512xbf16>
    tpu.vector_store %arg8[%c1_28, %c1_29, %c0_30], %13 {strides = array<i32>} : memref<4x4x512xbf16, #tpu.memory_space<vmem>>, vector<2x2x512xbf16>,
    %c0_31 = arith.constant 0 : index
    %c0_32 = arith.constant 0 : index
    %c0_33 = arith.constant 0 : index
    %15 = vector.load %arg8[%c0_31, %c0_32, %c0_33] : memref<4x4x512xbf16, #tpu.memory_space<vmem>>, vector<4x2x512xbf16>
    %c0_34 = arith.constant 0 : index
    %c1_35 = arith.constant 1 : index
    %c0_36 = arith.constant 0 : index
    %16 = vector.load %arg8[%c0_34, %c1_35, %c0_36] : memref<4x4x512xbf16, #tpu.memory_space<vmem>>, vector<4x2x512xbf16>
    %c0_37 = arith.constant 0 : index
    %c2 = arith.constant 2 : index
    %c0_38 = arith.constant 0 : index
    %17 = vector.load %arg8[%c0_37, %c2, %c0_38] : memref<4x4x512xbf16, #tpu.memory_space<vmem>>, vector<4x2x512xbf16>
    %18 = vector.extract_strided_slice %15 {offsets = [0, 0, 0], sizes = [2, 2, 512], strides = [1, 1, 1]} : vector<4x2x512xbf16> to vector<2x2x512xbf16>
    %19 = vector.shape_cast %18 : vector<2x2x512xbf16> to vector<4x512xbf16>
    %c0_39 = arith.constant 0 : index
    %c0_40 = arith.constant 0 : index
    %c0_41 = arith.constant 0 : index
    %c0_42 = arith.constant 0 : index
    %20 = vector.load %arg2[%c0_39, %c0_40, %c0_41, %c0_42] : memref<3x3x512x256xbf16, #tpu.memory_space<vmem>>, vector<1x1x512x256xbf16>
    %21 = vector.shape_cast %20 : vector<1x1x512x256xbf16> to vector<512x256xbf16>
    %cst_43 = arith.constant dense<0.000000e+00> : vector<4x256xf32>
    %22 = tpu.matmul %19, %21, %cst_43 {dimension_numbers = #tpu.dot_dimension_numbers<[1], [0], [0], [1], [0, 0, 1, 1], [], []>} : vector<4x512xbf16>, vector<512x256xbf16>, vector<4x256xf32> -> vector<4x256xf32>
    %23 = vector.extract_strided_slice %16 {offsets = [0, 0, 0], sizes = [2, 2, 512], strides = [1, 1, 1]} : vector<4x2x512xbf16> to vector<2x2x512xbf16>
    %24 = vector.shape_cast %23 : vector<2x2x512xbf16> to vector<4x512xbf16>
    %c0_44 = arith.constant 0 : index
    %c1_45 = arith.constant 1 : index
    %c0_46 = arith.constant 0 : index
    %c0_47 = arith.constant 0 : index
    %25 = vector.load %arg2[%c0_44, %c1_45, %c0_46, %c0_47] : memref<3x3x512x256xbf16, #tpu.memory_space<vmem>>, vector<1x1x512x256xbf16>
    %26 = vector.shape_cast %25 : vector<1x1x512x256xbf16> to vector<512x256xbf16>
    %cst_48 = arith.constant dense<0.000000e+00> : vector<4x256xf32>
    %27 = tpu.matmul %24, %26, %cst_48 {dimension_numbers = #tpu.dot_dimension_numbers<[1], [0], [0], [1], [0, 0, 1, 1], [], []>} : vector<4x512xbf16>, vector<512x256xbf16>, vector<4x256xf32> -> vector<4x256xf32>
    %28 = arith.addf %22, %27 : vector<4x256xf32>
    %29 = vector.extract_strided_slice %17 {offsets = [0, 0, 0], sizes = [2, 2, 512], strides = [1, 1, 1]} : vector<4x2x512xbf16> to vector<2x2x512xbf16>
    %30 = vector.shape_cast %29 : vector<2x2x512xbf16> to vector<4x512xbf16>
    %c0_49 = arith.constant 0 : index
    %c2_50 = arith.constant 2 : index
    %c0_51 = arith.constant 0 : index
    %c0_52 = arith.constant 0 : index
    %31 = vector.load %arg2[%c0_49, %c2_50, %c0_51, %c0_52] : memref<3x3x512x256xbf16, #tpu.memory_space<vmem>>, vector<1x1x512x256xbf16>
    %32 = vector.shape_cast %31 : vector<1x1x512x256xbf16> to vector<512x256xbf16>
    %cst_53 = arith.constant dense<0.000000e+00> : vector<4x256xf32>
    %33 = tpu.matmul %30, %32, %cst_53 {dimension_numbers = #tpu.dot_dimension_numbers<[1], [0], [0], [1], [0, 0, 1, 1], [], []>} : vector<4x512xbf16>, vector<512x256xbf16>, vector<4x256xf32> -> vector<4x256xf32>
    %34 = arith.addf %28, %33 : vector<4x256xf32>
    %35 = vector.extract_strided_slice %15 {offsets = [1, 0, 0], sizes = [2, 2, 512], strides = [1, 1, 1]} : vector<4x2x512xbf16> to vector<2x2x512xbf16>
    %36 = vector.shape_cast %35 : vector<2x2x512xbf16> to vector<4x512xbf16>
    %c1_54 = arith.constant 1 : index
    %c0_55 = arith.constant 0 : index
    %c0_56 = arith.constant 0 : index
    %c0_57 = arith.constant 0 : index
    %37 = vector.load %arg2[%c1_54, %c0_55, %c0_56, %c0_57] : memref<3x3x512x256xbf16, #tpu.memory_space<vmem>>, vector<1x1x512x256xbf16>
    %38 = vector.shape_cast %37 : vector<1x1x512x256xbf16> to vector<512x256xbf16>
    %cst_58 = arith.constant dense<0.000000e+00> : vector<4x256xf32>
    %39 = tpu.matmul %36, %38, %cst_58 {dimension_numbers = #tpu.dot_dimension_numbers<[1], [0], [0], [1], [0, 0, 1, 1], [], []>} : vector<4x512xbf16>, vector<512x256xbf16>, vector<4x256xf32> -> vector<4x256xf32>
    %40 = arith.addf %34, %39 : vector<4x256xf32>
    %41 = vector.extract_strided_slice %16 {offsets = [1, 0, 0], sizes = [2, 2, 512], strides = [1, 1, 1]} : vector<4x2x512xbf16> to vector<2x2x512xbf16>
    %42 = vector.shape_cast %41 : vector<2x2x512xbf16> to vector<4x512xbf16>
    %c1_59 = arith.constant 1 : index
    %c1_60 = arith.constant 1 : index
    %c0_61 = arith.constant 0 : index
    %c0_62 = arith.constant 0 : index
    %43 = vector.load %arg2[%c1_59, %c1_60, %c0_61, %c0_62] : memref<3x3x512x256xbf16, #tpu.memory_space<vmem>>, vector<1x1x512x256xbf16>
    %44 = vector.shape_cast %43 : vector<1x1x512x256xbf16> to vector<512x256xbf16>
    %cst_63 = arith.constant dense<0.000000e+00> : vector<4x256xf32>
    %45 = tpu.matmul %42, %44, %cst_63 {dimension_numbers = #tpu.dot_dimension_numbers<[1], [0], [0], [1], [0, 0, 1, 1], [], []>} : vector<4x512xbf16>, vector<512x256xbf16>, vector<4x256xf32> -> vector<4x256xf32>
    %46 = arith.addf %40, %45 : vector<4x256xf32>
    %47 = vector.extract_strided_slice %17 {offsets = [1, 0, 0], sizes = [2, 2, 512], strides = [1, 1, 1]} : vector<4x2x512xbf16> to vector<2x2x512xbf16>
    %48 = vector.shape_cast %47 : vector<2x2x512xbf16> to vector<4x512xbf16>
    %c1_64 = arith.constant 1 : index
    %c2_65 = arith.constant 2 : index
    %c0_66 = arith.constant 0 : index
    %c0_67 = arith.constant 0 : index
    %49 = vector.load %arg2[%c1_64, %c2_65, %c0_66, %c0_67] : memref<3x3x512x256xbf16, #tpu.memory_space<vmem>>, vector<1x1x512x256xbf16>
    %50 = vector.shape_cast %49 : vector<1x1x512x256xbf16> to vector<512x256xbf16>
    %cst_68 = arith.constant dense<0.000000e+00> : vector<4x256xf32>
    %51 = tpu.matmul %48, %50, %cst_68 {dimension_numbers = #tpu.dot_dimension_numbers<[1], [0], [0], [1], [0, 0, 1, 1], [], []>} : vector<4x512xbf16>, vector<512x256xbf16>, vector<4x256xf32> -> vector<4x256xf32>
    %52 = arith.addf %46, %51 : vector<4x256xf32>
    %53 = vector.extract_strided_slice %15 {offsets = [2, 0, 0], sizes = [2, 2, 512], strides = [1, 1, 1]} : vector<4x2x512xbf16> to vector<2x2x512xbf16>
    %54 = vector.shape_cast %53 : vector<2x2x512xbf16> to vector<4x512xbf16>
    %c2_69 = arith.constant 2 : index
    %c0_70 = arith.constant 0 : index
    %c0_71 = arith.constant 0 : index
    %c0_72 = arith.constant 0 : index
    %55 = vector.load %arg2[%c2_69, %c0_70, %c0_71, %c0_72] : memref<3x3x512x256xbf16, #tpu.memory_space<vmem>>, vector<1x1x512x256xbf16>
    %56 = vector.shape_cast %55 : vector<1x1x512x256xbf16> to vector<512x256xbf16>
    %cst_73 = arith.constant dense<0.000000e+00> : vector<4x256xf32>
    %57 = tpu.matmul %54, %56, %cst_73 {dimension_numbers = #tpu.dot_dimension_numbers<[1], [0], [0], [1], [0, 0, 1, 1], [], []>} : vector<4x512xbf16>, vector<512x256xbf16>, vector<4x256xf32> -> vector<4x256xf32>
    %58 = arith.addf %52, %57 : vector<4x256xf32>
    %59 = vector.extract_strided_slice %16 {offsets = [2, 0, 0], sizes = [2, 2, 512], strides = [1, 1, 1]} : vector<4x2x512xbf16> to vector<2x2x512xbf16>
    %60 = vector.shape_cast %59 : vector<2x2x512xbf16> to vector<4x512xbf16>
    %c2_74 = arith.constant 2 : index
    %c1_75 = arith.constant 1 : index
    %c0_76 = arith.constant 0 : index
    %c0_77 = arith.constant 0 : index
    %61 = vector.load %arg2[%c2_74, %c1_75, %c0_76, %c0_77] : memref<3x3x512x256xbf16, #tpu.memory_space<vmem>>, vector<1x1x512x256xbf16>
    %62 = vector.shape_cast %61 : vector<1x1x512x256xbf16> to vector<512x256xbf16>
    %cst_78 = arith.constant dense<0.000000e+00> : vector<4x256xf32>
    %63 = tpu.matmul %60, %62, %cst_78 {dimension_numbers = #tpu.dot_dimension_numbers<[1], [0], [0], [1], [0, 0, 1, 1], [], []>} : vector<4x512xbf16>, vector<512x256xbf16>, vector<4x256xf32> -> vector<4x256xf32>
    %64 = arith.addf %58, %63 : vector<4x256xf32>
    %65 = vector.extract_strided_slice %17 {offsets = [2, 0, 0], sizes = [2, 2, 512], strides = [1, 1, 1]} : vector<4x2x512xbf16> to vector<2x2x512xbf16>
    %66 = vector.shape_cast %65 : vector<2x2x512xbf16> to vector<4x512xbf16>
    %c2_79 = arith.constant 2 : index
    %c2_80 = arith.constant 2 : index
    %c0_81 = arith.constant 0 : index
    %c0_82 = arith.constant 0 : index
    %67 = vector.load %arg2[%c2_79, %c2_80, %c0_81, %c0_82] : memref<3x3x512x256xbf16, #tpu.memory_space<vmem>>, vector<1x1x512x256xbf16>
    %68 = vector.shape_cast %67 : vector<1x1x512x256xbf16> to vector<512x256xbf16>
    %cst_83 = arith.constant dense<0.000000e+00> : vector<4x256xf32>
    %69 = tpu.matmul %66, %68, %cst_83 {dimension_numbers = #tpu.dot_dimension_numbers<[1], [0], [0], [1], [0, 0, 1, 1], [], []>} : vector<4x512xbf16>, vector<512x256xbf16>, vector<4x256xf32> -> vector<4x256xf32>
    %70 = arith.addf %64, %69 : vector<4x256xf32>
    %cst_84 = arith.constant 0.000000e+00 : f32
    %71 = vector.broadcast %cst_84 : f32 to vector<4x256xf32>
    %72 = arith.maximumf %70, %71 : vector<4x256xf32>
    %73 = arith.truncf %72 : vector<4x256xf32> to vector<4x256xbf16>
    %74 = vector.shape_cast %73 : vector<4x256xbf16> to vector<2x2x256xbf16>
    %c1_85 = arith.constant 1 : index
    %c1_86 = arith.constant 1 : index
    %c0_87 = arith.constant 0 : index
    %75 = vector.load %arg9[%c1_85, %c1_86, %c0_87] : memref<4x4x256xbf16, #tpu.memory_space<vmem>>, vector<2x2x256xbf16>
    tpu.vector_store %arg9[%c1_85, %c1_86, %c0_87], %74 {strides = array<i32>} : memref<4x4x256xbf16, #tpu.memory_space<vmem>>, vector<2x2x256xbf16>,
    %c0_88 = arith.constant 0 : index
    %c0_89 = arith.constant 0 : index
    %c0_90 = arith.constant 0 : index
    %76 = vector.load %arg9[%c0_88, %c0_89, %c0_90] : memref<4x4x256xbf16, #tpu.memory_space<vmem>>, vector<4x2x256xbf16>
    %c0_91 = arith.constant 0 : index
    %c1_92 = arith.constant 1 : index
    %c0_93 = arith.constant 0 : index
    %77 = vector.load %arg9[%c0_91, %c1_92, %c0_93] : memref<4x4x256xbf16, #tpu.memory_space<vmem>>, vector<4x2x256xbf16>
    %c0_94 = arith.constant 0 : index
    %c2_95 = arith.constant 2 : index
    %c0_96 = arith.constant 0 : index
    %78 = vector.load %arg9[%c0_94, %c2_95, %c0_96] : memref<4x4x256xbf16, #tpu.memory_space<vmem>>, vector<4x2x256xbf16>
    %79 = vector.extract_strided_slice %76 {offsets = [0, 0, 0], sizes = [2, 2, 256], strides = [1, 1, 1]} : vector<4x2x256xbf16> to vector<2x2x256xbf16>
    %80 = vector.shape_cast %79 : vector<2x2x256xbf16> to vector<4x256xbf16>
    %c0_97 = arith.constant 0 : index
    %c0_98 = arith.constant 0 : index
    %c0_99 = arith.constant 0 : index
    %c0_100 = arith.constant 0 : index
    %81 = vector.load %arg3[%c0_97, %c0_98, %c0_99, %c0_100] : memref<3x3x256x128xbf16, #tpu.memory_space<vmem>>, vector<1x1x256x128xbf16>
    %82 = vector.shape_cast %81 : vector<1x1x256x128xbf16> to vector<256x128xbf16>
    %cst_101 = arith.constant dense<0.000000e+00> : vector<4x128xf32>
    %83 = tpu.matmul %80, %82, %cst_101 {dimension_numbers = #tpu.dot_dimension_numbers<[1], [0], [0], [1], [0, 0, 1, 1], [], []>} : vector<4x256xbf16>, vector<256x128xbf16>, vector<4x128xf32> -> vector<4x128xf32>
    %84 = vector.extract_strided_slice %77 {offsets = [0, 0, 0], sizes = [2, 2, 256], strides = [1, 1, 1]} : vector<4x2x256xbf16> to vector<2x2x256xbf16>
    %85 = vector.shape_cast %84 : vector<2x2x256xbf16> to vector<4x256xbf16>
    %c0_102 = arith.constant 0 : index
    %c1_103 = arith.constant 1 : index
    %c0_104 = arith.constant 0 : index
    %c0_105 = arith.constant 0 : index
    %86 = vector.load %arg3[%c0_102, %c1_103, %c0_104, %c0_105] : memref<3x3x256x128xbf16, #tpu.memory_space<vmem>>, vector<1x1x256x128xbf16>
    %87 = vector.shape_cast %86 : vector<1x1x256x128xbf16> to vector<256x128xbf16>
    %cst_106 = arith.constant dense<0.000000e+00> : vector<4x128xf32>
    %88 = tpu.matmul %85, %87, %cst_106 {dimension_numbers = #tpu.dot_dimension_numbers<[1], [0], [0], [1], [0, 0, 1, 1], [], []>} : vector<4x256xbf16>, vector<256x128xbf16>, vector<4x128xf32> -> vector<4x128xf32>
    %89 = arith.addf %83, %88 : vector<4x128xf32>
    %90 = vector.extract_strided_slice %78 {offsets = [0, 0, 0], sizes = [2, 2, 256], strides = [1, 1, 1]} : vector<4x2x256xbf16> to vector<2x2x256xbf16>
    %91 = vector.shape_cast %90 : vector<2x2x256xbf16> to vector<4x256xbf16>
    %c0_107 = arith.constant 0 : index
    %c2_108 = arith.constant 2 : index
    %c0_109 = arith.constant 0 : index
    %c0_110 = arith.constant 0 : index
    %92 = vector.load %arg3[%c0_107, %c2_108, %c0_109, %c0_110] : memref<3x3x256x128xbf16, #tpu.memory_space<vmem>>, vector<1x1x256x128xbf16>
    %93 = vector.shape_cast %92 : vector<1x1x256x128xbf16> to vector<256x128xbf16>
    %cst_111 = arith.constant dense<0.000000e+00> : vector<4x128xf32>
    %94 = tpu.matmul %91, %93, %cst_111 {dimension_numbers = #tpu.dot_dimension_numbers<[1], [0], [0], [1], [0, 0, 1, 1], [], []>} : vector<4x256xbf16>, vector<256x128xbf16>, vector<4x128xf32> -> vector<4x128xf32>
    %95 = arith.addf %89, %94 : vector<4x128xf32>
    %96 = vector.extract_strided_slice %76 {offsets = [1, 0, 0], sizes = [2, 2, 256], strides = [1, 1, 1]} : vector<4x2x256xbf16> to vector<2x2x256xbf16>
    %97 = vector.shape_cast %96 : vector<2x2x256xbf16> to vector<4x256xbf16>
    %c1_112 = arith.constant 1 : index
    %c0_113 = arith.constant 0 : index
    %c0_114 = arith.constant 0 : index
    %c0_115 = arith.constant 0 : index
    %98 = vector.load %arg3[%c1_112, %c0_113, %c0_114, %c0_115] : memref<3x3x256x128xbf16, #tpu.memory_space<vmem>>, vector<1x1x256x128xbf16>
    %99 = vector.shape_cast %98 : vector<1x1x256x128xbf16> to vector<256x128xbf16>
    %cst_116 = arith.constant dense<0.000000e+00> : vector<4x128xf32>
    %100 = tpu.matmul %97, %99, %cst_116 {dimension_numbers = #tpu.dot_dimension_numbers<[1], [0], [0], [1], [0, 0, 1, 1], [], []>} : vector<4x256xbf16>, vector<256x128xbf16>, vector<4x128xf32> -> vector<4x128xf32>
    %101 = arith.addf %95, %100 : vector<4x128xf32>
    %102 = vector.extract_strided_slice %77 {offsets = [1, 0, 0], sizes = [2, 2, 256], strides = [1, 1, 1]} : vector<4x2x256xbf16> to vector<2x2x256xbf16>
    %103 = vector.shape_cast %102 : vector<2x2x256xbf16> to vector<4x256xbf16>
    %c1_117 = arith.constant 1 : index
    %c1_118 = arith.constant 1 : index
    %c0_119 = arith.constant 0 : index
    %c0_120 = arith.constant 0 : index
    %104 = vector.load %arg3[%c1_117, %c1_118, %c0_119, %c0_120] : memref<3x3x256x128xbf16, #tpu.memory_space<vmem>>, vector<1x1x256x128xbf16>
    %105 = vector.shape_cast %104 : vector<1x1x256x128xbf16> to vector<256x128xbf16>
    %cst_121 = arith.constant dense<0.000000e+00> : vector<4x128xf32>
    %106 = tpu.matmul %103, %105, %cst_121 {dimension_numbers = #tpu.dot_dimension_numbers<[1], [0], [0], [1], [0, 0, 1, 1], [], []>} : vector<4x256xbf16>, vector<256x128xbf16>, vector<4x128xf32> -> vector<4x128xf32>
    %107 = arith.addf %101, %106 : vector<4x128xf32>
    %108 = vector.extract_strided_slice %78 {offsets = [1, 0, 0], sizes = [2, 2, 256], strides = [1, 1, 1]} : vector<4x2x256xbf16> to vector<2x2x256xbf16>
    %109 = vector.shape_cast %108 : vector<2x2x256xbf16> to vector<4x256xbf16>
    %c1_122 = arith.constant 1 : index
    %c2_123 = arith.constant 2 : index
    %c0_124 = arith.constant 0 : index
    %c0_125 = arith.constant 0 : index
    %110 = vector.load %arg3[%c1_122, %c2_123, %c0_124, %c0_125] : memref<3x3x256x128xbf16, #tpu.memory_space<vmem>>, vector<1x1x256x128xbf16>
    %111 = vector.shape_cast %110 : vector<1x1x256x128xbf16> to vector<256x128xbf16>
    %cst_126 = arith.constant dense<0.000000e+00> : vector<4x128xf32>
    %112 = tpu.matmul %109, %111, %cst_126 {dimension_numbers = #tpu.dot_dimension_numbers<[1], [0], [0], [1], [0, 0, 1, 1], [], []>} : vector<4x256xbf16>, vector<256x128xbf16>, vector<4x128xf32> -> vector<4x128xf32>
    %113 = arith.addf %107, %112 : vector<4x128xf32>
    %114 = vector.extract_strided_slice %76 {offsets = [2, 0, 0], sizes = [2, 2, 256], strides = [1, 1, 1]} : vector<4x2x256xbf16> to vector<2x2x256xbf16>
    %115 = vector.shape_cast %114 : vector<2x2x256xbf16> to vector<4x256xbf16>
    %c2_127 = arith.constant 2 : index
    %c0_128 = arith.constant 0 : index
    %c0_129 = arith.constant 0 : index
    %c0_130 = arith.constant 0 : index
    %116 = vector.load %arg3[%c2_127, %c0_128, %c0_129, %c0_130] : memref<3x3x256x128xbf16, #tpu.memory_space<vmem>>, vector<1x1x256x128xbf16>
    %117 = vector.shape_cast %116 : vector<1x1x256x128xbf16> to vector<256x128xbf16>
    %cst_131 = arith.constant dense<0.000000e+00> : vector<4x128xf32>
    %118 = tpu.matmul %115, %117, %cst_131 {dimension_numbers = #tpu.dot_dimension_numbers<[1], [0], [0], [1], [0, 0, 1, 1], [], []>} : vector<4x256xbf16>, vector<256x128xbf16>, vector<4x128xf32> -> vector<4x128xf32>
    %119 = arith.addf %113, %118 : vector<4x128xf32>
    %120 = vector.extract_strided_slice %77 {offsets = [2, 0, 0], sizes = [2, 2, 256], strides = [1, 1, 1]} : vector<4x2x256xbf16> to vector<2x2x256xbf16>
    %121 = vector.shape_cast %120 : vector<2x2x256xbf16> to vector<4x256xbf16>
    %c2_132 = arith.constant 2 : index
    %c1_133 = arith.constant 1 : index
    %c0_134 = arith.constant 0 : index
    %c0_135 = arith.constant 0 : index
    %122 = vector.load %arg3[%c2_132, %c1_133, %c0_134, %c0_135] : memref<3x3x256x128xbf16, #tpu.memory_space<vmem>>, vector<1x1x256x128xbf16>
    %123 = vector.shape_cast %122 : vector<1x1x256x128xbf16> to vector<256x128xbf16>
    %cst_136 = arith.constant dense<0.000000e+00> : vector<4x128xf32>
    %124 = tpu.matmul %121, %123, %cst_136 {dimension_numbers = #tpu.dot_dimension_numbers<[1], [0], [0], [1], [0, 0, 1, 1], [], []>} : vector<4x256xbf16>, vector<256x128xbf16>, vector<4x128xf32> -> vector<4x128xf32>
    %125 = arith.addf %119, %124 : vector<4x128xf32>
    %126 = vector.extract_strided_slice %78 {offsets = [2, 0, 0], sizes = [2, 2, 256], strides = [1, 1, 1]} : vector<4x2x256xbf16> to vector<2x2x256xbf16>
    %127 = vector.shape_cast %126 : vector<2x2x256xbf16> to vector<4x256xbf16>
    %c2_137 = arith.constant 2 : index
    %c2_138 = arith.constant 2 : index
    %c0_139 = arith.constant 0 : index
    %c0_140 = arith.constant 0 : index
    %128 = vector.load %arg3[%c2_137, %c2_138, %c0_139, %c0_140] : memref<3x3x256x128xbf16, #tpu.memory_space<vmem>>, vector<1x1x256x128xbf16>
    %129 = vector.shape_cast %128 : vector<1x1x256x128xbf16> to vector<256x128xbf16>
    %cst_141 = arith.constant dense<0.000000e+00> : vector<4x128xf32>
    %130 = tpu.matmul %127, %129, %cst_141 {dimension_numbers = #tpu.dot_dimension_numbers<[1], [0], [0], [1], [0, 0, 1, 1], [], []>} : vector<4x256xbf16>, vector<256x128xbf16>, vector<4x128xf32> -> vector<4x128xf32>
    %131 = arith.addf %125, %130 : vector<4x128xf32>
    %c0_142 = arith.constant 0 : index
    %c0_143 = arith.constant 0 : index
    %c0_144 = arith.constant 0 : index
    %c0_145 = arith.constant 0 : index
    %132 = vector.load %arg1[%c0_142, %c0_143, %c0_144, %c0_145] : memref<1x2x2x512xbf16, #tpu.memory_space<vmem>>, vector<1x2x2x512xbf16>
    %133 = vector.shape_cast %132 : vector<1x2x2x512xbf16> to vector<2x2x512xbf16>
    %134 = vector.shape_cast %133 : vector<2x2x512xbf16> to vector<4x512xbf16>
    %c0_146 = arith.constant 0 : index
    %c0_147 = arith.constant 0 : index
    %135 = vector.load %arg4[%c0_146, %c0_147] : memref<512x128xbf16, #tpu.memory_space<vmem>>, vector<512x128xbf16>
    %cst_148 = arith.constant dense<0.000000e+00> : vector<4x128xf32>
    %136 = tpu.matmul %134, %135, %cst_148 {dimension_numbers = #tpu.dot_dimension_numbers<[1], [0], [0], [1], [0, 0, 1, 1], [], []>} : vector<4x512xbf16>, vector<512x128xbf16>, vector<4x128xf32> -> vector<4x128xf32>
    %137 = arith.addf %131, %136 : vector<4x128xf32>
    %cst_149 = arith.constant 0.000000e+00 : f32
    %138 = vector.broadcast %cst_149 : f32 to vector<4x128xf32>
    %139 = arith.maximumf %137, %138 : vector<4x128xf32>
    %140 = arith.truncf %139 : vector<4x128xf32> to vector<4x128xbf16>
    %c0_150 = arith.constant 0 : index
    %c0_151 = arith.constant 0 : index
    %141 = vector.load %arg5[%c0_150, %c0_151] : memref<1x128xbf16, #tpu.memory_space<vmem>>, vector<1x128xbf16>
    %cst_152 = arith.constant dense<0.000000e+00> : vector<1x4xf32>
    %142 = tpu.matmul %141, %140, %cst_152 {dimension_numbers = #tpu.dot_dimension_numbers<[1], [1], [0], [0], [0, 0, 1, 0], [], []>} : vector<1x128xbf16>, vector<4x128xbf16>, vector<1x4xf32> -> vector<1x4xf32>
    %c0_153 = arith.constant 0 : index
    %c0_154 = arith.constant 0 : index
    %143 = vector.load %arg6[%c0_153, %c0_154] : memref<1x1xf32, #tpu.memory_space<vmem>>, vector<1x1xf32>
    %144 = vector.broadcast %143 : vector<1x1xf32> to vector<1x4xf32>
    %145 = arith.addf %142, %144 : vector<1x4xf32>
    %146 = math.absf %145 : vector<1x4xf32>
    %147 = vector.shape_cast %146 : vector<1x4xf32> to vector<1x1x4xf32>
    %c0_155 = arith.constant 0 : index
    %c0_156 = arith.constant 0 : index
    %c0_157 = arith.constant 0 : index
    %148 = vector.load %arg7[%c0_155, %c0_156, %c0_157] : memref<1x1x4xf32, #tpu.memory_space<vmem>>, vector<1x1x4xf32>
    tpu.vector_store %arg7[%c0_155, %c0_156, %c0_157], %147 {strides = array<i32>} : memref<1x1x4xf32, #tpu.memory_space<vmem>>, vector<1x1x4xf32>,
    return
  }
  func.func @transform_0(%arg0: i32) -> (i32, i32, i32, i32) {
    %c0_i32 = arith.constant 0 : i32
    %c0_i32_0 = arith.constant 0 : i32
    %c0_i32_1 = arith.constant 0 : i32
    %c0_i32_2 = arith.constant 0 : i32
    return %arg0, %c0_i32, %c0_i32_0, %c0_i32_1 : i32, i32, i32, i32
  }
  func.func @transform_1(%arg0: i32) -> (i32, i32, i32, i32) {
    %c0_i32 = arith.constant 0 : i32
    %c0_i32_0 = arith.constant 0 : i32
    %c0_i32_1 = arith.constant 0 : i32
    %c0_i32_2 = arith.constant 0 : i32
    %c0_i32_3 = arith.constant 0 : i32
    return %c0_i32, %c0_i32_0, %c0_i32_1, %c0_i32_2 : i32, i32, i32, i32
  }
  func.func @transform_2(%arg0: i32) -> (i32, i32, i32, i32) {
    %c0_i32 = arith.constant 0 : i32
    %c0_i32_0 = arith.constant 0 : i32
    %c0_i32_1 = arith.constant 0 : i32
    %c0_i32_2 = arith.constant 0 : i32
    %c0_i32_3 = arith.constant 0 : i32
    return %c0_i32, %c0_i32_0, %c0_i32_1, %c0_i32_2 : i32, i32, i32, i32
  }
  func.func @transform_3(%arg0: i32) -> (i32, i32) {
    %c0_i32 = arith.constant 0 : i32
    %c0_i32_0 = arith.constant 0 : i32
    %c0_i32_1 = arith.constant 0 : i32
    return %c0_i32, %c0_i32_0 : i32, i32
  }
  func.func @transform_4(%arg0: i32) -> (i32, i32) {
    %c0_i32 = arith.constant 0 : i32
    %c0_i32_0 = arith.constant 0 : i32
    %c0_i32_1 = arith.constant 0 : i32
    return %c0_i32, %c0_i32_0 : i32, i32
  }
  func.func @transform_5(%arg0: i32) -> (i32, i32) {
    %c0_i32 = arith.constant 0 : i32
    %c0_i32_0 = arith.constant 0 : i32
    %c0_i32_1 = arith.constant 0 : i32
    return %c0_i32, %c0_i32_0 : i32, i32
  }
  func.func @transform_6(%arg0: i32) -> (i32, i32, i32) {
    %c0_i32 = arith.constant 0 : i32
    %c0_i32_0 = arith.constant 0 : i32
    %c0_i32_1 = arith.constant 0 : i32
    return %arg0, %c0_i32, %c0_i32_0 : i32, i32, i32
  }
}

</mosaic_0001>

<llo_original>
// kernel: tpu_custom_call.1
$region0: #{tpu_custom_call.1}
  #allocation0 [shape = 'u32[]', space=smem, size = 0x4, offset = 0x4, fixed_abs, tag = 'smem constant byte address 0x4 - core index']
  #allocation1 [shape = 'u32[72,128]{1,0:T(1,128)}', space=vmem, size = 0x9000, scoped, tag = 'internal scratch']
  %s0 = inlined_call_operand.hbm [shape: f32[8,128], index: 0, kind: input, shape index: {}]
  %s1 = inlined_call_operand.hbm [shape: f32[16,128], index: 1, kind: output, shape index: {}]
  %s2 = sld [smem:[#allocation0]]
  $region41: #{tpu_custom_call.1} parent=0
    _
  %s4 = ssub.s32 1, %s2
  %s5 = scalar_select 0, %s4, %s2
  $region1: #{tpu_custom_call.1} parent=0
    #allocation2 [shape = 'u8[4096]{0}', space=vmem, size = 0x1000, scoped, tag = 'input window, operand 0, single buffered']
    #allocation3 [shape = 's32[2]{0}', space=sflag, size = 0x8, scoped, tag = 'scoped memory for tpu_custom_call.1']
    #allocation4 [shape = 's32[2]{0}', space=sflag, size = 0x8, scoped, tag = 'scoped memory for tpu_custom_call.1']
    #allocation5 [shape = 'u8[8192]{0}', space=vmem, size = 0x2000, scoped, tag = 'output window, operand 0']
    %6 = vsyncpa [#allocation3], 0
    %7 = vsyncpa [#allocation4], 0
    %s8 = scalar_lea.sflag [#allocation4], 1
    %9 = vsyncpa %s8, 0
    loop: start=0, step=1, limit=4
    $region2: #{tpu_custom_call.1} parent=1 // loop_pre_header
      _
    $region3: #{tpu_custom_call.1} parent=1 // loop_header
      %s11 = sphi 0, %s15
      %p12 = scmp.ge.s32.totalorder %s11, 4
      %s19 = sphi 0, %s19
      %s21 = sphi 0, %s19
      %s22 = sphi 0, %s21
      %s36 = sphi 0, %s22
      %s42 = sphi 0, %s44
      %s45 = sphi 0, %s42
      %s46 = sphi 0, %s45
      %s62 = sphi 0, %s46
    $region4: #{tpu_custom_call.1} parent=1 // loop_header_branch
      %14 = sbr.rel (%p12) target = $region8
    $region5: #{tpu_custom_call.1} parent=1 // loop_body
      %s16 = ssub.s32 %s11, 1
      %s17 = ssub.s32 %s11, 2
      %s18 = sadd.s32 %s11, 1
      %s20 = sadd.s32 %s19, 1
      %p23 = scmp.eq.s32.totalorder %s11, 1
      %p24 = scmp.ne.s32.totalorder %s19, %s21
      %p25 = scmp.eq.s32.totalorder %s11, 0
      %p26 = por %p24, %p25
      %p27 = scmp.ne.s32.totalorder %s19, %s21
      %p28 = scmp.eq.s32.totalorder %s16, 1
      %p29 = por %p27, %p28
      %p30 = scmp.ne.s32.totalorder %s21, %s22
      %p31 = scmp.eq.s32.totalorder %s16, 0
      %p32 = por %p30, %p31
      %p33 = scmp.ne.s32.totalorder %s21, %s22
      %p34 = scmp.eq.s32.totalorder %s17, 1
      %p35 = por %p33, %p34
      %p37 = scmp.ne.s32.totalorder %s22, %s36
      %p38 = scmp.eq.s32.totalorder %s17, 0
      %p39 = por %p37, %p38
      %s40 = ssub.s32 %s11, %s18
      %p41 = scmp.eq.s32.totalorder %s40, 0
      %s43 = sadd.s32 %s42, 1
      %s44 = scalar_select %p41, %s42, %s43
      %p47 = pneg %p41
      %p48 = scmp.eq.s32.totalorder %s11, 1
      %p49 = por %p47, %p48
      %p50 = scmp.ne.s32.totalorder %s42, %s45
      %p51 = scmp.eq.s32.totalorder %s11, 0
      %p52 = por %p50, %p51
      %p53 = scmp.ne.s32.totalorder %s42, %s45
      %p54 = scmp.eq.s32.totalorder %s16, 1
      %p55 = por %p53, %p54
      %p56 = scmp.ne.s32.totalorder %s45, %s46
      %p57 = scmp.eq.s32.totalorder %s16, 0
      %p58 = por %p56, %p57
      %p59 = scmp.ne.s32.totalorder %s45, %s46
      %p60 = scmp.eq.s32.totalorder %s17, 1
      %p61 = por %p59, %p60
      %p63 = scmp.ne.s32.totalorder %s46, %s62
      %p64 = scmp.eq.s32.totalorder %s17, 0
      %p65 = por %p63, %p64
      %p66 = scmp.le.s32.totalorder 1, %s11
      %p67 = scmp.lt.s32.totalorder %s11, 3
      %p68 = pnand %p66, %p67
      %p69 = pneg %p68
      // Predicated region
      $region9: #{tpu_custom_call.1} parent=5 // pred_check
        _
      $region10: #{tpu_custom_call.1} parent=5 // pred_check_branch
        %71 = sbr.rel (%p68) target = $region12
      $region11: #{tpu_custom_call.1} parent=5 // pred_region
        %s72 = ssub.s32 %s11, 1
        // Predicated region
        $region13: #{tpu_custom_call.1} parent=11 // pred_check
          %p73 = pneg %p32
        $region14: #{tpu_custom_call.1} parent=11 // pred_check_branch
          %75 = sbr.rel (%p73) target = $region16
        $region15: #{tpu_custom_call.1} parent=11 // pred_region
          %77 = vsyncadd [#allocation3], 0
          %s79 = sshll.u32 %s0, 4
          %s80 = int_to_ptr.hbm [resolvable:$true] %s79
          %s81 = sshll.u32 [#allocation2], 4
          %s82 = int_to_ptr.vmem [resolvable:$true] %s81
          %84 = dma.hbm_to_vmem [thread:$0]  %s80, 128, %s82, [#allocation3]
        $region16: #{tpu_custom_call.1} parent=11 // pred_fallthru
          _
      $region12: #{tpu_custom_call.1} parent=5 // pred_fallthru
        _
      %p85 = scmp.lt.s32.totalorder %s11, 2
      // Predicated region
      $region17: #{tpu_custom_call.1} parent=5 // pred_check
        %p86 = pneg %p85
      $region18: #{tpu_custom_call.1} parent=5 // pred_check_branch
        %88 = sbr.rel (%p86) target = $region20
      $region19: #{tpu_custom_call.1} parent=5 // pred_region
        _
      $region20: #{tpu_custom_call.1} parent=5 // pred_fallthru
        _
      %p89 = scmp.le.s32.totalorder 1, %s11
      %p90 = scmp.lt.s32.totalorder %s11, 3
      %p91 = pnand %p89, %p90
      %p92 = pneg %p91
      // Predicated region
      $region21: #{tpu_custom_call.1} parent=5 // pred_check
        _
      $region22: #{tpu_custom_call.1} parent=5 // pred_check_branch
        %94 = sbr.rel (%p91) target = $region24
      $region23: #{tpu_custom_call.1} parent=5 // pred_region
        %s95 = ssub.s32 %s11, 1
        // Predicated region
        $region25: #{tpu_custom_call.1} parent=23 // pred_check
          %p96 = pneg %p32
        $region26: #{tpu_custom_call.1} parent=23 // pred_check_branch
          %98 = sbr.rel (%p96) target = $region28
        $region27: #{tpu_custom_call.1} parent=23 // pred_region
          %100 = dma.done [#allocation3], 128
        $region28: #{tpu_custom_call.1} parent=23 // pred_fallthru
          _
        %p101 = pneg %p32
        %p102 = pneg %p29
        %p103 = pneg %p58
        %p104 = pneg %p55
        %s105 = sand.u32 %s45, 1
        %s106 = scalar_lea.sflag [#allocation4], %s105
        %s107 = sand.u32 %s45, 1
        %s108 = smul.addr %s107, 8
        %s109 = scalar_lea.vmem [#allocation5], %s108
        %v110 = vld [vmem:[#allocation2] sm:$0xff]
        %v111 = vadd.f32 %v110, 1.0
        %112 = vst [vmem:[%s109] sm:$0xff] %v111
        %s113 = sand.u32 %s45, 1
        %s114 = scalar_lea.sflag [#allocation4], %s113
        %s115 = sand.u32 %s45, 1
        %s116 = smul.addr %s115, 8
        %s117 = scalar_lea.vmem [#allocation5], %s116
        // Predicated region
        $region29: #{tpu_custom_call.1} parent=23 // pred_check
          %p118 = pneg %p55
        $region30: #{tpu_custom_call.1} parent=23 // pred_check_branch
          %120 = sbr.rel (%p118) target = $region32
        $region31: #{tpu_custom_call.1} parent=23 // pred_region
          %122 = vsyncadd %s114, 0
          %s123 = smul.addr %s16, 8
          %s124 = scalar_lea.hbm %s1, %s123
          %s126 = sshll.u32 %s117, 4
          %s127 = int_to_ptr.vmem [resolvable:$true] %s126
          %s128 = sshll.u32 %s124, 4
          %s129 = int_to_ptr.hbm [resolvable:$true] %s128
          %131 = dma.vmem_to_hbm [thread:$0]  %s127, 128, %s129, %s114
        $region32: #{tpu_custom_call.1} parent=23 // pred_fallthru
          _
      $region24: #{tpu_custom_call.1} parent=5 // pred_fallthru
        _
      %p132 = scmp.le.s32.totalorder 2, %s11
      // Predicated region
      $region33: #{tpu_custom_call.1} parent=5 // pred_check
        %p133 = pneg %p132
      $region34: #{tpu_custom_call.1} parent=5 // pred_check_branch
        %135 = sbr.rel (%p133) target = $region36
      $region35: #{tpu_custom_call.1} parent=5 // pred_region
        %s136 = ssub.s32 %s11, 2
        // Predicated region
        $region37: #{tpu_custom_call.1} parent=35 // pred_check
          %p137 = pneg %p61
        $region38: #{tpu_custom_call.1} parent=35 // pred_check_branch
          %139 = sbr.rel (%p137) target = $region40
        $region39: #{tpu_custom_call.1} parent=35 // pred_region
          %s140 = sand.u32 %s46, 1
          %s141 = scalar_lea.sflag [#allocation4], %s140
          %s142 = sand.u32 %s46, 1
          %s143 = smul.addr %s142, 8
          %s144 = scalar_lea.vmem [#allocation5], %s143
          %146 = dma.done %s141, 128
        $region40: #{tpu_custom_call.1} parent=35 // pred_fallthru
          _
      $region36: #{tpu_custom_call.1} parent=5 // pred_fallthru
        _
    $region6: #{tpu_custom_call.1} parent=1 // loop_footer
      %s15 = sadd.s32 1, %s11
    $region7: #{tpu_custom_call.1} parent=1 // loop_footer_branch
      %10 = sbr.rel target = $region3
    $region8: #{tpu_custom_call.1} parent=1 // loop_exit
      _
    %147 = vsyncpa [#allocation3], 1
    %s148 = scalar_lea.sflag [#allocation3], 1
    %149 = vsyncpa %s148, 1
    %150 = vsyncpa [#allocation4], 1
    %s151 = scalar_lea.sflag [#allocation4], 1
    %152 = vsyncpa %s151, 1

// kernel: tpu_custom_call.1
$region0: #{tpu_custom_call.1}
  #allocation0 [shape = 'u32[]', space=smem, size = 0x4, offset = 0x4, fixed_abs, tag = 'smem constant byte address 0x4 - core index']
  #allocation1 [shape = 'u32[72,128]{1,0:T(1,128)}', space=vmem, size = 0x9000, scoped, tag = 'internal scratch']
  %s0 = inlined_call_operand.hbm [shape: f32[6,8,128], index: 0, kind: input, shape index: {}]
  %s1 = inlined_call_operand.hbm [shape: f32[6,8,128], index: 1, kind: input, shape index: {}]
  %s2 = inlined_call_operand.hbm [shape: f32[6,8,128], index: 2, kind: input, shape index: {}]
  %s3 = inlined_call_operand.hbm [shape: f32[6,8,384], index: 3, kind: output, shape index: {}]
  %s4 = sld [smem:[#allocation0]]
  $region34: #{tpu_custom_call.1} parent=0
    _
  %s6 = ssub.s32 1, %s4
  %s7 = scalar_select 0, %s6, %s4
  $region1: #{tpu_custom_call.1} parent=0
    #allocation2 [shape = 'u8[24576]{0}', space=vmem, size = 0x6000, scoped, tag = 'input window, operand 0, single buffered']
    #allocation3 [shape = 's32[1]{0}', space=sflag, size = 0x4, scoped, tag = 'scoped memory for tpu_custom_call.1']
    #allocation4 [shape = 's32[1]{0}', space=sflag, size = 0x4, scoped, tag = 'scoped memory for tpu_custom_call.1']
    #allocation5 [shape = 'u8[24576]{0}', space=vmem, size = 0x6000, scoped, tag = 'input window, operand 1, single buffered']
    #allocation6 [shape = 's32[1]{0}', space=sflag, size = 0x4, scoped, tag = 'scoped memory for tpu_custom_call.1']
    #allocation7 [shape = 'u8[24576]{0}', space=vmem, size = 0x6000, scoped, tag = 'input window, operand 2, single buffered']
    #allocation8 [shape = 'u8[73728]{0}', space=vmem, size = 0x12000, scoped, tag = 'output window, operand 0, single buffered']
    %8 = vsyncpa [#allocation3], 0
    %9 = vsyncpa [#allocation6], 0
    %10 = vsyncpa [#allocation4], 0
    // Predicated region
    $region2: #{tpu_custom_call.1} parent=1 // pred_check
      _
    $region3: #{tpu_custom_call.1} parent=1 // pred_check_branch
      %12 = sbr.rel (0) target = $region5
    $region4: #{tpu_custom_call.1} parent=1 // pred_region
      %14 = vsyncadd [#allocation3], 0
      %s15 = sshll.u32 %s0, 4
      %s16 = int_to_ptr.hbm [resolvable:$true] %s15
      %s17 = sshll.u32 [#allocation2], 4
      %s18 = int_to_ptr.vmem [resolvable:$true] %s17
      %23 = dma.hbm_to_vmem [thread:$0]  %s16, 768, %s18, [#allocation3], 128, 128, 8
    $region5: #{tpu_custom_call.1} parent=1 // pred_fallthru
      _
    // Predicated region
    $region6: #{tpu_custom_call.1} parent=1 // pred_check
      _
    $region7: #{tpu_custom_call.1} parent=1 // pred_check_branch
      %25 = sbr.rel (0) target = $region9
    $region8: #{tpu_custom_call.1} parent=1 // pred_region
      %27 = vsyncadd [#allocation6], 0
      %s28 = sshll.u32 %s1, 4
      %s29 = int_to_ptr.hbm [resolvable:$true] %s28
      %s30 = sshll.u32 [#allocation5], 4
      %s31 = int_to_ptr.vmem [resolvable:$true] %s30
      %36 = dma.hbm_to_vmem [thread:$0]  %s29, 768, %s31, [#allocation6], 128, 128, 8
    $region9: #{tpu_custom_call.1} parent=1 // pred_fallthru
      _
    // Predicated region
    $region10: #{tpu_custom_call.1} parent=1 // pred_check
      _
    $region11: #{tpu_custom_call.1} parent=1 // pred_check_branch
      %38 = sbr.rel (0) target = $region13
    $region12: #{tpu_custom_call.1} parent=1 // pred_region
      %40 = vsyncadd [#allocation6], 0
      %s41 = sshll.u32 %s2, 4
      %s42 = int_to_ptr.hbm [resolvable:$true] %s41
      %s43 = sshll.u32 [#allocation7], 4
      %s44 = int_to_ptr.vmem [resolvable:$true] %s43
      %49 = dma.hbm_to_vmem [thread:$0]  %s42, 768, %s44, [#allocation6], 128, 128, 8
    $region13: #{tpu_custom_call.1} parent=1 // pred_fallthru
      _
    // Predicated region
    $region14: #{tpu_custom_call.1} parent=1 // pred_check
      _
    $region15: #{tpu_custom_call.1} parent=1 // pred_check_branch
      %51 = sbr.rel (0) target = $region17
    $region16: #{tpu_custom_call.1} parent=1 // pred_region
      %53 = dma.done [#allocation3], 768
    $region17: #{tpu_custom_call.1} parent=1 // pred_fallthru
      _
    // Predicated region
    $region18: #{tpu_custom_call.1} parent=1 // pred_check
      _
    $region19: #{tpu_custom_call.1} parent=1 // pred_check_branch
      %55 = sbr.rel (0) target = $region21
    $region20: #{tpu_custom_call.1} parent=1 // pred_region
      %57 = dma.done [#allocation6], 768
    $region21: #{tpu_custom_call.1} parent=1 // pred_fallthru
      _
    // Predicated region
    $region22: #{tpu_custom_call.1} parent=1 // pred_check
      _
    $region23: #{tpu_custom_call.1} parent=1 // pred_check_branch
      %59 = sbr.rel (0) target = $region25
    $region24: #{tpu_custom_call.1} parent=1 // pred_region
      %61 = dma.done [#allocation6], 768
    $region25: #{tpu_custom_call.1} parent=1 // pred_fallthru
      _
    %v62 = vld [vmem:[#allocation2] sm:$0xff]
    %v63 = vld [vmem:[#allocation2 + $0x8] sm:$0xff]
    %v64 = vld [vmem:[#allocation2 + $0x10] sm:$0xff]
    %v65 = vld [vmem:[#allocation2 + $0x18] sm:$0xff]
    %v66 = vld [vmem:[#allocation2 + $0x20] sm:$0xff]
    %v67 = vld [vmem:[#allocation2 + $0x28] sm:$0xff]
    %v68 = vld [vmem:[#allocation5] sm:$0xff]
    %v69 = vld [vmem:[#allocation5 + $0x8] sm:$0xff]
    %v70 = vld [vmem:[#allocation5 + $0x10] sm:$0xff]
    %v71 = vld [vmem:[#allocation5 + $0x18] sm:$0xff]
    %v72 = vld [vmem:[#allocation5 + $0x20] sm:$0xff]
    %v73 = vld [vmem:[#allocation5 + $0x28] sm:$0xff]
    %v74 = vld [vmem:[#allocation7] sm:$0xff]
    %v75 = vld [vmem:[#allocation7 + $0x8] sm:$0xff]
    %v76 = vld [vmem:[#allocation7 + $0x10] sm:$0xff]
    %v77 = vld [vmem:[#allocation7 + $0x18] sm:$0xff]
    %v78 = vld [vmem:[#allocation7 + $0x20] sm:$0xff]
    %v79 = vld [vmem:[#allocation7 + $0x28] sm:$0xff]
    %80 = vst [vmem:[#allocation8] sm:$0xff] %v62
    %81 = vst [vmem:[#allocation8 + $0x8] sm:$0xff] %v68
    %82 = vst [vmem:[#allocation8 + $0x10] sm:$0xff] %v74
    %83 = vst [vmem:[#allocation8 + $0x18] sm:$0xff] %v63
    %84 = vst [vmem:[#allocation8 + $0x20] sm:$0xff] %v69
    %85 = vst [vmem:[#allocation8 + $0x28] sm:$0xff] %v75
    %86 = vst [vmem:[#allocation8 + $0x30] sm:$0xff] %v64
    %87 = vst [vmem:[#allocation8 + $0x38] sm:$0xff] %v70
    %88 = vst [vmem:[#allocation8 + $0x40] sm:$0xff] %v76
    %89 = vst [vmem:[#allocation8 + $0x48] sm:$0xff] %v65
    %90 = vst [vmem:[#allocation8 + $0x50] sm:$0xff] %v71
    %91 = vst [vmem:[#allocation8 + $0x58] sm:$0xff] %v77
    %92 = vst [vmem:[#allocation8 + $0x60] sm:$0xff] %v66
    %93 = vst [vmem:[#allocation8 + $0x68] sm:$0xff] %v72
    %94 = vst [vmem:[#allocation8 + $0x70] sm:$0xff] %v78
    %95 = vst [vmem:[#allocation8 + $0x78] sm:$0xff] %v67
    %96 = vst [vmem:[#allocation8 + $0x80] sm:$0xff] %v73
    %97 = vst [vmem:[#allocation8 + $0x88] sm:$0xff] %v79
    // Predicated region
    $region26: #{tpu_custom_call.1} parent=1 // pred_check
      _
    $region27: #{tpu_custom_call.1} parent=1 // pred_check_branch
      %99 = sbr.rel (0) target = $region29
    $region28: #{tpu_custom_call.1} parent=1 // pred_region
      %101 = vsyncadd [#allocation4], 0
      %s102 = sshll.u32 [#allocation8], 4
      %s103 = int_to_ptr.vmem [resolvable:$true] %s102
      %s104 = sshll.u32 %s3, 4
      %s105 = int_to_ptr.hbm [resolvable:$true] %s104
      %110 = dma.vmem_to_hbm [thread:$0]  %s103, 2304, %s105, [#allocation4], 384, 384, 24
    $region29: #{tpu_custom_call.1} parent=1 // pred_fallthru
      _
    // Predicated region
    $region30: #{tpu_custom_call.1} parent=1 // pred_check
      _
    $region31: #{tpu_custom_call.1} parent=1 // pred_check_branch
      %112 = sbr.rel (0) target = $region33
    $region32: #{tpu_custom_call.1} parent=1 // pred_region
      %114 = dma.done [#allocation4], 2304
    $region33: #{tpu_custom_call.1} parent=1 // pred_fallthru
      _
    %115 = vsyncpa [#allocation3], 1
    %116 = vsyncpa [#allocation6], 1
    %117 = vsyncpa [#allocation4], 1

</llo_original>
